<compile_context>
chip_gen: v6e
topology: v6e:2x2x1
jax: 0.10.0
libtpu: 0.0.40
codegen_flags: <defaults>
</compile_context>

<pallas_src>
import functools
import math

import jax
import jax.numpy as jnp
from jax.experimental import pallas as pl
from jax.experimental.pallas import tpu as pltpu

EPS = 1e-5


def _layernorm(x, gamma, beta):
    # mean / biased variance over the last dim (matches torch var(unbiased=False));
    # rsqrt goes to the EUP slot instead of a VALU divide + sqrt.
    mu = jnp.mean(x, axis=-1, keepdims=True)
    var = jnp.mean(jnp.square(x - mu), axis=-1, keepdims=True)
    return gamma * ((x - mu) * jax.lax.rsqrt(var + EPS)) + beta


def _vmem_limit_bytes():
    try:
        cap = int(pltpu.get_tpu_info().vmem_capacity_bytes)
    except Exception:
        cap = 64 * 1024 * 1024  # conservative (v7x-sized) assumption
    # Never request all of physical VMEM (v7x has 64 MiB / TensorCore); leave
    # headroom for compiler-internal scratch and the pipeline double buffers.
    return int(max(32 * 1024 * 1024, min(cap - 16 * 1024 * 1024, 64 * 1024 * 1024)))


def encoder_layer_kernel(
    xq_ref, xkv_ref, km_ref,
    wq_ref, bq_ref, wkv_ref, bkv_ref, wy_ref, w1_ref, b1_ref, w2_ref, vec_ref,
    out_ref,
    q_scr, m_scr, l_scr, acc_scr,
    *, num_heads, head_size,
):
    H, hs = num_heads, head_size
    ki = pl.program_id(2)
    nkv = pl.num_programs(2)
    cdt = wq_ref.dtype                    # MXU operand dtype (bf16 by default)

    x_q = xq_ref[0]                       # (tq, D)  f32 — also the residual
    x_kv = xkv_ref[0]                     # (tkv, D) f32
    tq, D = x_q.shape
    tkv = x_kv.shape[0]
    key_mask = km_ref[0, 0, 0:1, :]       # (1, tkv): 1 = valid key, 0 = padded

    def mxdot(a, w):                      # MXU matmul with f32 accumulation
        return jnp.dot(a.astype(cdt), w, preferred_element_type=jnp.float32)

    # ---- per-(b, q-tile) init: Q projection (scale folded in) + softmax state ----
    @pl.when(ki == 0)
    def _init():
        q = mxdot(x_q, wq_ref[...]) + bq_ref[...]            # (tq, D) f32
        q = q * (1.0 / math.sqrt(hs))                        # fold 1/sqrt(hs) into Q
        q_scr[...] = q.astype(cdt).reshape(tq, H, hs).transpose(1, 0, 2)
        m_scr[...] = jnp.full(m_scr.shape, -jnp.inf, m_scr.dtype)
        l_scr[...] = jnp.zeros(l_scr.shape, l_scr.dtype)
        acc_scr[...] = jnp.zeros(acc_scr.shape, acc_scr.dtype)

    # ---- K/V projection for this kv tile ----
    # TODO(synk): cache K/V per (b, kv-tile) in a full-S VMEM scratch when the
    # q-tile axis is not core-parallel, to avoid recomputing them per q-tile.
    kv = mxdot(x_kv, wkv_ref[...]) + bkv_ref[...]            # (tkv, 2D) f32
    k = kv[:, :D].astype(cdt).reshape(tkv, H, hs).transpose(1, 0, 2)  # (H, tkv, hs)
    v = kv[:, D:].astype(cdt).reshape(tkv, H, hs).transpose(1, 0, 2)  # (H, tkv, hs)

    # ---- scores for this (q-tile, kv-tile) block, head-batched on the MXU ----
    s = jnp.einsum("hqe,hke->hqk", q_scr[...], k,
                   preferred_element_type=jnp.float32)       # (H, tq, tkv)
    # binary key-padding mask == reference's s*m - 1e4*(1-m)
    s = jnp.where(key_mask[None, :, :] > 0.0, s, jnp.float32(-1e4))

    # ---- online softmax update ----
    m_prev = m_scr[...]
    m_new = jnp.maximum(m_prev, jnp.max(s, axis=-1, keepdims=True))
    alpha = jnp.exp(m_prev - m_new)
    p = jnp.exp(s - m_new)
    l_scr[...] = alpha * l_scr[...] + jnp.sum(p, axis=-1, keepdims=True)
    acc_scr[...] = alpha * acc_scr[...] + jnp.einsum(
        "hqk,hke->hqe", p.astype(cdt), v, preferred_element_type=jnp.float32)
    m_scr[...] = m_new

    # ---- finalize: output projection + residual/LN1 + FFN + residual/LN2 ----
    @pl.when(ki == nkv - 1)
    def _finalize():
        by, b2 = vec_ref[0:1, :], vec_ref[1:2, :]
        g1, beta1 = vec_ref[2:3, :], vec_ref[3:4, :]
        g2, beta2 = vec_ref[4:5, :], vec_ref[5:6, :]

        ctx = acc_scr[...] * pl.reciprocal(l_scr[...], approx=True)   # (H, tq, hs)
        # head-batched output projection summed over heads: no head-merge relayout
        attn = jnp.einsum("hqe,hed->hqd", ctx.astype(cdt), wy_ref[...],
                          preferred_element_type=jnp.float32).sum(axis=0) + by

        h1 = _layernorm(attn + x_q, g1, beta1)
        f = jnp.maximum(mxdot(h1, w1_ref[...]) + b1_ref[...], 0.0)
        f = mxdot(f, w2_ref[...]) + b2
        out_ref[0] = _layernorm(f + h1, g2, beta2)


def encoder_layer(x, key_mask, params, *, num_heads, head_size,
                  mxu_dtype=jnp.bfloat16, q_tile=None, kv_tile=None):
    """x: (B, S, D) f32; key_mask: (B, S) binary, 1 = valid key, 0 = padded key."""
    B, S, D = x.shape
    H, hs = num_heads, head_size
    assert D == H * hs

    tq = q_tile or min(S, 128)
    tkv = kv_tile or min(S, 128)
    assert S % tq == 0 and S % tkv == 0, "S must be divisible by the tile sizes"
    nq, nkv = S // tq, S // tkv

    (wq, bq, wk, bk, wv, bv, wy, by,
     g1, beta1, w1, b1, w2, b2, g2, beta2) = params
    F = w1.shape[1]

    # Weights cast to the MXU operand dtype wrapper-side; biases / LN params f32.
    w_q = wq.astype(mxu_dtype)                                     # (D, D)
    w_kv = jnp.concatenate([wk, wv], axis=1).astype(mxu_dtype)     # (D, 2D)
    b_kv = jnp.concatenate([bk, bv], axis=1)                       # (1, 2D)
    wy3 = wy.reshape(H, hs, D).astype(mxu_dtype)                   # head-major rows
    w1_c = w1.astype(mxu_dtype)
    w2_c = w2.astype(mxu_dtype)
    vecs = jnp.concatenate([by, b2, g1, beta1, g2, beta2], axis=0)  # (6, D) f32

    # Key-padding mask pre-tiled to (B, nkv, 8, tkv) so the per-kv-tile block
    # keeps tkv lane-dense without violating the (8, 128) block constraint.
    km = key_mask.astype(jnp.float32).reshape(B, nkv, 1, tkv)
    km = jnp.broadcast_to(km, (B, nkv, 8, tkv))

    kernel = functools.partial(encoder_layer_kernel, num_heads=H, head_size=hs)

    x_q_spec = pl.BlockSpec((1, tq, D), lambda b, qi, ki: (b, qi, 0))
    x_kv_spec = pl.BlockSpec((1, tkv, D), lambda b, qi, ki: (b, ki, 0))
    km_spec = pl.BlockSpec((1, 1, 8, tkv), lambda b, qi, ki: (b, ki, 0, 0))
    out_spec = pl.BlockSpec((1, tq, D), lambda b, qi, ki: (b, qi, 0))

    weight_arrays = (w_q, bq, w_kv, b_kv, wy3, w1_c, b1, w2_c, vecs)

    flops = int(2 * B * S * D * 3 * D          # Q/K/V projections
                + 4 * B * H * S * S * hs       # QK^T and PV
                + 2 * B * S * D * D            # output projection
                + 4 * B * S * D * F)           # FFN
    transc = int(B * H * S * S)
    nbytes = int(4 * (2 * x.size + km.size)
                 + sum(int(a.size) * a.dtype.itemsize for a in weight_arrays))
    cost = pl.CostEstimate(flops=flops, transcendentals=transc,
                           bytes_accessed=nbytes)

    def build_call(single_buffer_weights):
        def wspec(arr):  # full, grid-invariant block (weights / packed params)
            ndim = arr.ndim
            imap = lambda b, qi, ki: (0,) * ndim
            if single_buffer_weights:
                # constant index map -> never re-fetched; second buffer is waste
                return pl.BlockSpec(arr.shape, imap, pipeline_mode=pl.Buffered(1))
            return pl.BlockSpec(arr.shape, imap)

        grid_spec = pltpu.PrefetchScalarGridSpec(
            num_scalar_prefetch=0,
            grid=(B, nq, nkv),
            in_specs=[x_q_spec, x_kv_spec, km_spec]
                     + [wspec(a) for a in weight_arrays],
            out_specs=out_spec,
            scratch_shapes=[
                pltpu.VMEM((H, tq, hs), mxu_dtype),    # scaled Q, head-batched
                pltpu.VMEM((H, tq, 1), jnp.float32),   # running max
                pltpu.VMEM((H, tq, 1), jnp.float32),   # running sum
                pltpu.VMEM((H, tq, hs), jnp.float32),  # running context
            ])
        return pl.pallas_call(
            kernel,
            out_shape=jax.ShapeDtypeStruct((B, S, D), jnp.float32),
            grid_spec=grid_spec,
            compiler_params=pltpu.CompilerParams(
                dimension_semantics=("parallel", "parallel", "arbitrary"),
                vmem_limit_bytes=_vmem_limit_bytes()),
            cost_estimate=cost,
        )(x, x, km, *weight_arrays)

    try:
        return build_call(True)
    except Exception:
        # Fallback for jax versions that reject single-buffered BlockSpecs.
        return build_call(False)


# ---------------- pure-JAX reference (mirrors the torch module) ----------------
def encoder_layer_ref(x, mask, params, *, num_heads, head_size):
    (wq, bq, wk, bk, wv, bv, wy, by,
     g1, beta1, w1, b1, w2, b2, g2, beta2) = params
    B, S, D = x.shape

    def split(t):  # (B, S, D) -> (B, H, S, hs)
        return t.reshape(B, S, num_heads, head_size).transpose(0, 2, 1, 3)

    q = split(x @ wq + bq)
    k = split(x @ wk + bk)
    v = split(x @ wv + bv)
    s = jnp.einsum("bhqd,bhkd->bhqk", q, k) / math.sqrt(head_size)
    s = s * mask - 1e4 * (1.0 - mask)                      # torch multiplicative mask
    w = jax.nn.softmax(s, axis=-1)
    y = jnp.einsum("bhqk,bhkd->bhqd", w, v).transpose(0, 2, 1, 3).reshape(B, S, D)
    attn = y @ wy + by

    def ln(t, g, beta):
        mu = jnp.mean(t, axis=-1, keepdims=True)
        var = jnp.mean((t - mu) ** 2, axis=-1, keepdims=True)
        return g * ((t - mu) / jnp.sqrt(var + EPS)) + beta

    h1 = ln(attn + x, g1, beta1)
    f = jnp.maximum(h1 @ w1 + b1, 0.0) @ w2 + b2
    return ln(f + h1, g2, beta2)


if __name__ == "__main__":
    B, S = 2, 16
    num_heads, head_size = 4, 8
    D = num_heads * head_size          # 32
    ffn_hidden = 64

    key = jax.random.PRNGKey(0)
    keys = jax.random.split(key, 16)

    def lin(kw_, kb_, fan_in, fan_out):
        bound = 1.0 / math.sqrt(fan_in)
        w = jax.random.uniform(kw_, (fan_in, fan_out), jnp.float32, -bound, bound)
        b = jax.random.uniform(kb_, (1, fan_out), jnp.float32, -bound, bound)
        return w, b

    wq, bq = lin(keys[0], keys[1], D, D)
    wk, bk = lin(keys[2], keys[3], D, D)
    wv, bv = lin(keys[4], keys[5], D, D)
    wy, by = lin(keys[6], keys[7], D, D)
    w1, b1 = lin(keys[8], keys[9], D, ffn_hidden)
    w2, b2 = lin(keys[10], keys[11], ffn_hidden, D)
    # LayerNorm parameters: ones / zeros (matches reset_parameters)
    g1, beta1 = jnp.ones((1, D), jnp.float32), jnp.zeros((1, D), jnp.float32)
    g2, beta2 = jnp.ones((1, D), jnp.float32), jnp.zeros((1, D), jnp.float32)

    params = (wq, bq, wk, bk, wv, bv, wy, by,
              g1, beta1, w1, b1, w2, b2, g2, beta2)

    x = jax.random.normal(keys[12], (B, S, D), jnp.float32)
    # padding mask: batch 0 fully valid, batch 1 valid up to length 11
    lengths = jnp.array([S, 11])
    key_mask = (jnp.arange(S)[None, :] < lengths[:, None]).astype(jnp.float32)  # (B, S)
    # full 4-D mask only for the torch-mirroring reference
    mask4d = jnp.broadcast_to(key_mask[:, None, None, :], (B, num_heads, S, S))

    ref = encoder_layer_ref(x, mask4d, params,
                            num_heads=num_heads, head_size=head_size)

    # default bf16-operand MXU path, flash-tiled (tq = tkv = 8 -> grid (2, 2, 2))
    out = encoder_layer(x, key_mask, params, num_heads=num_heads,
                        head_size=head_size, q_tile=8, kv_tile=8)
    out = jax.block_until_ready(out)
    assert out.shape == (B, S, D)
    err = float(jnp.max(jnp.abs(out - ref)))
    assert err < 0.1, f"bf16 max err {err}"

    # f32-operand path (tighter check of the tiling / online-softmax math;
    # tolerance accounts for the approx-reciprocal softmax normalization)
    out_f32 = encoder_layer(x, key_mask, params, num_heads=num_heads,
                            head_size=head_size, mxu_dtype=jnp.float32,
                            q_tile=8, kv_tile=8)
    out_f32 = jax.block_until_ready(out_f32)
    err_f32 = float(jnp.max(jnp.abs(out_f32 - ref)))
    assert err_f32 < 2e-2, f"f32 max err {err_f32}"

    print("KERNEL_OK")
</pallas_src>

<mosaic_0001>
module attributes {stable_mosaic.version = 11 : i64} {
  func.func @encoder_layer_kernel(%arg0: i32, %arg1: i32, %arg2: i32, %arg3: memref<1x8x32xf32, #tpu.memory_space<vmem>>, %arg4: memref<1x8x32xf32, #tpu.memory_space<vmem>>, %arg5: memref<1x1x8x8xf32, #tpu.memory_space<vmem>>, %arg6: memref<32x32xbf16, #tpu.memory_space<vmem>>, %arg7: memref<1x32xf32, #tpu.memory_space<vmem>>, %arg8: memref<32x64xbf16, #tpu.memory_space<vmem>>, %arg9: memref<1x64xf32, #tpu.memory_space<vmem>>, %arg10: memref<4x8x32xbf16, #tpu.memory_space<vmem>>, %arg11: memref<32x64xbf16, #tpu.memory_space<vmem>>, %arg12: memref<1x64xf32, #tpu.memory_space<vmem>>, %arg13: memref<64x32xbf16, #tpu.memory_space<vmem>>, %arg14: memref<6x32xf32, #tpu.memory_space<vmem>>, %arg15: memref<1x8x32xf32, #tpu.memory_space<vmem>>, %arg16: memref<4x8x8xbf16, #tpu.memory_space<vmem>>, %arg17: memref<4x8x1xf32, #tpu.memory_space<vmem>>, %arg18: memref<4x8x1xf32, #tpu.memory_space<vmem>>, %arg19: memref<4x8x8xf32, #tpu.memory_space<vmem>>) attributes {dimension_semantics = [#tpu.dimension_semantics<parallel>, #tpu.dimension_semantics<parallel>, #tpu.dimension_semantics<arbitrary>], iteration_bounds = array<i64: 2, 2, 2>, scalar_prefetch = 0 : i64, scratch_operands = 4 : i64, tpu.core_type = #tpu.core_type<tc>, window_params = [{transform_indices = @transform_0, window_bounds = array<i64: 1, 8, 32>}, {transform_indices = @transform_1, window_bounds = array<i64: 1, 8, 32>}, {transform_indices = @transform_2, window_bounds = array<i64: 1, 1, 8, 8>}, {pipeline_mode = #tpu.pipeline_mode<synchronous>, transform_indices = @transform_3, window_bounds = array<i64: 32, 32>}, {pipeline_mode = #tpu.pipeline_mode<synchronous>, transform_indices = @transform_4, window_bounds = array<i64: 1, 32>}, {pipeline_mode = #tpu.pipeline_mode<synchronous>, transform_indices = @transform_5, window_bounds = array<i64: 32, 64>}, {pipeline_mode = #tpu.pipeline_mode<synchronous>, transform_indices = @transform_6, window_bounds = array<i64: 1, 64>}, {pipeline_mode = #tpu.pipeline_mode<synchronous>, transform_indices = @transform_7, window_bounds = array<i64: 4, 8, 32>}, {pipeline_mode = #tpu.pipeline_mode<synchronous>, transform_indices = @transform_8, window_bounds = array<i64: 32, 64>}, {pipeline_mode = #tpu.pipeline_mode<synchronous>, transform_indices = @transform_9, window_bounds = array<i64: 1, 64>}, {pipeline_mode = #tpu.pipeline_mode<synchronous>, transform_indices = @transform_10, window_bounds = array<i64: 64, 32>}, {pipeline_mode = #tpu.pipeline_mode<synchronous>, transform_indices = @transform_11, window_bounds = array<i64: 6, 32>}, {transform_indices = @transform_12, window_bounds = array<i64: 1, 8, 32>}]} {
    %c0 = arith.constant 0 : index
    %c0_0 = arith.constant 0 : index
    %c0_1 = arith.constant 0 : index
    %0 = vector.load %arg3[%c0, %c0_0, %c0_1] : memref<1x8x32xf32, #tpu.memory_space<vmem>>, vector<1x8x32xf32>
    %1 = vector.shape_cast %0 : vector<1x8x32xf32> to vector<8x32xf32>
    %c0_2 = arith.constant 0 : index
    %c0_3 = arith.constant 0 : index
    %c0_4 = arith.constant 0 : index
    %2 = vector.load %arg4[%c0_2, %c0_3, %c0_4] : memref<1x8x32xf32, #tpu.memory_space<vmem>>, vector<1x8x32xf32>
    %3 = vector.shape_cast %2 : vector<1x8x32xf32> to vector<8x32xf32>
    %c0_5 = arith.constant 0 : index
    %c0_6 = arith.constant 0 : index
    %c0_7 = arith.constant 0 : index
    %c0_8 = arith.constant 0 : index
    %4 = vector.load %arg5[%c0_5, %c0_6, %c0_7, %c0_8] : memref<1x1x8x8xf32, #tpu.memory_space<vmem>>, vector<1x1x1x8xf32>
    %5 = vector.shape_cast %4 : vector<1x1x1x8xf32> to vector<1x8xf32>
    %c0_i32 = arith.constant 0 : i32
    %6 = arith.cmpi eq, %arg2, %c0_i32 : i32
    %7 = arith.extui %6 : i1 to i32
    %c0_i32_9 = arith.constant 0 : i32
    %8 = arith.cmpi ne, %7, %c0_i32_9 : i32
    scf.if %8 {
      %c0_42 = arith.constant 0 : index
      %c0_43 = arith.constant 0 : index
      %58 = vector.load %arg6[%c0_42, %c0_43] : memref<32x32xbf16, #tpu.memory_space<vmem>>, vector<32x32xbf16>
      %59 = arith.truncf %1 : vector<8x32xf32> to vector<8x32xbf16>
      %cst_44 = arith.constant dense<0.000000e+00> : vector<8x32xf32>
      %60 = tpu.matmul %59, %58, %cst_44 {dimension_numbers = #tpu.dot_dimension_numbers<[1], [0], [0], [1], [0, 0, 1, 1], [], []>} : vector<8x32xbf16>, vector<32x32xbf16>, vector<8x32xf32> -> vector<8x32xf32>
      %c0_45 = arith.constant 0 : index
      %c0_46 = arith.constant 0 : index
      %61 = vector.load %arg7[%c0_45, %c0_46] : memref<1x32xf32, #tpu.memory_space<vmem>>, vector<1x32xf32>
      %62 = vector.broadcast %61 : vector<1x32xf32> to vector<8x32xf32>
      %63 = arith.addf %60, %62 : vector<8x32xf32>
      %cst_47 = arith.constant 0.353553385 : f32
      %64 = vector.broadcast %cst_47 : f32 to vector<8x32xf32>
      %65 = arith.mulf %63, %64 : vector<8x32xf32>
      %66 = arith.truncf %65 : vector<8x32xf32> to vector<8x32xbf16>
      %67 = vector.shape_cast %66 : vector<8x32xbf16> to vector<8x4x8xbf16>
      %68 = tpu.transpose %67, [1, 0, 2] : vector<8x4x8xbf16> -> vector<4x8x8xbf16>
      %c0_48 = arith.constant 0 : index
      %c0_49 = arith.constant 0 : index
      %c0_50 = arith.constant 0 : index
      %69 = vector.load %arg16[%c0_48, %c0_49, %c0_50] : memref<4x8x8xbf16, #tpu.memory_space<vmem>>, vector<4x8x8xbf16>
      tpu.vector_store %arg16[%c0_48, %c0_49, %c0_50], %68 {strides = array<i32>} : memref<4x8x8xbf16, #tpu.memory_space<vmem>>, vector<4x8x8xbf16>,
      %cst_51 = arith.constant 0xFF800000 : f32
      %70 = vector.broadcast %cst_51 : f32 to vector<4x8x1xf32>
      %c0_52 = arith.constant 0 : index
      %c0_53 = arith.constant 0 : index
      %c0_54 = arith.constant 0 : index
      %71 = vector.load %arg17[%c0_52, %c0_53, %c0_54] : memref<4x8x1xf32, #tpu.memory_space<vmem>>, vector<4x8x1xf32>
      tpu.vector_store %arg17[%c0_52, %c0_53, %c0_54], %70 {strides = array<i32>} : memref<4x8x1xf32, #tpu.memory_space<vmem>>, vector<4x8x1xf32>,
      %cst_55 = arith.constant 0.000000e+00 : f32
      %72 = vector.broadcast %cst_55 : f32 to vector<4x8x1xf32>
      %c0_56 = arith.constant 0 : index
      %c0_57 = arith.constant 0 : index
      %c0_58 = arith.constant 0 : index
      %73 = vector.load %arg18[%c0_56, %c0_57, %c0_58] : memref<4x8x1xf32, #tpu.memory_space<vmem>>, vector<4x8x1xf32>
      tpu.vector_store %arg18[%c0_56, %c0_57, %c0_58], %72 {strides = array<i32>} : memref<4x8x1xf32, #tpu.memory_space<vmem>>, vector<4x8x1xf32>,
      %cst_59 = arith.constant 0.000000e+00 : f32
      %74 = vector.broadcast %cst_59 : f32 to vector<4x8x8xf32>
      %c0_60 = arith.constant 0 : index
      %c0_61 = arith.constant 0 : index
      %c0_62 = arith.constant 0 : index
      %75 = vector.load %arg19[%c0_60, %c0_61, %c0_62] : memref<4x8x8xf32, #tpu.memory_space<vmem>>, vector<4x8x8xf32>
      tpu.vector_store %arg19[%c0_60, %c0_61, %c0_62], %74 {strides = array<i32>} : memref<4x8x8xf32, #tpu.memory_space<vmem>>, vector<4x8x8xf32>,
    } else {
    }
    %c0_10 = arith.constant 0 : index
    %c0_11 = arith.constant 0 : index
    %9 = vector.load %arg8[%c0_10, %c0_11] : memref<32x64xbf16, #tpu.memory_space<vmem>>, vector<32x64xbf16>
    %10 = arith.truncf %3 : vector<8x32xf32> to vector<8x32xbf16>
    %cst = arith.constant dense<0.000000e+00> : vector<8x64xf32>
    %11 = tpu.matmul %10, %9, %cst {dimension_numbers = #tpu.dot_dimension_numbers<[1], [0], [0], [1], [0, 0, 1, 1], [], []>} : vector<8x32xbf16>, vector<32x64xbf16>, vector<8x64xf32> -> vector<8x64xf32>
    %c0_12 = arith.constant 0 : index
    %c0_13 = arith.constant 0 : index
    %12 = vector.load %arg9[%c0_12, %c0_13] : memref<1x64xf32, #tpu.memory_space<vmem>>, vector<1x64xf32>
    %13 = vector.broadcast %12 : vector<1x64xf32> to vector<8x64xf32>
    %14 = arith.addf %11, %13 : vector<8x64xf32>
    %15 = vector.extract_strided_slice %14 {offsets = [0, 0], sizes = [8, 32], strides = [1, 1]} : vector<8x64xf32> to vector<8x32xf32>
    %16 = arith.truncf %15 : vector<8x32xf32> to vector<8x32xbf16>
    %17 = vector.shape_cast %16 : vector<8x32xbf16> to vector<8x4x8xbf16>
    %18 = tpu.transpose %17, [1, 0, 2] : vector<8x4x8xbf16> -> vector<4x8x8xbf16>
    %19 = vector.extract_strided_slice %14 {offsets = [0, 32], sizes = [8, 32], strides = [1, 1]} : vector<8x64xf32> to vector<8x32xf32>
    %20 = arith.truncf %19 : vector<8x32xf32> to vector<8x32xbf16>
    %21 = vector.shape_cast %20 : vector<8x32xbf16> to vector<8x4x8xbf16>
    %22 = tpu.transpose %21, [1, 0, 2] : vector<8x4x8xbf16> -> vector<4x8x8xbf16>
    %c0_14 = arith.constant 0 : index
    %c0_15 = arith.constant 0 : index
    %c0_16 = arith.constant 0 : index
    %23 = vector.load %arg16[%c0_14, %c0_15, %c0_16] : memref<4x8x8xbf16, #tpu.memory_space<vmem>>, vector<4x8x8xbf16>
    "tpu.trace_start"() <{level = 10 : i32, message = "hqe,hke->hqk"}> : () -> ()
    %cst_17 = arith.constant dense<0.000000e+00> : vector<4x8x8xf32>
    %24 = tpu.matmul %23, %18, %cst_17 {dimension_numbers = #tpu.dot_dimension_numbers<[2], [2], [1], [1], [0, 0, 0, 1, 1, 1], [0], [0]>} : vector<4x8x8xbf16>, vector<4x8x8xbf16>, vector<4x8x8xf32> -> vector<4x8x8xf32>
    "tpu.trace_stop"() : () -> ()
    %25 = vector.shape_cast %5 : vector<1x8xf32> to vector<1x1x8xf32>
    %cst_18 = arith.constant 0.000000e+00 : f32
    %26 = vector.broadcast %cst_18 : f32 to vector<1x1x8xf32>
    %27 = arith.cmpf ogt, %25, %26 : vector<1x1x8xf32>
    %cst_19 = arith.constant -1.000000e+04 : f32
    %28 = vector.shape_cast %27 : vector<1x1x8xi1> to vector<1x1x8xi1>
    %29 = vector.broadcast %28 : vector<1x1x8xi1> to vector<4x8x8xi1>
    %30 = vector.broadcast %cst_19 : f32 to vector<4x8x8xf32>
    %31 = arith.select %29, %24, %30 : vector<4x8x8xi1>, vector<4x8x8xf32>
    %c0_20 = arith.constant 0 : index
    %c0_21 = arith.constant 0 : index
    %c0_22 = arith.constant 0 : index
    %32 = vector.load %arg17[%c0_20, %c0_21, %c0_22] : memref<4x8x1xf32, #tpu.memory_space<vmem>>, vector<4x8x1xf32>
    %cst_23 = arith.constant dense<0xFF800000> : vector<4x8xf32>
    %33 = vector.multi_reduction <maximumf>, %31, %cst_23 [2] : vector<4x8x8xf32> to vector<4x8xf32>
    %34 = vector.shape_cast %33 : vector<4x8xf32> to vector<4x8x1xf32>
    %35 = arith.maximumf %32, %34 : vector<4x8x1xf32>
    %36 = arith.subf %32, %35 : vector<4x8x1xf32>
    %37 = math.exp %36 : vector<4x8x1xf32>
    %38 = vector.broadcast %35 : vector<4x8x1xf32> to vector<4x8x8xf32>
    %39 = arith.subf %31, %38 : vector<4x8x8xf32>
    %40 = math.exp %39 : vector<4x8x8xf32>
    %c0_24 = arith.constant 0 : index
    %c0_25 = arith.constant 0 : index
    %c0_26 = arith.constant 0 : index
    %41 = vector.load %arg18[%c0_24, %c0_25, %c0_26] : memref<4x8x1xf32, #tpu.memory_space<vmem>>, vector<4x8x1xf32>
    %42 = arith.mulf %37, %41 : vector<4x8x1xf32>
    %cst_27 = arith.constant dense<0.000000e+00> : vector<4x8xf32>
    %43 = vector.multi_reduction <add>, %40, %cst_27 [2] : vector<4x8x8xf32> to vector<4x8xf32>
    %44 = vector.shape_cast %43 : vector<4x8xf32> to vector<4x8x1xf32>
    %45 = arith.addf %42, %44 : vector<4x8x1xf32>
    %c0_28 = arith.constant 0 : index
    %c0_29 = arith.constant 0 : index
    %c0_30 = arith.constant 0 : index
    %46 = vector.load %arg18[%c0_28, %c0_29, %c0_30] : memref<4x8x1xf32, #tpu.memory_space<vmem>>, vector<4x8x1xf32>
    tpu.vector_store %arg18[%c0_28, %c0_29, %c0_30], %45 {strides = array<i32>} : memref<4x8x1xf32, #tpu.memory_space<vmem>>, vector<4x8x1xf32>,
    %c0_31 = arith.constant 0 : index
    %c0_32 = arith.constant 0 : index
    %c0_33 = arith.constant 0 : index
    %47 = vector.load %arg19[%c0_31, %c0_32, %c0_33] : memref<4x8x8xf32, #tpu.memory_space<vmem>>, vector<4x8x8xf32>
    %48 = vector.broadcast %37 : vector<4x8x1xf32> to vector<4x8x8xf32>
    %49 = arith.mulf %48, %47 : vector<4x8x8xf32>
    %50 = arith.truncf %40 : vector<4x8x8xf32> to vector<4x8x8xbf16>
    "tpu.trace_start"() <{level = 10 : i32, message = "hqk,hke->hqe"}> : () -> ()
    %cst_34 = arith.constant dense<0.000000e+00> : vector<4x8x8xf32>
    %51 = tpu.matmul %50, %22, %cst_34 {dimension_numbers = #tpu.dot_dimension_numbers<[2], [1], [1], [2], [0, 0, 0, 1, 1, 2], [0], [0]>} : vector<4x8x8xbf16>, vector<4x8x8xbf16>, vector<4x8x8xf32> -> vector<4x8x8xf32>
    "tpu.trace_stop"() : () -> ()
    %52 = arith.addf %49, %51 : vector<4x8x8xf32>
    %c0_35 = arith.constant 0 : index
    %c0_36 = arith.constant 0 : index
    %c0_37 = arith.constant 0 : index
    %53 = vector.load %arg19[%c0_35, %c0_36, %c0_37] : memref<4x8x8xf32, #tpu.memory_space<vmem>>, vector<4x8x8xf32>
    tpu.vector_store %arg19[%c0_35, %c0_36, %c0_37], %52 {strides = array<i32>} : memref<4x8x8xf32, #tpu.memory_space<vmem>>, vector<4x8x8xf32>,
    %c0_38 = arith.constant 0 : index
    %c0_39 = arith.constant 0 : index
    %c0_40 = arith.constant 0 : index
    %54 = vector.load %arg17[%c0_38, %c0_39, %c0_40] : memref<4x8x1xf32, #tpu.memory_space<vmem>>, vector<4x8x1xf32>
    tpu.vector_store %arg17[%c0_38, %c0_39, %c0_40], %35 {strides = array<i32>} : memref<4x8x1xf32, #tpu.memory_space<vmem>>, vector<4x8x1xf32>,
    %c1_i32 = arith.constant 1 : i32
    %55 = arith.cmpi eq, %arg2, %c1_i32 : i32
    %56 = arith.extui %55 : i1 to i32
    %c0_i32_41 = arith.constant 0 : i32
    %57 = arith.cmpi ne, %56, %c0_i32_41 : i32
    scf.if %57 {
      %c0_42 = arith.constant 0 : index
      %c0_43 = arith.constant 0 : index
      %58 = vector.load %arg14[%c0_42, %c0_43] : memref<6x32xf32, #tpu.memory_space<vmem>>, vector<1x32xf32>
      %c1 = arith.constant 1 : index
      %c0_44 = arith.constant 0 : index
      %59 = vector.load %arg14[%c1, %c0_44] : memref<6x32xf32, #tpu.memory_space<vmem>>, vector<1x32xf32>
      %c2 = arith.constant 2 : index
      %c0_45 = arith.constant 0 : index
      %60 = vector.load %arg14[%c2, %c0_45] : memref<6x32xf32, #tpu.memory_space<vmem>>, vector<1x32xf32>
      %c3 = arith.constant 3 : index
      %c0_46 = arith.constant 0 : index
      %61 = vector.load %arg14[%c3, %c0_46] : memref<6x32xf32, #tpu.memory_space<vmem>>, vector<1x32xf32>
      %c4 = arith.constant 4 : index
      %c0_47 = arith.constant 0 : index
      %62 = vector.load %arg14[%c4, %c0_47] : memref<6x32xf32, #tpu.memory_space<vmem>>, vector<1x32xf32>
      %c5 = arith.constant 5 : index
      %c0_48 = arith.constant 0 : index
      %63 = vector.load %arg14[%c5, %c0_48] : memref<6x32xf32, #tpu.memory_space<vmem>>, vector<1x32xf32>
      %c0_49 = arith.constant 0 : index
      %c0_50 = arith.constant 0 : index
      %c0_51 = arith.constant 0 : index
      %64 = vector.load %arg19[%c0_49, %c0_50, %c0_51] : memref<4x8x8xf32, #tpu.memory_space<vmem>>, vector<4x8x8xf32>
      %c0_52 = arith.constant 0 : index
      %c0_53 = arith.constant 0 : index
      %c0_54 = arith.constant 0 : index
      %65 = vector.load %arg18[%c0_52, %c0_53, %c0_54] : memref<4x8x1xf32, #tpu.memory_space<vmem>>, vector<4x8x1xf32>
      %66 = tpu.reciprocal %65 {approx = true} : vector<4x8x1xf32> -> vector<4x8x1xf32>
      %67 = vector.broadcast %66 : vector<4x8x1xf32> to vector<4x8x8xf32>
      %68 = arith.mulf %64, %67 : vector<4x8x8xf32>
      %69 = arith.truncf %68 : vector<4x8x8xf32> to vector<4x8x8xbf16>
      %c0_55 = arith.constant 0 : index
      %c0_56 = arith.constant 0 : index
      %c0_57 = arith.constant 0 : index
      %70 = vector.load %arg10[%c0_55, %c0_56, %c0_57] : memref<4x8x32xbf16, #tpu.memory_space<vmem>>, vector<4x8x32xbf16>
      "tpu.trace_start"() <{level = 10 : i32, message = "hqe,hed->hqd"}> : () -> ()
      %cst_58 = arith.constant dense<0.000000e+00> : vector<4x8x32xf32>
      %71 = tpu.matmul %69, %70, %cst_58 {dimension_numbers = #tpu.dot_dimension_numbers<[2], [1], [1], [2], [0, 0, 0, 1, 1, 2], [0], [0]>} : vector<4x8x8xbf16>, vector<4x8x32xbf16>, vector<4x8x32xf32> -> vector<4x8x32xf32>
      "tpu.trace_stop"() : () -> ()
      %cst_59 = arith.constant dense<0.000000e+00> : vector<8x32xf32>
      %72 = vector.multi_reduction <add>, %71, %cst_59 [0] : vector<4x8x32xf32> to vector<8x32xf32>
      %73 = vector.broadcast %58 : vector<1x32xf32> to vector<8x32xf32>
      %74 = arith.addf %72, %73 : vector<8x32xf32>
      %75 = arith.addf %74, %1 : vector<8x32xf32>
      %cst_60 = arith.constant dense<0.000000e+00> : vector<8xf32>
      %76 = vector.multi_reduction <add>, %75, %cst_60 [1] : vector<8x32xf32> to vector<8xf32>
      %77 = vector.shape_cast %76 : vector<8xf32> to vector<8x1xf32>
      %cst_61 = arith.constant 3.200000e+01 : f32
      %78 = vector.broadcast %cst_61 : f32 to vector<8x1xf32>
      %79 = arith.divf %77, %78 : vector<8x1xf32>
      %80 = vector.broadcast %79 : vector<8x1xf32> to vector<8x32xf32>
      %81 = arith.subf %75, %80 : vector<8x32xf32>
      %82 = arith.mulf %81, %81 : vector<8x32xf32>
      %cst_62 = arith.constant dense<0.000000e+00> : vector<8xf32>
      %83 = vector.multi_reduction <add>, %82, %cst_62 [1] : vector<8x32xf32> to vector<8xf32>
      %84 = vector.shape_cast %83 : vector<8xf32> to vector<8x1xf32>
      %cst_63 = arith.constant 3.200000e+01 : f32
      %85 = vector.broadcast %cst_63 : f32 to vector<8x1xf32>
      %86 = arith.divf %84, %85 : vector<8x1xf32>
      %87 = vector.broadcast %79 : vector<8x1xf32> to vector<8x32xf32>
      %88 = arith.subf %75, %87 : vector<8x32xf32>
      %cst_64 = arith.constant 9.99999974E-6 : f32
      %89 = vector.broadcast %cst_64 : f32 to vector<8x1xf32>
      %90 = arith.addf %86, %89 : vector<8x1xf32>
      %91 = math.rsqrt %90 : vector<8x1xf32>
      %92 = vector.broadcast %91 : vector<8x1xf32> to vector<8x32xf32>
      %93 = arith.mulf %88, %92 : vector<8x32xf32>
      %94 = vector.broadcast %60 : vector<1x32xf32> to vector<8x32xf32>
      %95 = arith.mulf %94, %93 : vector<8x32xf32>
      %96 = vector.broadcast %61 : vector<1x32xf32> to vector<8x32xf32>
      %97 = arith.addf %95, %96 : vector<8x32xf32>
      %c0_65 = arith.constant 0 : index
      %c0_66 = arith.constant 0 : index
      %98 = vector.load %arg11[%c0_65, %c0_66] : memref<32x64xbf16, #tpu.memory_space<vmem>>, vector<32x64xbf16>
      %99 = arith.truncf %97 : vector<8x32xf32> to vector<8x32xbf16>
      %cst_67 = arith.constant dense<0.000000e+00> : vector<8x64xf32>
      %100 = tpu.matmul %99, %98, %cst_67 {dimension_numbers = #tpu.dot_dimension_numbers<[1], [0], [0], [1], [0, 0, 1, 1], [], []>} : vector<8x32xbf16>, vector<32x64xbf16>, vector<8x64xf32> -> vector<8x64xf32>
      %c0_68 = arith.constant 0 : index
      %c0_69 = arith.constant 0 : index
      %101 = vector.load %arg12[%c0_68, %c0_69] : memref<1x64xf32, #tpu.memory_space<vmem>>, vector<1x64xf32>
      %102 = vector.broadcast %101 : vector<1x64xf32> to vector<8x64xf32>
      %103 = arith.addf %100, %102 : vector<8x64xf32>
      %cst_70 = arith.constant 0.000000e+00 : f32
      %104 = vector.broadcast %cst_70 : f32 to vector<8x64xf32>
      %105 = arith.maximumf %103, %104 : vector<8x64xf32>
      %c0_71 = arith.constant 0 : index
      %c0_72 = arith.constant 0 : index
      %106 = vector.load %arg13[%c0_71, %c0_72] : memref<64x32xbf16, #tpu.memory_space<vmem>>, vector<64x32xbf16>
      %107 = arith.truncf %105 : vector<8x64xf32> to vector<8x64xbf16>
      %cst_73 = arith.constant dense<0.000000e+00> : vector<8x32xf32>
      %108 = tpu.matmul %107, %106, %cst_73 {dimension_numbers = #tpu.dot_dimension_numbers<[1], [0], [0], [1], [0, 0, 1, 1], [], []>} : vector<8x64xbf16>, vector<64x32xbf16>, vector<8x32xf32> -> vector<8x32xf32>
      %109 = vector.broadcast %59 : vector<1x32xf32> to vector<8x32xf32>
      %110 = arith.addf %108, %109 : vector<8x32xf32>
      %111 = arith.addf %110, %97 : vector<8x32xf32>
      %cst_74 = arith.constant dense<0.000000e+00> : vector<8xf32>
      %112 = vector.multi_reduction <add>, %111, %cst_74 [1] : vector<8x32xf32> to vector<8xf32>
      %113 = vector.shape_cast %112 : vector<8xf32> to vector<8x1xf32>
      %cst_75 = arith.constant 3.200000e+01 : f32
      %114 = vector.broadcast %cst_75 : f32 to vector<8x1xf32>
      %115 = arith.divf %113, %114 : vector<8x1xf32>
      %116 = vector.broadcast %115 : vector<8x1xf32> to vector<8x32xf32>
      %117 = arith.subf %111, %116 : vector<8x32xf32>
      %118 = arith.mulf %117, %117 : vector<8x32xf32>
      %cst_76 = arith.constant dense<0.000000e+00> : vector<8xf32>
      %119 = vector.multi_reduction <add>, %118, %cst_76 [1] : vector<8x32xf32> to vector<8xf32>
      %120 = vector.shape_cast %119 : vector<8xf32> to vector<8x1xf32>
      %cst_77 = arith.constant 3.200000e+01 : f32
      %121 = vector.broadcast %cst_77 : f32 to vector<8x1xf32>
      %122 = arith.divf %120, %121 : vector<8x1xf32>
      %123 = vector.broadcast %115 : vector<8x1xf32> to vector<8x32xf32>
      %124 = arith.subf %111, %123 : vector<8x32xf32>
      %cst_78 = arith.constant 9.99999974E-6 : f32
      %125 = vector.broadcast %cst_78 : f32 to vector<8x1xf32>
      %126 = arith.addf %122, %125 : vector<8x1xf32>
      %127 = math.rsqrt %126 : vector<8x1xf32>
      %128 = vector.broadcast %127 : vector<8x1xf32> to vector<8x32xf32>
      %129 = arith.mulf %124, %128 : vector<8x32xf32>
      %130 = vector.broadcast %62 : vector<1x32xf32> to vector<8x32xf32>
      %131 = arith.mulf %130, %129 : vector<8x32xf32>
      %132 = vector.broadcast %63 : vector<1x32xf32> to vector<8x32xf32>
      %133 = arith.addf %131, %132 : vector<8x32xf32>
      %c0_79 = arith.constant 0 : index
      %c0_80 = arith.constant 0 : index
      %c0_81 = arith.constant 0 : index
      %134 = vector.load %arg15[%c0_79, %c0_80, %c0_81] : memref<1x8x32xf32, #tpu.memory_space<vmem>>, vector<1x8x32xf32>
      %135 = vector.shape_cast %134 : vector<1x8x32xf32> to vector<8x32xf32>
      %136 = vector.shape_cast %133 : vector<8x32xf32> to vector<1x8x32xf32>
      tpu.vector_store %arg15[%c0_79, %c0_80, %c0_81], %136 {strides = array<i32>} : memref<1x8x32xf32, #tpu.memory_space<vmem>>, vector<1x8x32xf32>,
    } else {
    }
    return
  }
  func.func @transform_0(%arg0: i32, %arg1: i32, %arg2: i32) -> (i32, i32, i32) {
    %c0_i32 = arith.constant 0 : i32
    %c0_i32_0 = arith.constant 0 : i32
    return %arg0, %arg1, %c0_i32 : i32, i32, i32
  }
  func.func @transform_1(%arg0: i32, %arg1: i32, %arg2: i32) -> (i32, i32, i32) {
    %c0_i32 = arith.constant 0 : i32
    %c0_i32_0 = arith.constant 0 : i32
    return %arg0, %arg2, %c0_i32 : i32, i32, i32
  }
  func.func @transform_2(%arg0: i32, %arg1: i32, %arg2: i32) -> (i32, i32, i32, i32) {
    %c0_i32 = arith.constant 0 : i32
    %c0_i32_0 = arith.constant 0 : i32
    %c0_i32_1 = arith.constant 0 : i32
    return %arg0, %arg2, %c0_i32, %c0_i32_0 : i32, i32, i32, i32
  }
  func.func @transform_3(%arg0: i32, %arg1: i32, %arg2: i32) -> (i32, i32) {
    %c0_i32 = arith.constant 0 : i32
    %c0_i32_0 = arith.constant 0 : i32
    %c0_i32_1 = arith.constant 0 : i32
    return %c0_i32, %c0_i32_0 : i32, i32
  }
  func.func @transform_4(%arg0: i32, %arg1: i32, %arg2: i32) -> (i32, i32) {
    %c0_i32 = arith.constant 0 : i32
    %c0_i32_0 = arith.constant 0 : i32
    %c0_i32_1 = arith.constant 0 : i32
    return %c0_i32, %c0_i32_0 : i32, i32
  }
  func.func @transform_5(%arg0: i32, %arg1: i32, %arg2: i32) -> (i32, i32) {
    %c0_i32 = arith.constant 0 : i32
    %c0_i32_0 = arith.constant 0 : i32
    %c0_i32_1 = arith.constant 0 : i32
    return %c0_i32, %c0_i32_0 : i32, i32
  }
  func.func @transform_6(%arg0: i32, %arg1: i32, %arg2: i32) -> (i32, i32) {
    %c0_i32 = arith.constant 0 : i32
    %c0_i32_0 = arith.constant 0 : i32
    %c0_i32_1 = arith.constant 0 : i32
    return %c0_i32, %c0_i32_0 : i32, i32
  }
  func.func @transform_7(%arg0: i32, %arg1: i32, %arg2: i32) -> (i32, i32, i32) {
    %c0_i32 = arith.constant 0 : i32
    %c0_i32_0 = arith.constant 0 : i32
    %c0_i32_1 = arith.constant 0 : i32
    %c0_i32_2 = arith.constant 0 : i32
    return %c0_i32, %c0_i32_0, %c0_i32_1 : i32, i32, i32
  }
  func.func @transform_8(%arg0: i32, %arg1: i32, %arg2: i32) -> (i32, i32) {
    %c0_i32 = arith.constant 0 : i32
    %c0_i32_0 = arith.constant 0 : i32
    %c0_i32_1 = arith.constant 0 : i32
    return %c0_i32, %c0_i32_0 : i32, i32
  }
  func.func @transform_9(%arg0: i32, %arg1: i32, %arg2: i32) -> (i32, i32) {
    %c0_i32 = arith.constant 0 : i32
    %c0_i32_0 = arith.constant 0 : i32
    %c0_i32_1 = arith.constant 0 : i32
    return %c0_i32, %c0_i32_0 : i32, i32
  }
  func.func @transform_10(%arg0: i32, %arg1: i32, %arg2: i32) -> (i32, i32) {
    %c0_i32 = arith.constant 0 : i32
    %c0_i32_0 = arith.constant 0 : i32
    %c0_i32_1 = arith.constant 0 : i32
    return %c0_i32, %c0_i32_0 : i32, i32
  }
  func.func @transform_11(%arg0: i32, %arg1: i32, %arg2: i32) -> (i32, i32) {
    %c0_i32 = arith.constant 0 : i32
    %c0_i32_0 = arith.constant 0 : i32
    %c0_i32_1 = arith.constant 0 : i32
    return %c0_i32, %c0_i32_0 : i32, i32
  }
  func.func @transform_12(%arg0: i32, %arg1: i32, %arg2: i32) -> (i32, i32, i32) {
    %c0_i32 = arith.constant 0 : i32
    %c0_i32_0 = arith.constant 0 : i32
    return %arg0, %arg1, %c0_i32 : i32, i32, i32
  }
}

module attributes {stable_mosaic.version = 11 : i64} {
  func.func @encoder_layer_kernel(%arg0: i32, %arg1: i32, %arg2: i32, %arg3: memref<1x8x32xf32, #tpu.memory_space<vmem>>, %arg4: memref<1x8x32xf32, #tpu.memory_space<vmem>>, %arg5: memref<1x1x8x8xf32, #tpu.memory_space<vmem>>, %arg6: memref<32x32xbf16, #tpu.memory_space<vmem>>, %arg7: memref<1x32xf32, #tpu.memory_space<vmem>>, %arg8: memref<32x64xbf16, #tpu.memory_space<vmem>>, %arg9: memref<1x64xf32, #tpu.memory_space<vmem>>, %arg10: memref<4x8x32xbf16, #tpu.memory_space<vmem>>, %arg11: memref<32x64xbf16, #tpu.memory_space<vmem>>, %arg12: memref<1x64xf32, #tpu.memory_space<vmem>>, %arg13: memref<64x32xbf16, #tpu.memory_space<vmem>>, %arg14: memref<6x32xf32, #tpu.memory_space<vmem>>, %arg15: memref<1x8x32xf32, #tpu.memory_space<vmem>>, %arg16: memref<4x8x8xbf16, #tpu.memory_space<vmem>>, %arg17: memref<4x8x1xf32, #tpu.memory_space<vmem>>, %arg18: memref<4x8x1xf32, #tpu.memory_space<vmem>>, %arg19: memref<4x8x8xf32, #tpu.memory_space<vmem>>) attributes {dimension_semantics = [#tpu.dimension_semantics<parallel>, #tpu.dimension_semantics<parallel>, #tpu.dimension_semantics<arbitrary>], iteration_bounds = array<i64: 2, 2, 2>, scalar_prefetch = 0 : i64, scratch_operands = 4 : i64, tpu.core_type = #tpu.core_type<tc>, window_params = [{transform_indices = @transform_0, window_bounds = array<i64: 1, 8, 32>}, {transform_indices = @transform_1, window_bounds = array<i64: 1, 8, 32>}, {transform_indices = @transform_2, window_bounds = array<i64: 1, 1, 8, 8>}, {pipeline_mode = #tpu.pipeline_mode<synchronous>, transform_indices = @transform_3, window_bounds = array<i64: 32, 32>}, {pipeline_mode = #tpu.pipeline_mode<synchronous>, transform_indices = @transform_4, window_bounds = array<i64: 1, 32>}, {pipeline_mode = #tpu.pipeline_mode<synchronous>, transform_indices = @transform_5, window_bounds = array<i64: 32, 64>}, {pipeline_mode = #tpu.pipeline_mode<synchronous>, transform_indices = @transform_6, window_bounds = array<i64: 1, 64>}, {pipeline_mode = #tpu.pipeline_mode<synchronous>, transform_indices = @transform_7, window_bounds = array<i64: 4, 8, 32>}, {pipeline_mode = #tpu.pipeline_mode<synchronous>, transform_indices = @transform_8, window_bounds = array<i64: 32, 64>}, {pipeline_mode = #tpu.pipeline_mode<synchronous>, transform_indices = @transform_9, window_bounds = array<i64: 1, 64>}, {pipeline_mode = #tpu.pipeline_mode<synchronous>, transform_indices = @transform_10, window_bounds = array<i64: 64, 32>}, {pipeline_mode = #tpu.pipeline_mode<synchronous>, transform_indices = @transform_11, window_bounds = array<i64: 6, 32>}, {transform_indices = @transform_12, window_bounds = array<i64: 1, 8, 32>}]} {
    %c0 = arith.constant 0 : index
    %c0_0 = arith.constant 0 : index
    %c0_1 = arith.constant 0 : index
    %0 = vector.load %arg3[%c0, %c0_0, %c0_1] : memref<1x8x32xf32, #tpu.memory_space<vmem>>, vector<1x8x32xf32>
    %1 = vector.shape_cast %0 : vector<1x8x32xf32> to vector<8x32xf32>
    %c0_2 = arith.constant 0 : index
    %c0_3 = arith.constant 0 : index
    %c0_4 = arith.constant 0 : index
    %2 = vector.load %arg4[%c0_2, %c0_3, %c0_4] : memref<1x8x32xf32, #tpu.memory_space<vmem>>, vector<1x8x32xf32>
    %3 = vector.shape_cast %2 : vector<1x8x32xf32> to vector<8x32xf32>
    %c0_5 = arith.constant 0 : index
    %c0_6 = arith.constant 0 : index
    %c0_7 = arith.constant 0 : index
    %c0_8 = arith.constant 0 : index
    %4 = vector.load %arg5[%c0_5, %c0_6, %c0_7, %c0_8] : memref<1x1x8x8xf32, #tpu.memory_space<vmem>>, vector<1x1x1x8xf32>
    %5 = vector.shape_cast %4 : vector<1x1x1x8xf32> to vector<1x8xf32>
    %c0_i32 = arith.constant 0 : i32
    %6 = arith.cmpi eq, %arg2, %c0_i32 : i32
    %7 = arith.extui %6 : i1 to i32
    %c0_i32_9 = arith.constant 0 : i32
    %8 = arith.cmpi ne, %7, %c0_i32_9 : i32
    scf.if %8 {
      %c0_42 = arith.constant 0 : index
      %c0_43 = arith.constant 0 : index
      %58 = vector.load %arg6[%c0_42, %c0_43] : memref<32x32xbf16, #tpu.memory_space<vmem>>, vector<32x32xbf16>
      %59 = arith.truncf %1 : vector<8x32xf32> to vector<8x32xbf16>
      %cst_44 = arith.constant dense<0.000000e+00> : vector<8x32xf32>
      %60 = tpu.matmul %59, %58, %cst_44 {dimension_numbers = #tpu.dot_dimension_numbers<[1], [0], [0], [1], [0, 0, 1, 1], [], []>} : vector<8x32xbf16>, vector<32x32xbf16>, vector<8x32xf32> -> vector<8x32xf32>
      %c0_45 = arith.constant 0 : index
      %c0_46 = arith.constant 0 : index
      %61 = vector.load %arg7[%c0_45, %c0_46] : memref<1x32xf32, #tpu.memory_space<vmem>>, vector<1x32xf32>
      %62 = vector.broadcast %61 : vector<1x32xf32> to vector<8x32xf32>
      %63 = arith.addf %60, %62 : vector<8x32xf32>
      %cst_47 = arith.constant 0.353553385 : f32
      %64 = vector.broadcast %cst_47 : f32 to vector<8x32xf32>
      %65 = arith.mulf %63, %64 : vector<8x32xf32>
      %66 = arith.truncf %65 : vector<8x32xf32> to vector<8x32xbf16>
      %67 = vector.shape_cast %66 : vector<8x32xbf16> to vector<8x4x8xbf16>
      %68 = tpu.transpose %67, [1, 0, 2] : vector<8x4x8xbf16> -> vector<4x8x8xbf16>
      %c0_48 = arith.constant 0 : index
      %c0_49 = arith.constant 0 : index
      %c0_50 = arith.constant 0 : index
      %69 = vector.load %arg16[%c0_48, %c0_49, %c0_50] : memref<4x8x8xbf16, #tpu.memory_space<vmem>>, vector<4x8x8xbf16>
      tpu.vector_store %arg16[%c0_48, %c0_49, %c0_50], %68 {strides = array<i32>} : memref<4x8x8xbf16, #tpu.memory_space<vmem>>, vector<4x8x8xbf16>,
      %cst_51 = arith.constant 0xFF800000 : f32
      %70 = vector.broadcast %cst_51 : f32 to vector<4x8x1xf32>
      %c0_52 = arith.constant 0 : index
      %c0_53 = arith.constant 0 : index
      %c0_54 = arith.constant 0 : index
      %71 = vector.load %arg17[%c0_52, %c0_53, %c0_54] : memref<4x8x1xf32, #tpu.memory_space<vmem>>, vector<4x8x1xf32>
      tpu.vector_store %arg17[%c0_52, %c0_53, %c0_54], %70 {strides = array<i32>} : memref<4x8x1xf32, #tpu.memory_space<vmem>>, vector<4x8x1xf32>,
      %cst_55 = arith.constant 0.000000e+00 : f32
      %72 = vector.broadcast %cst_55 : f32 to vector<4x8x1xf32>
      %c0_56 = arith.constant 0 : index
      %c0_57 = arith.constant 0 : index
      %c0_58 = arith.constant 0 : index
      %73 = vector.load %arg18[%c0_56, %c0_57, %c0_58] : memref<4x8x1xf32, #tpu.memory_space<vmem>>, vector<4x8x1xf32>
      tpu.vector_store %arg18[%c0_56, %c0_57, %c0_58], %72 {strides = array<i32>} : memref<4x8x1xf32, #tpu.memory_space<vmem>>, vector<4x8x1xf32>,
      %cst_59 = arith.constant 0.000000e+00 : f32
      %74 = vector.broadcast %cst_59 : f32 to vector<4x8x8xf32>
      %c0_60 = arith.constant 0 : index
      %c0_61 = arith.constant 0 : index
      %c0_62 = arith.constant 0 : index
      %75 = vector.load %arg19[%c0_60, %c0_61, %c0_62] : memref<4x8x8xf32, #tpu.memory_space<vmem>>, vector<4x8x8xf32>
      tpu.vector_store %arg19[%c0_60, %c0_61, %c0_62], %74 {strides = array<i32>} : memref<4x8x8xf32, #tpu.memory_space<vmem>>, vector<4x8x8xf32>,
    } else {
    }
    %c0_10 = arith.constant 0 : index
    %c0_11 = arith.constant 0 : index
    %9 = vector.load %arg8[%c0_10, %c0_11] : memref<32x64xbf16, #tpu.memory_space<vmem>>, vector<32x64xbf16>
    %10 = arith.truncf %3 : vector<8x32xf32> to vector<8x32xbf16>
    %cst = arith.constant dense<0.000000e+00> : vector<8x64xf32>
    %11 = tpu.matmul %10, %9, %cst {dimension_numbers = #tpu.dot_dimension_numbers<[1], [0], [0], [1], [0, 0, 1, 1], [], []>} : vector<8x32xbf16>, vector<32x64xbf16>, vector<8x64xf32> -> vector<8x64xf32>
    %c0_12 = arith.constant 0 : index
    %c0_13 = arith.constant 0 : index
    %12 = vector.load %arg9[%c0_12, %c0_13] : memref<1x64xf32, #tpu.memory_space<vmem>>, vector<1x64xf32>
    %13 = vector.broadcast %12 : vector<1x64xf32> to vector<8x64xf32>
    %14 = arith.addf %11, %13 : vector<8x64xf32>
    %15 = vector.extract_strided_slice %14 {offsets = [0, 0], sizes = [8, 32], strides = [1, 1]} : vector<8x64xf32> to vector<8x32xf32>
    %16 = arith.truncf %15 : vector<8x32xf32> to vector<8x32xbf16>
    %17 = vector.shape_cast %16 : vector<8x32xbf16> to vector<8x4x8xbf16>
    %18 = tpu.transpose %17, [1, 0, 2] : vector<8x4x8xbf16> -> vector<4x8x8xbf16>
    %19 = vector.extract_strided_slice %14 {offsets = [0, 32], sizes = [8, 32], strides = [1, 1]} : vector<8x64xf32> to vector<8x32xf32>
    %20 = arith.truncf %19 : vector<8x32xf32> to vector<8x32xbf16>
    %21 = vector.shape_cast %20 : vector<8x32xbf16> to vector<8x4x8xbf16>
    %22 = tpu.transpose %21, [1, 0, 2] : vector<8x4x8xbf16> -> vector<4x8x8xbf16>
    %c0_14 = arith.constant 0 : index
    %c0_15 = arith.constant 0 : index
    %c0_16 = arith.constant 0 : index
    %23 = vector.load %arg16[%c0_14, %c0_15, %c0_16] : memref<4x8x8xbf16, #tpu.memory_space<vmem>>, vector<4x8x8xbf16>
    "tpu.trace_start"() <{level = 10 : i32, message = "hqe,hke->hqk"}> : () -> ()
    %cst_17 = arith.constant dense<0.000000e+00> : vector<4x8x8xf32>
    %24 = tpu.matmul %23, %18, %cst_17 {dimension_numbers = #tpu.dot_dimension_numbers<[2], [2], [1], [1], [0, 0, 0, 1, 1, 1], [0], [0]>} : vector<4x8x8xbf16>, vector<4x8x8xbf16>, vector<4x8x8xf32> -> vector<4x8x8xf32>
    "tpu.trace_stop"() : () -> ()
    %25 = vector.shape_cast %5 : vector<1x8xf32> to vector<1x1x8xf32>
    %cst_18 = arith.constant 0.000000e+00 : f32
    %26 = vector.broadcast %cst_18 : f32 to vector<1x1x8xf32>
    %27 = arith.cmpf ogt, %25, %26 : vector<1x1x8xf32>
    %cst_19 = arith.constant -1.000000e+04 : f32
    %28 = vector.shape_cast %27 : vector<1x1x8xi1> to vector<1x1x8xi1>
    %29 = vector.broadcast %28 : vector<1x1x8xi1> to vector<4x8x8xi1>
    %30 = vector.broadcast %cst_19 : f32 to vector<4x8x8xf32>
    %31 = arith.select %29, %24, %30 : vector<4x8x8xi1>, vector<4x8x8xf32>
    %c0_20 = arith.constant 0 : index
    %c0_21 = arith.constant 0 : index
    %c0_22 = arith.constant 0 : index
    %32 = vector.load %arg17[%c0_20, %c0_21, %c0_22] : memref<4x8x1xf32, #tpu.memory_space<vmem>>, vector<4x8x1xf32>
    %cst_23 = arith.constant dense<0xFF800000> : vector<4x8xf32>
    %33 = vector.multi_reduction <maximumf>, %31, %cst_23 [2] : vector<4x8x8xf32> to vector<4x8xf32>
    %34 = vector.shape_cast %33 : vector<4x8xf32> to vector<4x8x1xf32>
    %35 = arith.maximumf %32, %34 : vector<4x8x1xf32>
    %36 = arith.subf %32, %35 : vector<4x8x1xf32>
    %37 = math.exp %36 : vector<4x8x1xf32>
    %38 = vector.broadcast %35 : vector<4x8x1xf32> to vector<4x8x8xf32>
    %39 = arith.subf %31, %38 : vector<4x8x8xf32>
    %40 = math.exp %39 : vector<4x8x8xf32>
    %c0_24 = arith.constant 0 : index
    %c0_25 = arith.constant 0 : index
    %c0_26 = arith.constant 0 : index
    %41 = vector.load %arg18[%c0_24, %c0_25, %c0_26] : memref<4x8x1xf32, #tpu.memory_space<vmem>>, vector<4x8x1xf32>
    %42 = arith.mulf %37, %41 : vector<4x8x1xf32>
    %cst_27 = arith.constant dense<0.000000e+00> : vector<4x8xf32>
    %43 = vector.multi_reduction <add>, %40, %cst_27 [2] : vector<4x8x8xf32> to vector<4x8xf32>
    %44 = vector.shape_cast %43 : vector<4x8xf32> to vector<4x8x1xf32>
    %45 = arith.addf %42, %44 : vector<4x8x1xf32>
    %c0_28 = arith.constant 0 : index
    %c0_29 = arith.constant 0 : index
    %c0_30 = arith.constant 0 : index
    %46 = vector.load %arg18[%c0_28, %c0_29, %c0_30] : memref<4x8x1xf32, #tpu.memory_space<vmem>>, vector<4x8x1xf32>
    tpu.vector_store %arg18[%c0_28, %c0_29, %c0_30], %45 {strides = array<i32>} : memref<4x8x1xf32, #tpu.memory_space<vmem>>, vector<4x8x1xf32>,
    %c0_31 = arith.constant 0 : index
    %c0_32 = arith.constant 0 : index
    %c0_33 = arith.constant 0 : index
    %47 = vector.load %arg19[%c0_31, %c0_32, %c0_33] : memref<4x8x8xf32, #tpu.memory_space<vmem>>, vector<4x8x8xf32>
    %48 = vector.broadcast %37 : vector<4x8x1xf32> to vector<4x8x8xf32>
    %49 = arith.mulf %48, %47 : vector<4x8x8xf32>
    %50 = arith.truncf %40 : vector<4x8x8xf32> to vector<4x8x8xbf16>
    "tpu.trace_start"() <{level = 10 : i32, message = "hqk,hke->hqe"}> : () -> ()
    %cst_34 = arith.constant dense<0.000000e+00> : vector<4x8x8xf32>
    %51 = tpu.matmul %50, %22, %cst_34 {dimension_numbers = #tpu.dot_dimension_numbers<[2], [1], [1], [2], [0, 0, 0, 1, 1, 2], [0], [0]>} : vector<4x8x8xbf16>, vector<4x8x8xbf16>, vector<4x8x8xf32> -> vector<4x8x8xf32>
    "tpu.trace_stop"() : () -> ()
    %52 = arith.addf %49, %51 : vector<4x8x8xf32>
    %c0_35 = arith.constant 0 : index
    %c0_36 = arith.constant 0 : index
    %c0_37 = arith.constant 0 : index
    %53 = vector.load %arg19[%c0_35, %c0_36, %c0_37] : memref<4x8x8xf32, #tpu.memory_space<vmem>>, vector<4x8x8xf32>
    tpu.vector_store %arg19[%c0_35, %c0_36, %c0_37], %52 {strides = array<i32>} : memref<4x8x8xf32, #tpu.memory_space<vmem>>, vector<4x8x8xf32>,
    %c0_38 = arith.constant 0 : index
    %c0_39 = arith.constant 0 : index
    %c0_40 = arith.constant 0 : index
    %54 = vector.load %arg17[%c0_38, %c0_39, %c0_40] : memref<4x8x1xf32, #tpu.memory_space<vmem>>, vector<4x8x1xf32>
    tpu.vector_store %arg17[%c0_38, %c0_39, %c0_40], %35 {strides = array<i32>} : memref<4x8x1xf32, #tpu.memory_space<vmem>>, vector<4x8x1xf32>,
    %c1_i32 = arith.constant 1 : i32
    %55 = arith.cmpi eq, %arg2, %c1_i32 : i32
    %56 = arith.extui %55 : i1 to i32
    %c0_i32_41 = arith.constant 0 : i32
    %57 = arith.cmpi ne, %56, %c0_i32_41 : i32
    scf.if %57 {
      %c0_42 = arith.constant 0 : index
      %c0_43 = arith.constant 0 : index
      %58 = vector.load %arg14[%c0_42, %c0_43] : memref<6x32xf32, #tpu.memory_space<vmem>>, vector<1x32xf32>
      %c1 = arith.constant 1 : index
      %c0_44 = arith.constant 0 : index
      %59 = vector.load %arg14[%c1, %c0_44] : memref<6x32xf32, #tpu.memory_space<vmem>>, vector<1x32xf32>
      %c2 = arith.constant 2 : index
      %c0_45 = arith.constant 0 : index
      %60 = vector.load %arg14[%c2, %c0_45] : memref<6x32xf32, #tpu.memory_space<vmem>>, vector<1x32xf32>
      %c3 = arith.constant 3 : index
      %c0_46 = arith.constant 0 : index
      %61 = vector.load %arg14[%c3, %c0_46] : memref<6x32xf32, #tpu.memory_space<vmem>>, vector<1x32xf32>
      %c4 = arith.constant 4 : index
      %c0_47 = arith.constant 0 : index
      %62 = vector.load %arg14[%c4, %c0_47] : memref<6x32xf32, #tpu.memory_space<vmem>>, vector<1x32xf32>
      %c5 = arith.constant 5 : index
      %c0_48 = arith.constant 0 : index
      %63 = vector.load %arg14[%c5, %c0_48] : memref<6x32xf32, #tpu.memory_space<vmem>>, vector<1x32xf32>
      %c0_49 = arith.constant 0 : index
      %c0_50 = arith.constant 0 : index
      %c0_51 = arith.constant 0 : index
      %64 = vector.load %arg19[%c0_49, %c0_50, %c0_51] : memref<4x8x8xf32, #tpu.memory_space<vmem>>, vector<4x8x8xf32>
      %c0_52 = arith.constant 0 : index
      %c0_53 = arith.constant 0 : index
      %c0_54 = arith.constant 0 : index
      %65 = vector.load %arg18[%c0_52, %c0_53, %c0_54] : memref<4x8x1xf32, #tpu.memory_space<vmem>>, vector<4x8x1xf32>
      %66 = tpu.reciprocal %65 {approx = true} : vector<4x8x1xf32> -> vector<4x8x1xf32>
      %67 = vector.broadcast %66 : vector<4x8x1xf32> to vector<4x8x8xf32>
      %68 = arith.mulf %64, %67 : vector<4x8x8xf32>
      %69 = arith.truncf %68 : vector<4x8x8xf32> to vector<4x8x8xbf16>
      %c0_55 = arith.constant 0 : index
      %c0_56 = arith.constant 0 : index
      %c0_57 = arith.constant 0 : index
      %70 = vector.load %arg10[%c0_55, %c0_56, %c0_57] : memref<4x8x32xbf16, #tpu.memory_space<vmem>>, vector<4x8x32xbf16>
      "tpu.trace_start"() <{level = 10 : i32, message = "hqe,hed->hqd"}> : () -> ()
      %cst_58 = arith.constant dense<0.000000e+00> : vector<4x8x32xf32>
      %71 = tpu.matmul %69, %70, %cst_58 {dimension_numbers = #tpu.dot_dimension_numbers<[2], [1], [1], [2], [0, 0, 0, 1, 1, 2], [0], [0]>} : vector<4x8x8xbf16>, vector<4x8x32xbf16>, vector<4x8x32xf32> -> vector<4x8x32xf32>
      "tpu.trace_stop"() : () -> ()
      %cst_59 = arith.constant dense<0.000000e+00> : vector<8x32xf32>
      %72 = vector.multi_reduction <add>, %71, %cst_59 [0] : vector<4x8x32xf32> to vector<8x32xf32>
      %73 = vector.broadcast %58 : vector<1x32xf32> to vector<8x32xf32>
      %74 = arith.addf %72, %73 : vector<8x32xf32>
      %75 = arith.addf %74, %1 : vector<8x32xf32>
      %cst_60 = arith.constant dense<0.000000e+00> : vector<8xf32>
      %76 = vector.multi_reduction <add>, %75, %cst_60 [1] : vector<8x32xf32> to vector<8xf32>
      %77 = vector.shape_cast %76 : vector<8xf32> to vector<8x1xf32>
      %cst_61 = arith.constant 3.200000e+01 : f32
      %78 = vector.broadcast %cst_61 : f32 to vector<8x1xf32>
      %79 = arith.divf %77, %78 : vector<8x1xf32>
      %80 = vector.broadcast %79 : vector<8x1xf32> to vector<8x32xf32>
      %81 = arith.subf %75, %80 : vector<8x32xf32>
      %82 = arith.mulf %81, %81 : vector<8x32xf32>
      %cst_62 = arith.constant dense<0.000000e+00> : vector<8xf32>
      %83 = vector.multi_reduction <add>, %82, %cst_62 [1] : vector<8x32xf32> to vector<8xf32>
      %84 = vector.shape_cast %83 : vector<8xf32> to vector<8x1xf32>
      %cst_63 = arith.constant 3.200000e+01 : f32
      %85 = vector.broadcast %cst_63 : f32 to vector<8x1xf32>
      %86 = arith.divf %84, %85 : vector<8x1xf32>
      %87 = vector.broadcast %79 : vector<8x1xf32> to vector<8x32xf32>
      %88 = arith.subf %75, %87 : vector<8x32xf32>
      %cst_64 = arith.constant 9.99999974E-6 : f32
      %89 = vector.broadcast %cst_64 : f32 to vector<8x1xf32>
      %90 = arith.addf %86, %89 : vector<8x1xf32>
      %91 = math.rsqrt %90 : vector<8x1xf32>
      %92 = vector.broadcast %91 : vector<8x1xf32> to vector<8x32xf32>
      %93 = arith.mulf %88, %92 : vector<8x32xf32>
      %94 = vector.broadcast %60 : vector<1x32xf32> to vector<8x32xf32>
      %95 = arith.mulf %94, %93 : vector<8x32xf32>
      %96 = vector.broadcast %61 : vector<1x32xf32> to vector<8x32xf32>
      %97 = arith.addf %95, %96 : vector<8x32xf32>
      %c0_65 = arith.constant 0 : index
      %c0_66 = arith.constant 0 : index
      %98 = vector.load %arg11[%c0_65, %c0_66] : memref<32x64xbf16, #tpu.memory_space<vmem>>, vector<32x64xbf16>
      %99 = arith.truncf %97 : vector<8x32xf32> to vector<8x32xbf16>
      %cst_67 = arith.constant dense<0.000000e+00> : vector<8x64xf32>
      %100 = tpu.matmul %99, %98, %cst_67 {dimension_numbers = #tpu.dot_dimension_numbers<[1], [0], [0], [1], [0, 0, 1, 1], [], []>} : vector<8x32xbf16>, vector<32x64xbf16>, vector<8x64xf32> -> vector<8x64xf32>
      %c0_68 = arith.constant 0 : index
      %c0_69 = arith.constant 0 : index
      %101 = vector.load %arg12[%c0_68, %c0_69] : memref<1x64xf32, #tpu.memory_space<vmem>>, vector<1x64xf32>
      %102 = vector.broadcast %101 : vector<1x64xf32> to vector<8x64xf32>
      %103 = arith.addf %100, %102 : vector<8x64xf32>
      %cst_70 = arith.constant 0.000000e+00 : f32
      %104 = vector.broadcast %cst_70 : f32 to vector<8x64xf32>
      %105 = arith.maximumf %103, %104 : vector<8x64xf32>
      %c0_71 = arith.constant 0 : index
      %c0_72 = arith.constant 0 : index
      %106 = vector.load %arg13[%c0_71, %c0_72] : memref<64x32xbf16, #tpu.memory_space<vmem>>, vector<64x32xbf16>
      %107 = arith.truncf %105 : vector<8x64xf32> to vector<8x64xbf16>
      %cst_73 = arith.constant dense<0.000000e+00> : vector<8x32xf32>
      %108 = tpu.matmul %107, %106, %cst_73 {dimension_numbers = #tpu.dot_dimension_numbers<[1], [0], [0], [1], [0, 0, 1, 1], [], []>} : vector<8x64xbf16>, vector<64x32xbf16>, vector<8x32xf32> -> vector<8x32xf32>
      %109 = vector.broadcast %59 : vector<1x32xf32> to vector<8x32xf32>
      %110 = arith.addf %108, %109 : vector<8x32xf32>
      %111 = arith.addf %110, %97 : vector<8x32xf32>
      %cst_74 = arith.constant dense<0.000000e+00> : vector<8xf32>
      %112 = vector.multi_reduction <add>, %111, %cst_74 [1] : vector<8x32xf32> to vector<8xf32>
      %113 = vector.shape_cast %112 : vector<8xf32> to vector<8x1xf32>
      %cst_75 = arith.constant 3.200000e+01 : f32
      %114 = vector.broadcast %cst_75 : f32 to vector<8x1xf32>
      %115 = arith.divf %113, %114 : vector<8x1xf32>
      %116 = vector.broadcast %115 : vector<8x1xf32> to vector<8x32xf32>
      %117 = arith.subf %111, %116 : vector<8x32xf32>
      %118 = arith.mulf %117, %117 : vector<8x32xf32>
      %cst_76 = arith.constant dense<0.000000e+00> : vector<8xf32>
      %119 = vector.multi_reduction <add>, %118, %cst_76 [1] : vector<8x32xf32> to vector<8xf32>
      %120 = vector.shape_cast %119 : vector<8xf32> to vector<8x1xf32>
      %cst_77 = arith.constant 3.200000e+01 : f32
      %121 = vector.broadcast %cst_77 : f32 to vector<8x1xf32>
      %122 = arith.divf %120, %121 : vector<8x1xf32>
      %123 = vector.broadcast %115 : vector<8x1xf32> to vector<8x32xf32>
      %124 = arith.subf %111, %123 : vector<8x32xf32>
      %cst_78 = arith.constant 9.99999974E-6 : f32
      %125 = vector.broadcast %cst_78 : f32 to vector<8x1xf32>
      %126 = arith.addf %122, %125 : vector<8x1xf32>
      %127 = math.rsqrt %126 : vector<8x1xf32>
      %128 = vector.broadcast %127 : vector<8x1xf32> to vector<8x32xf32>
      %129 = arith.mulf %124, %128 : vector<8x32xf32>
      %130 = vector.broadcast %62 : vector<1x32xf32> to vector<8x32xf32>
      %131 = arith.mulf %130, %129 : vector<8x32xf32>
      %132 = vector.broadcast %63 : vector<1x32xf32> to vector<8x32xf32>
      %133 = arith.addf %131, %132 : vector<8x32xf32>
      %c0_79 = arith.constant 0 : index
      %c0_80 = arith.constant 0 : index
      %c0_81 = arith.constant 0 : index
      %134 = vector.load %arg15[%c0_79, %c0_80, %c0_81] : memref<1x8x32xf32, #tpu.memory_space<vmem>>, vector<1x8x32xf32>
      %135 = vector.shape_cast %134 : vector<1x8x32xf32> to vector<8x32xf32>
      %136 = vector.shape_cast %133 : vector<8x32xf32> to vector<1x8x32xf32>
      tpu.vector_store %arg15[%c0_79, %c0_80, %c0_81], %136 {strides = array<i32>} : memref<1x8x32xf32, #tpu.memory_space<vmem>>, vector<1x8x32xf32>,
    } else {
    }
    return
  }
  func.func @transform_0(%arg0: i32, %arg1: i32, %arg2: i32) -> (i32, i32, i32) {
    %c0_i32 = arith.constant 0 : i32
    %c0_i32_0 = arith.constant 0 : i32
    return %arg0, %arg1, %c0_i32 : i32, i32, i32
  }
  func.func @transform_1(%arg0: i32, %arg1: i32, %arg2: i32) -> (i32, i32, i32) {
    %c0_i32 = arith.constant 0 : i32
    %c0_i32_0 = arith.constant 0 : i32
    return %arg0, %arg2, %c0_i32 : i32, i32, i32
  }
  func.func @transform_2(%arg0: i32, %arg1: i32, %arg2: i32) -> (i32, i32, i32, i32) {
    %c0_i32 = arith.constant 0 : i32
    %c0_i32_0 = arith.constant 0 : i32
    %c0_i32_1 = arith.constant 0 : i32
    return %arg0, %arg2, %c0_i32, %c0_i32_0 : i32, i32, i32, i32
  }
  func.func @transform_3(%arg0: i32, %arg1: i32, %arg2: i32) -> (i32, i32) {
    %c0_i32 = arith.constant 0 : i32
    %c0_i32_0 = arith.constant 0 : i32
    %c0_i32_1 = arith.constant 0 : i32
    return %c0_i32, %c0_i32_0 : i32, i32
  }
  func.func @transform_4(%arg0: i32, %arg1: i32, %arg2: i32) -> (i32, i32) {
    %c0_i32 = arith.constant 0 : i32
    %c0_i32_0 = arith.constant 0 : i32
    %c0_i32_1 = arith.constant 0 : i32
    return %c0_i32, %c0_i32_0 : i32, i32
  }
  func.func @transform_5(%arg0: i32, %arg1: i32, %arg2: i32) -> (i32, i32) {
    %c0_i32 = arith.constant 0 : i32
    %c0_i32_0 = arith.constant 0 : i32
    %c0_i32_1 = arith.constant 0 : i32
    return %c0_i32, %c0_i32_0 : i32, i32
  }
  func.func @transform_6(%arg0: i32, %arg1: i32, %arg2: i32) -> (i32, i32) {
    %c0_i32 = arith.constant 0 : i32
    %c0_i32_0 = arith.constant 0 : i32
    %c0_i32_1 = arith.constant 0 : i32
    return %c0_i32, %c0_i32_0 : i32, i32
  }
  func.func @transform_7(%arg0: i32, %arg1: i32, %arg2: i32) -> (i32, i32, i32) {
    %c0_i32 = arith.constant 0 : i32
    %c0_i32_0 = arith.constant 0 : i32
    %c0_i32_1 = arith.constant 0 : i32
    %c0_i32_2 = arith.constant 0 : i32
    return %c0_i32, %c0_i32_0, %c0_i32_1 : i32, i32, i32
  }
  func.func @transform_8(%arg0: i32, %arg1: i32, %arg2: i32) -> (i32, i32) {
    %c0_i32 = arith.constant 0 : i32
    %c0_i32_0 = arith.constant 0 : i32
    %c0_i32_1 = arith.constant 0 : i32
    return %c0_i32, %c0_i32_0 : i32, i32
  }
  func.func @transform_9(%arg0: i32, %arg1: i32, %arg2: i32) -> (i32, i32) {
    %c0_i32 = arith.constant 0 : i32
    %c0_i32_0 = arith.constant 0 : i32
    %c0_i32_1 = arith.constant 0 : i32
    return %c0_i32, %c0_i32_0 : i32, i32
  }
  func.func @transform_10(%arg0: i32, %arg1: i32, %arg2: i32) -> (i32, i32) {
    %c0_i32 = arith.constant 0 : i32
    %c0_i32_0 = arith.constant 0 : i32
    %c0_i32_1 = arith.constant 0 : i32
    return %c0_i32, %c0_i32_0 : i32, i32
  }
  func.func @transform_11(%arg0: i32, %arg1: i32, %arg2: i32) -> (i32, i32) {
    %c0_i32 = arith.constant 0 : i32
    %c0_i32_0 = arith.constant 0 : i32
    %c0_i32_1 = arith.constant 0 : i32
    return %c0_i32, %c0_i32_0 : i32, i32
  }
  func.func @transform_12(%arg0: i32, %arg1: i32, %arg2: i32) -> (i32, i32, i32) {
    %c0_i32 = arith.constant 0 : i32
    %c0_i32_0 = arith.constant 0 : i32
    return %arg0, %arg1, %c0_i32 : i32, i32, i32
  }
}

</mosaic_0001>

<llo_original>
// kernel: tpu_custom_call.1
$region0: #{tpu_custom_call.1}
  #allocation0 [shape = 'u32[]', space=smem, size = 0x4, offset = 0x4, fixed_abs, tag = 'smem constant byte address 0x4 - core index']
  #allocation1 [shape = 'u32[144,128]{1,0:T(1,128)}', space=vmem, size = 0x12000, scoped, tag = 'internal scratch']
  #allocation2 [shape = 'bf16[4,8,8]{2,1,0:T(8,128)(2,1)}', space=vmem, size = 0x2000, scoped, tag = 'scratch operand']
  #allocation3 [shape = 'f32[4,8,1]{2,1,0:T(8,128)}', space=vmem, size = 0x4000, scoped, tag = 'scratch operand']
  #allocation4 [shape = 'f32[4,8,1]{2,1,0:T(8,128)}', space=vmem, size = 0x4000, scoped, tag = 'scratch operand']
  #allocation5 [shape = 'f32[4,8,8]{2,1,0:T(8,128)}', space=vmem, size = 0x4000, scoped, tag = 'scratch operand']
  %s0 = inlined_call_operand.vmem [shape: f32[2,16,32], index: 0, kind: input, shape index: {}]
  %s1 = inlined_call_operand.hbm [shape: f32[2,16,32], index: 1, kind: input, shape index: {}]
  %s2 = inlined_call_operand.hbm [shape: f32[2,2,8,8], index: 2, kind: input, shape index: {}]
  %s3 = inlined_call_operand.vmem [shape: bf16[32,32], index: 3, kind: input, shape index: {}]
  %s4 = inlined_call_operand.vmem [shape: f32[1,32], index: 4, kind: input, shape index: {}]
  %s5 = inlined_call_operand.hbm [shape: bf16[32,64], index: 5, kind: input, shape index: {}]
  %s6 = inlined_call_operand.vmem [shape: f32[1,64], index: 6, kind: input, shape index: {}]
  %s7 = inlined_call_operand.hbm [shape: bf16[4,8,32], index: 7, kind: input, shape index: {}]
  %s8 = inlined_call_operand.hbm [shape: bf16[32,64], index: 8, kind: input, shape index: {}]
  %s9 = inlined_call_operand.hbm [shape: f32[1,64], index: 9, kind: input, shape index: {}]
  %s10 = inlined_call_operand.vmem [shape: bf16[64,32], index: 10, kind: input, shape index: {}]
  %s11 = inlined_call_operand.hbm [shape: f32[6,32], index: 11, kind: input, shape index: {}]
  %s12 = inlined_call_operand.hbm [shape: f32[2,16,32], index: 12, kind: output, shape index: {}]
  %s13 = sld [smem:[#allocation0]]
  $region117: #{tpu_custom_call.1} parent=0
    _
  %s15 = ssub.s32 1, %s13
  %s16 = scalar_select 0, %s15, %s13
  $region1: #{tpu_custom_call.1} parent=0
    #allocation6 [shape = 'u8[8192]{0}', space=vmem, size = 0x2000, scoped, tag = 'input window, operand 1']
    #allocation7 [shape = 's32[2]{0}', space=sflag, size = 0x8, scoped, tag = 'scoped memory for tpu_custom_call.1']
    #allocation8 [shape = 's32[2]{0}', space=sflag, size = 0x8, scoped, tag = 'scoped memory for tpu_custom_call.1']
    #allocation9 [shape = 'u8[8192]{0}', space=vmem, size = 0x2000, scoped, tag = 'input window, operand 2']
    #allocation10 [shape = 's32[2]{0}', space=sflag, size = 0x8, scoped, tag = 'scoped memory for tpu_custom_call.1']
    #allocation11 [shape = 'u8[8192]{0}', space=vmem, size = 0x2000, scoped, tag = 'input window, operand 5, single buffered']
    #allocation12 [shape = 'u8[8192]{0}', space=vmem, size = 0x2000, scoped, tag = 'input window, operand 7, single buffered']
    #allocation13 [shape = 's32[1]{0}', space=sflag, size = 0x4, scoped, tag = 'scoped memory for tpu_custom_call.1']
    #allocation14 [shape = 'u8[8192]{0}', space=vmem, size = 0x2000, scoped, tag = 'input window, operand 8, single buffered']
    #allocation15 [shape = 'u8[512]{0}', space=vmem, size = 0x400, scoped, tag = 'input window, operand 9, single buffered']
    #allocation16 [shape = 's32[1]{0}', space=sflag, size = 0x4, scoped, tag = 'scoped memory for tpu_custom_call.1']
    #allocation17 [shape = 'u8[4096]{0}', space=vmem, size = 0x1000, scoped, tag = 'input window, operand 11, single buffered']
    #allocation18 [shape = 'u8[8192]{0}', space=vmem, size = 0x2000, scoped, tag = 'output window, operand 0']
    %17 = vsyncpa [#allocation7], 0
    %s18 = scalar_lea.sflag [#allocation7], 1
    %19 = vsyncpa %s18, 0
    %20 = vsyncpa [#allocation10], 0
    %s21 = scalar_lea.sflag [#allocation10], 1
    %22 = vsyncpa %s21, 0
    %23 = vsyncpa [#allocation13], 0
    %24 = vsyncpa [#allocation16], 0
    %25 = vsyncpa [#allocation8], 0
    %s26 = scalar_lea.sflag [#allocation8], 1
    %27 = vsyncpa %s26, 0
    loop: start=0, step=1, limit=10
    $region2: #{tpu_custom_call.1} parent=1 // loop_pre_header
      _
    $region3: #{tpu_custom_call.1} parent=1 // loop_header
      %s29 = sphi 0, %s33
      %p30 = scmp.ge.s32.totalorder %s29, 10
      %s36 = sphi 0, %s55
      %s37 = sphi 0, %s51
      %s38 = sphi 0, %s47
      %s39 = sphi 0, %s36
      %s40 = sphi 0, %s37
      %s41 = sphi 0, %s38
      %s42 = sphi 0, %s39
      %s43 = sphi 0, %s40
      %s44 = sphi 0, %s41
      %s60 = sphi 0, %s62
      %s63 = sphi 0, %s60
      %s64 = sphi 0, %s63
      %s80 = sphi 0, %s64
      %s88 = sphi 0, %s90
      %s91 = sphi 0, %s88
      %s92 = sphi 0, %s91
      %s108 = sphi 0, %s92
      %s116 = sphi 0, %s118
      %s119 = sphi 0, %s116
      %s120 = sphi 0, %s119
      %s136 = sphi 0, %s120
      %s140 = sphi 0, %s140
      %s142 = sphi 0, %s140
      %s143 = sphi 0, %s142
      %s157 = sphi 0, %s143
      %s161 = sphi 0, %s161
      %s163 = sphi 0, %s161
      %s164 = sphi 0, %s163
      %s178 = sphi 0, %s164
      %s182 = sphi 0, %s182
      %s184 = sphi 0, %s182
      %s185 = sphi 0, %s184
      %s199 = sphi 0, %s185
      %s203 = sphi 0, %s203
      %s205 = sphi 0, %s203
      %s206 = sphi 0, %s205
      %s220 = sphi 0, %s206
      %s224 = sphi 0, %s224
      %s226 = sphi 0, %s224
      %s227 = sphi 0, %s226
      %s241 = sphi 0, %s227
      %s245 = sphi 0, %s245
      %s247 = sphi 0, %s245
      %s248 = sphi 0, %s247
      %s262 = sphi 0, %s248
      %s266 = sphi 0, %s266
      %s268 = sphi 0, %s266
      %s269 = sphi 0, %s268
      %s283 = sphi 0, %s269
      %s287 = sphi 0, %s287
      %s289 = sphi 0, %s287
      %s290 = sphi 0, %s289
      %s304 = sphi 0, %s290
      %s308 = sphi 0, %s308
      %s310 = sphi 0, %s308
      %s311 = sphi 0, %s310
      %s325 = sphi 0, %s311
      %s333 = sphi 0, %s335
      %s336 = sphi 0, %s333
      %s337 = sphi 0, %s336
      %s353 = sphi 0, %s337
    $region4: #{tpu_custom_call.1} parent=1 // loop_header_branch
      %32 = sbr.rel (%p30) target = $region8
    $region5: #{tpu_custom_call.1} parent=1 // loop_body
      %s34 = ssub.s32 %s29, 1
      %s35 = ssub.s32 %s29, 2
      %s45 = sadd.s32 1, %s38
      %p46 = scmp.ge.s32.totalorder %s45, 2
      %s47 = scalar_select %p46, 0, %s45
      %s48 = sadd.s32 1, %s37
      %s49 = scalar_select %p46, %s48, %s37
      %p50 = scmp.ge.s32.totalorder %s49, 2
      %s51 = scalar_select %p50, 0, %s49
      %s52 = sadd.s32 1, %s36
      %s53 = scalar_select %p50, %s52, %s36
      %p54 = scmp.ge.s32.totalorder %s53, 2
      %s55 = scalar_select %p54, 0, %s53
      %s56 = ssub.s32 %s36, %s55
      %s57 = ssub.s32 %s37, %s51
      %s58 = sor.u32 %s56, %s57
      %p59 = scmp.eq.s32.totalorder %s58, 0
      %s61 = sadd.s32 %s60, 1
      %s62 = scalar_select %p59, %s60, %s61
      %p65 = pneg %p59
      %p66 = scmp.eq.s32.totalorder %s29, 7
      %p67 = por %p65, %p66
      %p68 = scmp.ne.s32.totalorder %s60, %s63
      %p69 = scmp.eq.s32.totalorder %s29, 0
      %p70 = por %p68, %p69
      %p71 = scmp.ne.s32.totalorder %s60, %s63
      %p72 = scmp.eq.s32.totalorder %s34, 7
      %p73 = por %p71, %p72
      %p74 = scmp.ne.s32.totalorder %s63, %s64
      %p75 = scmp.eq.s32.totalorder %s34, 0
      %p76 = por %p74, %p75
      %p77 = scmp.ne.s32.totalorder %s63, %s64
      %p78 = scmp.eq.s32.totalorder %s35, 7
      %p79 = por %p77, %p78
      %p81 = scmp.ne.s32.totalorder %s64, %s80
      %p82 = scmp.eq.s32.totalorder %s35, 0
      %p83 = por %p81, %p82
      %s84 = ssub.s32 %s36, %s55
      %s85 = ssub.s32 %s38, %s47
      %s86 = sor.u32 %s84, %s85
      %p87 = scmp.eq.s32.totalorder %s86, 0
      %s89 = sadd.s32 %s88, 1
      %s90 = scalar_select %p87, %s88, %s89
      %p93 = pneg %p87
      %p94 = scmp.eq.s32.totalorder %s29, 7
      %p95 = por %p93, %p94
      %p96 = scmp.ne.s32.totalorder %s88, %s91
      %p97 = scmp.eq.s32.totalorder %s29, 0
      %p98 = por %p96, %p97
      %p99 = scmp.ne.s32.totalorder %s88, %s91
      %p100 = scmp.eq.s32.totalorder %s34, 7
      %p101 = por %p99, %p100
      %p102 = scmp.ne.s32.totalorder %s91, %s92
      %p103 = scmp.eq.s32.totalorder %s34, 0
      %p104 = por %p102, %p103
      %p105 = scmp.ne.s32.totalorder %s91, %s92
      %p106 = scmp.eq.s32.totalorder %s35, 7
      %p107 = por %p105, %p106
      %p109 = scmp.ne.s32.totalorder %s92, %s108
      %p110 = scmp.eq.s32.totalorder %s35, 0
      %p111 = por %p109, %p110
      %s112 = ssub.s32 %s36, %s55
      %s113 = ssub.s32 %s38, %s47
      %s114 = sor.u32 %s112, %s113
      %p115 = scmp.eq.s32.totalorder %s114, 0
      %s117 = sadd.s32 %s116, 1
      %s118 = scalar_select %p115, %s116, %s117
      %p121 = pneg %p115
      %p122 = scmp.eq.s32.totalorder %s29, 7
      %p123 = por %p121, %p122
      %p124 = scmp.ne.s32.totalorder %s116, %s119
      %p125 = scmp.eq.s32.totalorder %s29, 0
      %p126 = por %p124, %p125
      %p127 = scmp.ne.s32.totalorder %s116, %s119
      %p128 = scmp.eq.s32.totalorder %s34, 7
      %p129 = por %p127, %p128
      %p130 = scmp.ne.s32.totalorder %s119, %s120
      %p131 = scmp.eq.s32.totalorder %s34, 0
      %p132 = por %p130, %p131
      %p133 = scmp.ne.s32.totalorder %s119, %s120
      %p134 = scmp.eq.s32.totalorder %s35, 7
      %p135 = por %p133, %p134
      %p137 = scmp.ne.s32.totalorder %s120, %s136
      %p138 = scmp.eq.s32.totalorder %s35, 0
      %p139 = por %p137, %p138
      %s141 = sadd.s32 %s140, 1
      %p144 = scmp.eq.s32.totalorder %s29, 7
      %p145 = scmp.ne.s32.totalorder %s140, %s142
      %p146 = scmp.eq.s32.totalorder %s29, 0
      %p147 = por %p145, %p146
      %p148 = scmp.ne.s32.totalorder %s140, %s142
      %p149 = scmp.eq.s32.totalorder %s34, 7
      %p150 = por %p148, %p149
      %p151 = scmp.ne.s32.totalorder %s142, %s143
      %p152 = scmp.eq.s32.totalorder %s34, 0
      %p153 = por %p151, %p152
      %p154 = scmp.ne.s32.totalorder %s142, %s143
      %p155 = scmp.eq.s32.totalorder %s35, 7
      %p156 = por %p154, %p155
      %p158 = scmp.ne.s32.totalorder %s143, %s157
      %p159 = scmp.eq.s32.totalorder %s35, 0
      %p160 = por %p158, %p159
      %s162 = sadd.s32 %s161, 1
      %p165 = scmp.eq.s32.totalorder %s29, 7
      %p166 = scmp.ne.s32.totalorder %s161, %s163
      %p167 = scmp.eq.s32.totalorder %s29, 0
      %p168 = por %p166, %p167
      %p169 = scmp.ne.s32.totalorder %s161, %s163
      %p170 = scmp.eq.s32.totalorder %s34, 7
      %p171 = por %p169, %p170
      %p172 = scmp.ne.s32.totalorder %s163, %s164
      %p173 = scmp.eq.s32.totalorder %s34, 0
      %p174 = por %p172, %p173
      %p175 = scmp.ne.s32.totalorder %s163, %s164
      %p176 = scmp.eq.s32.totalorder %s35, 7
      %p177 = por %p175, %p176
      %p179 = scmp.ne.s32.totalorder %s164, %s178
      %p180 = scmp.eq.s32.totalorder %s35, 0
      %p181 = por %p179, %p180
      %s183 = sadd.s32 %s182, 1
      %p186 = scmp.eq.s32.totalorder %s29, 7
      %p187 = scmp.ne.s32.totalorder %s182, %s184
      %p188 = scmp.eq.s32.totalorder %s29, 0
      %p189 = por %p187, %p188
      %p190 = scmp.ne.s32.totalorder %s182, %s184
      %p191 = scmp.eq.s32.totalorder %s34, 7
      %p192 = por %p190, %p191
      %p193 = scmp.ne.s32.totalorder %s184, %s185
      %p194 = scmp.eq.s32.totalorder %s34, 0
      %p195 = por %p193, %p194
      %p196 = scmp.ne.s32.totalorder %s184, %s185
      %p197 = scmp.eq.s32.totalorder %s35, 7
      %p198 = por %p196, %p197
      %p200 = scmp.ne.s32.totalorder %s185, %s199
      %p201 = scmp.eq.s32.totalorder %s35, 0
      %p202 = por %p200, %p201
      %s204 = sadd.s32 %s203, 1
      %p207 = scmp.eq.s32.totalorder %s29, 7
      %p208 = scmp.ne.s32.totalorder %s203, %s205
      %p209 = scmp.eq.s32.totalorder %s29, 0
      %p210 = por %p208, %p209
      %p211 = scmp.ne.s32.totalorder %s203, %s205
      %p212 = scmp.eq.s32.totalorder %s34, 7
      %p213 = por %p211, %p212
      %p214 = scmp.ne.s32.totalorder %s205, %s206
      %p215 = scmp.eq.s32.totalorder %s34, 0
      %p216 = por %p214, %p215
      %p217 = scmp.ne.s32.totalorder %s205, %s206
      %p218 = scmp.eq.s32.totalorder %s35, 7
      %p219 = por %p217, %p218
      %p221 = scmp.ne.s32.totalorder %s206, %s220
      %p222 = scmp.eq.s32.totalorder %s35, 0
      %p223 = por %p221, %p222
      %s225 = sadd.s32 %s224, 1
      %p228 = scmp.eq.s32.totalorder %s29, 7
      %p229 = scmp.ne.s32.totalorder %s224, %s226
      %p230 = scmp.eq.s32.totalorder %s29, 0
      %p231 = por %p229, %p230
      %p232 = scmp.ne.s32.totalorder %s224, %s226
      %p233 = scmp.eq.s32.totalorder %s34, 7
      %p234 = por %p232, %p233
      %p235 = scmp.ne.s32.totalorder %s226, %s227
      %p236 = scmp.eq.s32.totalorder %s34, 0
      %p237 = por %p235, %p236
      %p238 = scmp.ne.s32.totalorder %s226, %s227
      %p239 = scmp.eq.s32.totalorder %s35, 7
      %p240 = por %p238, %p239
      %p242 = scmp.ne.s32.totalorder %s227, %s241
      %p243 = scmp.eq.s32.totalorder %s35, 0
      %p244 = por %p242, %p243
      %s246 = sadd.s32 %s245, 1
      %p249 = scmp.eq.s32.totalorder %s29, 7
      %p250 = scmp.ne.s32.totalorder %s245, %s247
      %p251 = scmp.eq.s32.totalorder %s29, 0
      %p252 = por %p250, %p251
      %p253 = scmp.ne.s32.totalorder %s245, %s247
      %p254 = scmp.eq.s32.totalorder %s34, 7
      %p255 = por %p253, %p254
      %p256 = scmp.ne.s32.totalorder %s247, %s248
      %p257 = scmp.eq.s32.totalorder %s34, 0
      %p258 = por %p256, %p257
      %p259 = scmp.ne.s32.totalorder %s247, %s248
      %p260 = scmp.eq.s32.totalorder %s35, 7
      %p261 = por %p259, %p260
      %p263 = scmp.ne.s32.totalorder %s248, %s262
      %p264 = scmp.eq.s32.totalorder %s35, 0
      %p265 = por %p263, %p264
      %s267 = sadd.s32 %s266, 1
      %p270 = scmp.eq.s32.totalorder %s29, 7
      %p271 = scmp.ne.s32.totalorder %s266, %s268
      %p272 = scmp.eq.s32.totalorder %s29, 0
      %p273 = por %p271, %p272
      %p274 = scmp.ne.s32.totalorder %s266, %s268
      %p275 = scmp.eq.s32.totalorder %s34, 7
      %p276 = por %p274, %p275
      %p277 = scmp.ne.s32.totalorder %s268, %s269
      %p278 = scmp.eq.s32.totalorder %s34, 0
      %p279 = por %p277, %p278
      %p280 = scmp.ne.s32.totalorder %s268, %s269
      %p281 = scmp.eq.s32.totalorder %s35, 7
      %p282 = por %p280, %p281
      %p284 = scmp.ne.s32.totalorder %s269, %s283
      %p285 = scmp.eq.s32.totalorder %s35, 0
      %p286 = por %p284, %p285
      %s288 = sadd.s32 %s287, 1
      %p291 = scmp.eq.s32.totalorder %s29, 7
      %p292 = scmp.ne.s32.totalorder %s287, %s289
      %p293 = scmp.eq.s32.totalorder %s29, 0
      %p294 = por %p292, %p293
      %p295 = scmp.ne.s32.totalorder %s287, %s289
      %p296 = scmp.eq.s32.totalorder %s34, 7
      %p297 = por %p295, %p296
      %p298 = scmp.ne.s32.totalorder %s289, %s290
      %p299 = scmp.eq.s32.totalorder %s34, 0
      %p300 = por %p298, %p299
      %p301 = scmp.ne.s32.totalorder %s289, %s290
      %p302 = scmp.eq.s32.totalorder %s35, 7
      %p303 = por %p301, %p302
      %p305 = scmp.ne.s32.totalorder %s290, %s304
      %p306 = scmp.eq.s32.totalorder %s35, 0
      %p307 = por %p305, %p306
      %s309 = sadd.s32 %s308, 1
      %p312 = scmp.eq.s32.totalorder %s29, 7
      %p313 = scmp.ne.s32.totalorder %s308, %s310
      %p314 = scmp.eq.s32.totalorder %s29, 0
      %p315 = por %p313, %p314
      %p316 = scmp.ne.s32.totalorder %s308, %s310
      %p317 = scmp.eq.s32.totalorder %s34, 7
      %p318 = por %p316, %p317
      %p319 = scmp.ne.s32.totalorder %s310, %s311
      %p320 = scmp.eq.s32.totalorder %s34, 0
      %p321 = por %p319, %p320
      %p322 = scmp.ne.s32.totalorder %s310, %s311
      %p323 = scmp.eq.s32.totalorder %s35, 7
      %p324 = por %p322, %p323
      %p326 = scmp.ne.s32.totalorder %s311, %s325
      %p327 = scmp.eq.s32.totalorder %s35, 0
      %p328 = por %p326, %p327
      %s329 = ssub.s32 %s36, %s55
      %s330 = ssub.s32 %s37, %s51
      %s331 = sor.u32 %s329, %s330
      %p332 = scmp.eq.s32.totalorder %s331, 0
      %s334 = sadd.s32 %s333, 1
      %s335 = scalar_select %p332, %s333, %s334
      %p338 = pneg %p332
      %p339 = scmp.eq.s32.totalorder %s29, 7
      %p340 = por %p338, %p339
      %p341 = scmp.ne.s32.totalorder %s333, %s336
      %p342 = scmp.eq.s32.totalorder %s29, 0
      %p343 = por %p341, %p342
      %p344 = scmp.ne.s32.totalorder %s333, %s336
      %p345 = scmp.eq.s32.totalorder %s34, 7
      %p346 = por %p344, %p345
      %p347 = scmp.ne.s32.totalorder %s336, %s337
      %p348 = scmp.eq.s32.totalorder %s34, 0
      %p349 = por %p347, %p348
      %p350 = scmp.ne.s32.totalorder %s336, %s337
      %p351 = scmp.eq.s32.totalorder %s35, 7
      %p352 = por %p350, %p351
      %p354 = scmp.ne.s32.totalorder %s337, %s353
      %p355 = scmp.eq.s32.totalorder %s35, 0
      %p356 = por %p354, %p355
      %p357 = scmp.le.s32.totalorder 1, %s29
      %p358 = scmp.lt.s32.totalorder %s29, 9
      %p359 = pnand %p357, %p358
      %p360 = pneg %p359
      // Predicated region
      $region9: #{tpu_custom_call.1} parent=5 // pred_check
        _
      $region10: #{tpu_custom_call.1} parent=5 // pred_check_branch
        %362 = sbr.rel (%p359) target = $region12
      $region11: #{tpu_custom_call.1} parent=5 // pred_region
        %s363 = ssub.s32 %s29, 1
        // Predicated region
        $region13: #{tpu_custom_call.1} parent=11 // pred_check
          %p364 = pneg %p153
        $region14: #{tpu_custom_call.1} parent=11 // pred_check_branch
          %366 = sbr.rel (%p364) target = $region16
        $region15: #{tpu_custom_call.1} parent=11 // pred_region
          _
        $region16: #{tpu_custom_call.1} parent=11 // pred_fallthru
          _
        // Predicated region
        $region17: #{tpu_custom_call.1} parent=11 // pred_check
          %p367 = pneg %p174
        $region18: #{tpu_custom_call.1} parent=11 // pred_check_branch
          %369 = sbr.rel (%p367) target = $region20
        $region19: #{tpu_custom_call.1} parent=11 // pred_region
          _
        $region20: #{tpu_custom_call.1} parent=11 // pred_fallthru
          _
        // Predicated region
        $region21: #{tpu_custom_call.1} parent=11 // pred_check
          %p370 = pneg %p195
        $region22: #{tpu_custom_call.1} parent=11 // pred_check_branch
          %372 = sbr.rel (%p370) target = $region24
        $region23: #{tpu_custom_call.1} parent=11 // pred_region
          %s374 = ssub.s32 256, 256
          %375 = vsyncadd [#allocation10], %s374
          %s376 = sshll.u32 [#allocation11], 4
          %s377 = int_to_ptr.vmem [resolvable:$true] %s376
          %382 = dma.hbm_to_vmem [thread:$0]  %s5, 256, %s377, [#allocation10], 64, 64, 4
        $region24: #{tpu_custom_call.1} parent=11 // pred_fallthru
          _
        // Predicated region
        $region25: #{tpu_custom_call.1} parent=11 // pred_check
          %p383 = pneg %p216
        $region26: #{tpu_custom_call.1} parent=11 // pred_check_branch
          %385 = sbr.rel (%p383) target = $region28
        $region27: #{tpu_custom_call.1} parent=11 // pred_region
          _
        $region28: #{tpu_custom_call.1} parent=11 // pred_fallthru
          _
        // Predicated region
        $region29: #{tpu_custom_call.1} parent=11 // pred_check
          %p386 = pneg %p237
        $region30: #{tpu_custom_call.1} parent=11 // pred_check_branch
          %388 = sbr.rel (%p386) target = $region32
        $region31: #{tpu_custom_call.1} parent=11 // pred_region
          %s390 = ssub.s32 256, 256
          %391 = vsyncadd [#allocation13], %s390
          %s392 = sshll.u32 [#allocation12], 4
          %s393 = int_to_ptr.vmem [resolvable:$true] %s392
          %398 = dma.hbm_to_vmem [thread:$0]  %s7, 256, %s393, [#allocation13], 64, 64, 4
        $region32: #{tpu_custom_call.1} parent=11 // pred_fallthru
          _
        // Predicated region
        $region33: #{tpu_custom_call.1} parent=11 // pred_check
          %p399 = pneg %p258
        $region34: #{tpu_custom_call.1} parent=11 // pred_check_branch
          %401 = sbr.rel (%p399) target = $region36
        $region35: #{tpu_custom_call.1} parent=11 // pred_region
          %s403 = ssub.s32 256, 256
          %404 = vsyncadd [#allocation13], %s403
          %s405 = sshll.u32 [#allocation14], 4
          %s406 = int_to_ptr.vmem [resolvable:$true] %s405
          %411 = dma.hbm_to_vmem [thread:$0]  %s8, 256, %s406, [#allocation13], 64, 64, 4
        $region36: #{tpu_custom_call.1} parent=11 // pred_fallthru
          _
        // Predicated region
        $region37: #{tpu_custom_call.1} parent=11 // pred_check
          %p412 = pneg %p279
        $region38: #{tpu_custom_call.1} parent=11 // pred_check_branch
          %414 = sbr.rel (%p412) target = $region40
        $region39: #{tpu_custom_call.1} parent=11 // pred_region
          %s416 = ssub.s32 16, 16
          %417 = vsyncadd [#allocation16], %s416
          %s419 = sshll.u32 [#allocation15], 4
          %s420 = int_to_ptr.vmem [resolvable:$true] %s419
          %422 = dma.hbm_to_vmem [thread:$0]  %s9, 16, %s420, [#allocation16]
        $region40: #{tpu_custom_call.1} parent=11 // pred_fallthru
          _
        // Predicated region
        $region41: #{tpu_custom_call.1} parent=11 // pred_check
          %p423 = pneg %p300
        $region42: #{tpu_custom_call.1} parent=11 // pred_check_branch
          %425 = sbr.rel (%p423) target = $region44
        $region43: #{tpu_custom_call.1} parent=11 // pred_region
          _
        $region44: #{tpu_custom_call.1} parent=11 // pred_fallthru
          _
        // Predicated region
        $region45: #{tpu_custom_call.1} parent=11 // pred_check
          %p426 = pneg %p321
        $region46: #{tpu_custom_call.1} parent=11 // pred_check_branch
          %428 = sbr.rel (%p426) target = $region48
        $region47: #{tpu_custom_call.1} parent=11 // pred_region
          %s430 = ssub.s32 128, 128
          %431 = vsyncadd [#allocation16], %s430
          %s433 = sshll.u32 [#allocation17], 4
          %s434 = int_to_ptr.vmem [resolvable:$true] %s433
          %436 = dma.hbm_to_vmem [thread:$0]  %s11, 128, %s434, [#allocation16]
        $region48: #{tpu_custom_call.1} parent=11 // pred_fallthru
          _
      $region12: #{tpu_custom_call.1} parent=5 // pred_fallthru
        _
      %p437 = scmp.lt.s32.totalorder %s29, 8
      // Predicated region
      $region49: #{tpu_custom_call.1} parent=5 // pred_check
        %p438 = pneg %p437
      $region50: #{tpu_custom_call.1} parent=5 // pred_check_branch
        %440 = sbr.rel (%p438) target = $region52
      $region51: #{tpu_custom_call.1} parent=5 // pred_region
        // Predicated region
        $region53: #{tpu_custom_call.1} parent=51 // pred_check
          %p441 = pneg %p70
        $region54: #{tpu_custom_call.1} parent=51 // pred_check_branch
          %443 = sbr.rel (%p441) target = $region56
        $region55: #{tpu_custom_call.1} parent=51 // pred_region
          %p444 = scmp.lt.s32.totalorder %s36, 1
          %s445 = scalar_select %p444, %s36, 1
          %p446 = scmp.lt.s32.totalorder %s37, 1
          %s447 = scalar_select %p446, %s37, 1
          %s448 = smul.addr %s445, 2
          %s449 = sadd.s32 %s447, %s448
          %s450 = smul.addr %s449, 8
          %s451 = scalar_lea.vmem %s0, %s450
        $region56: #{tpu_custom_call.1} parent=51 // pred_fallthru
          _
        // Predicated region
        $region57: #{tpu_custom_call.1} parent=51 // pred_check
          %p452 = pneg %p98
        $region58: #{tpu_custom_call.1} parent=51 // pred_check_branch
          %454 = sbr.rel (%p452) target = $region60
        $region59: #{tpu_custom_call.1} parent=51 // pred_region
          %s455 = sand.u32 %s88, 1
          %s456 = scalar_lea.sflag [#allocation7], %s455
          %s457 = sand.u32 %s88, 1
          %s458 = smul.addr %s457, 8
          %s459 = scalar_lea.vmem [#allocation6], %s458
          %s461 = ssub.s32 128, 128
          %462 = vsyncadd %s456, %s461
          %s463 = smul.addr %s36, 2
          %s464 = sadd.s32 %s38, %s463
          %s465 = smul.addr %s464, 128
          %s466 = scalar_lea.hbm %s1, %s465
          %s468 = sshll.u32 %s459, 4
          %s469 = int_to_ptr.vmem [resolvable:$true] %s468
          %471 = dma.hbm_to_vmem [thread:$0]  %s466, 128, %s469, %s456
        $region60: #{tpu_custom_call.1} parent=51 // pred_fallthru
          _
        // Predicated region
        $region61: #{tpu_custom_call.1} parent=51 // pred_check
          %p472 = pneg %p126
        $region62: #{tpu_custom_call.1} parent=51 // pred_check_branch
          %474 = sbr.rel (%p472) target = $region64
        $region63: #{tpu_custom_call.1} parent=51 // pred_region
          %s475 = sand.u32 %s29, 1
          %s476 = scalar_lea.sflag [#allocation10], %s475
          %s477 = sand.u32 %s116, 1
          %s478 = smul.addr %s477, 8
          %s479 = scalar_lea.vmem [#allocation9], %s478
          %s481 = ssub.s32 128, 128
          %482 = vsyncadd %s476, %s481
          %s483 = smul.addr %s36, 2
          %s484 = sadd.s32 %s38, %s483
          %s485 = smul.addr %s484, 128
          %s486 = scalar_lea.hbm %s2, %s485
          %s488 = sshll.u32 %s479, 4
          %s489 = int_to_ptr.vmem [resolvable:$true] %s488
          %491 = dma.hbm_to_vmem [thread:$0]  %s486, 128, %s489, %s476
        $region64: #{tpu_custom_call.1} parent=51 // pred_fallthru
          _
      $region52: #{tpu_custom_call.1} parent=5 // pred_fallthru
        _
      %p492 = scmp.le.s32.totalorder 1, %s29
      %p493 = scmp.lt.s32.totalorder %s29, 9
      %p494 = pnand %p492, %p493
      %p495 = pneg %p494
      // Predicated region
      $region65: #{tpu_custom_call.1} parent=5 // pred_check
        _
      $region66: #{tpu_custom_call.1} parent=5 // pred_check_branch
        %497 = sbr.rel (%p494) target = $region68
      $region67: #{tpu_custom_call.1} parent=5 // pred_region
        %s498 = ssub.s32 %s29, 1
        %s499 = sand.u32 %s91, 1
        %s500 = scalar_lea.sflag [#allocation7], %s499
        %s501 = sand.u32 %s91, 1
        %s502 = smul.addr %s501, 8
        %s503 = scalar_lea.vmem [#allocation6], %s502
        // Predicated region
        $region69: #{tpu_custom_call.1} parent=67 // pred_check
          %p504 = pneg %p104
        $region70: #{tpu_custom_call.1} parent=67 // pred_check_branch
          %506 = sbr.rel (%p504) target = $region72
        $region71: #{tpu_custom_call.1} parent=67 // pred_region
          %507 = dma.done %s500, 128
        $region72: #{tpu_custom_call.1} parent=67 // pred_fallthru
          _
        %s508 = sand.u32 %s34, 1
        %s509 = scalar_lea.sflag [#allocation10], %s508
        %s510 = sand.u32 %s119, 1
        %s511 = smul.addr %s510, 8
        %s512 = scalar_lea.vmem [#allocation9], %s511
        // Predicated region
        $region73: #{tpu_custom_call.1} parent=67 // pred_check
          %p513 = pneg %p132
        $region74: #{tpu_custom_call.1} parent=67 // pred_check_branch
          %515 = sbr.rel (%p513) target = $region76
        $region75: #{tpu_custom_call.1} parent=67 // pred_region
          %516 = dma.done %s509, 128
        $region76: #{tpu_custom_call.1} parent=67 // pred_fallthru
          _
        // Predicated region
        $region77: #{tpu_custom_call.1} parent=67 // pred_check
          %p517 = pneg %p195
        $region78: #{tpu_custom_call.1} parent=67 // pred_check_branch
          %519 = sbr.rel (%p517) target = $region80
        $region79: #{tpu_custom_call.1} parent=67 // pred_region
          %520 = dma.done [#allocation10], 256
        $region80: #{tpu_custom_call.1} parent=67 // pred_fallthru
          _
        // Predicated region
        $region81: #{tpu_custom_call.1} parent=67 // pred_check
          %p521 = pneg %p237
        $region82: #{tpu_custom_call.1} parent=67 // pred_check_branch
          %523 = sbr.rel (%p521) target = $region84
        $region83: #{tpu_custom_call.1} parent=67 // pred_region
          %524 = dma.done [#allocation13], 256
        $region84: #{tpu_custom_call.1} parent=67 // pred_fallthru
          _
        // Predicated region
        $region85: #{tpu_custom_call.1} parent=67 // pred_check
          %p525 = pneg %p258
        $region86: #{tpu_custom_call.1} parent=67 // pred_check_branch
          %527 = sbr.rel (%p525) target = $region88
        $region87: #{tpu_custom_call.1} parent=67 // pred_region
          %528 = dma.done [#allocation13], 256
        $region88: #{tpu_custom_call.1} parent=67 // pred_fallthru
          _
        // Predicated region
        $region89: #{tpu_custom_call.1} parent=67 // pred_check
          %p529 = pneg %p279
        $region90: #{tpu_custom_call.1} parent=67 // pred_check_branch
          %531 = sbr.rel (%p529) target = $region92
        $region91: #{tpu_custom_call.1} parent=67 // pred_region
          %532 = dma.done [#allocation16], 16
        $region92: #{tpu_custom_call.1} parent=67 // pred_fallthru
          _
        // Predicated region
        $region93: #{tpu_custom_call.1} parent=67 // pred_check
          %p533 = pneg %p321
        $region94: #{tpu_custom_call.1} parent=67 // pred_check_branch
          %535 = sbr.rel (%p533) target = $region96
        $region95: #{tpu_custom_call.1} parent=67 // pred_region
          %536 = dma.done [#allocation16], 128
        $region96: #{tpu_custom_call.1} parent=67 // pred_fallthru
          _
        %p537 = scmp.lt.s32.totalorder %s39, 1
        %s538 = scalar_select %p537, %s39, 1
        %p539 = scmp.lt.s32.totalorder %s40, 1
        %s540 = scalar_select %p539, %s40, 1
        %s541 = smul.addr %s538, 2
        %s542 = sadd.s32 %s540, %s541
        %s543 = smul.addr %s542, 8
        %s544 = scalar_lea.vmem %s0, %s543
        %p545 = pneg %p76
        %p546 = pneg %p73
        %s547 = sand.u32 %s91, 1
        %s548 = scalar_lea.sflag [#allocation7], %s547
        %s549 = sand.u32 %s91, 1
        %s550 = smul.addr %s549, 8
        %s551 = scalar_lea.vmem [#allocation6], %s550
        %p552 = pneg %p104
        %p553 = pneg %p101
        %s554 = sand.u32 %s34, 1
        %s555 = scalar_lea.sflag [#allocation10], %s554
        %s556 = sand.u32 %s119, 1
        %s557 = smul.addr %s556, 8
        %s558 = scalar_lea.vmem [#allocation9], %s557
        %p559 = pneg %p132
        %p560 = pneg %p129
        %p561 = pneg %p153
        %p562 = pneg %p150
        %p563 = pneg %p174
        %p564 = pneg %p171
        %p565 = pneg %p195
        %p566 = pneg %p192
        %p567 = pneg %p216
        %p568 = pneg %p213
        %p569 = pneg %p237
        %p570 = pneg %p234
        %p571 = pneg %p258
        %p572 = pneg %p255
        %p573 = pneg %p279
        %p574 = pneg %p276
        %p575 = pneg %p300
        %p576 = pneg %p297
        %p577 = pneg %p321
        %p578 = pneg %p318
        %p579 = pneg %p349
        %p580 = pneg %p346
        %s581 = sand.u32 %s336, 1
        %s582 = scalar_lea.sflag [#allocation8], %s581
        %s583 = sand.u32 %s336, 1
        %s584 = smul.addr %s583, 8
        %s585 = scalar_lea.vmem [#allocation18], %s584
        %p586 = scmp.lt.s32.totalorder %s39, 1
        %s587 = scalar_select %p586, %s39, 1
        %p588 = scmp.lt.s32.totalorder %s40, 1
        %s589 = scalar_select %p588, %s40, 1
        %s590 = smul.addr %s587, 2
        %s591 = sadd.s32 %s589, %s590
        %s592 = smul.addr %s591, 8
        %s593 = scalar_lea.vmem %s0, %s592
        %v595 = vld [vmem:[%s593] sm:$0xff]
        %v596 = vld [vmem:[%s503] sm:$0xff]
        %v597 = vld [vmem:[%s512] sm:$0x1]
        %p598 = scmp.eq.s32.totalorder %s41, 0
        // Predicated region
        $region97: #{tpu_custom_call.1} parent=67 // pred_check
          %p599 = pneg %p598
        $region98: #{tpu_custom_call.1} parent=67 // pred_check_branch
          %601 = sbr.rel (%p599) target = $region100
        $region99: #{tpu_custom_call.1} parent=67 // pred_region
          %v602 = vld [vmem:[%s3] sm:$0xf]
          %v603 = vld [vmem:[%s3 + $0x4] sm:$0xf]
          %v604 = vld [vmem:[%s3 + $0x8] sm:$0xf]
          %v605 = vld [vmem:[%s3 + $0xc] sm:$0xf]
          %v606 = vpack.c.bf16 %v595, %v595
          %v607 = vld [vmem:[%s4] sm:$0x1]
          %v609 = vlaneseq
          %v610 = vshrl.u32 %v609, 7
          %v611 = vsub.s32 0, %v610
          %v612 = vrot.slane %v607, %v611
          %v618 = vunpack.c.l.b16 %v602
          %v619 = vunpack.c.l.b16 %v603
          %v620 = vunpack.c.l.b16 %v604
          %v621 = vunpack.c.l.b16 %v605
          %v622 = vpack.c.b16 %v619, %v618
          %v623 = vpack.c.b16 %v621, %v620
          %vm626 = vcmask 261120
          %v628 = vsel %vm626, %v606, 0
          %630 = vmatprep.subr.bf16.mxu0 0
          %631 = vmatpush1.bf16.msra.mxu0 0
          %632 = vmatprep.subr.bf16.mxu0 0
          %633 = vmatpush1.bf16.msra.mxu0 0
          %634 = vmatprep.subr.bf16.mxu0 0
          %635 = vmatpush1.bf16.msra.mxu0 0
          %636 = vmatprep.subr.bf16.mxu0 0
          %637 = vmatpush1.bf16.msra.mxu0 0
          %638 = vmatprep.subr.bf16.mxu0 0
          %639 = vmatpush1.bf16.msra.mxu0 0
          %640 = vmatprep.subr.bf16.mxu0 0
          %641 = vmatpush1.bf16.msra.mxu0 0
          %642 = vmatprep.subr.bf16.mxu0 0
          %643 = vmatpush1.bf16.msra.mxu0 %v623
          %644 = vmatprep.subr.bf16.mxu0 0
          %645 = vmatpush1.bf16.msra.mxu0 %v622
          %646 = vmatprep.subr.bf16.mxu0 0
          %647 = vmatpush2.bf16.msra.mxu0 0
          %648 = vmatprep.subr.bf16.mxu0 0
          %649 = vmatpush2.bf16.msra.mxu0 0
          %650 = vmatprep.subr.bf16.mxu0 0
          %651 = vmatpush2.bf16.msra.mxu0 0
          %652 = vmatprep.subr.bf16.mxu0 0
          %653 = vmatpush2.bf16.msra.mxu0 0
          %654 = vmatprep.subr.bf16.mxu0 0
          %655 = vmatpush2.bf16.msra.mxu0 0
          %656 = vmatprep.subr.bf16.mxu0 0
          %657 = vmatpush2.bf16.msra.mxu0 0
          %658 = vmatprep.subr.bf16.mxu0 0
          %659 = vmatpush2.bf16.msra.mxu0 0
          %660 = vmatprep.subr.bf16.mxu0 0
          %661 = vmatpush2.bf16.msra.mxu0 0
          %662 = vmatprep.mubr.bf16.mxu0 0
          %663 = vmatmul.mubr.bf16.gmra.mxu0 %v628
          %v664 = vpop.f32.mrf.mxu0
          %v665 = vadd.f32 %v612, %v664
          %v666 = vpop.f32.mrf.mxu0
          %v667 = vpop.f32.mrf.mxu0
          %v668 = vpop.f32.mrf.mxu0
          %669 = vdwg.mxu0
          %v670 = vmul.f32 %v665, 0.35355338
          %v671 = vpack.c.bf16 %v670, %v670
          %673 = vrot.lane.b32.xlu0 %v671, 120
          %v674 = vpop.permute.xlu0 %673
          %675 = vrot.lane.b32.xlu0 %v671, 112
          %v676 = vpop.permute.xlu0 %675
          %677 = vrot.lane.b32.xlu0 %v671, 104
          %v678 = vpop.permute.xlu0 %677
          %v680 = vunpack.c.l.s4 1983009808
          %v681 = vunpack.c.0.s8 %v680
          %v682 = vlaneseq
          %v683 = vshrl.u32 %v682, 7
          %v684 = vsub.s32 %v681, %v683
          %v685 = vrot.slane %v671, %v684
          %v688 = vunpack.c.l.s4 1983009808
          %v689 = vunpack.c.0.s8 %v688
          %v690 = vlaneseq
          %v691 = vshrl.u32 %v690, 7
          %v692 = vsub.s32 %v689, %v691
          %v693 = vrot.slane %v676, %v692
          %v694 = vcombine.low %v685, %v693
          %v695 = vcombine.high %v685, %v693
          %v697 = vunpack.c.l.s4 1934713408
          %v698 = vunpack.c.0.s8 %v697
          %v699 = vlaneseq
          %v700 = vshrl.u32 %v699, 7
          %v701 = vsub.s32 %v698, %v700
          %v702 = vrot.slane %v694, %v701
          %v704 = vunpack.c.l.s4 1934713408
          %v705 = vunpack.c.0.s8 %v704
          %v706 = vlaneseq
          %v707 = vshrl.u32 %v706, 7
          %v708 = vsub.s32 %v705, %v707
          %v709 = vrot.slane %v695, %v708
          %v710 = vcombine.high %v702, 0
          %v711 = vcombine.high %v709, 0
          %v714 = vunpack.c.l.s4 1983009808
          %v715 = vunpack.c.0.s8 %v714
          %v716 = vlaneseq
          %v717 = vshrl.u32 %v716, 7
          %v718 = vsub.s32 %v715, %v717
          %v719 = vrot.slane %v674, %v718
          %v722 = vunpack.c.l.s4 1983009808
          %v723 = vunpack.c.0.s8 %v722
          %v724 = vlaneseq
          %v725 = vshrl.u32 %v724, 7
          %v726 = vsub.s32 %v723, %v725
          %v727 = vrot.slane %v678, %v726
          %v728 = vcombine.low %v719, %v727
          %v729 = vcombine.high %v719, %v727
          %v731 = vunpack.c.l.s4 1934713408
          %v732 = vunpack.c.0.s8 %v731
          %v733 = vlaneseq
          %v734 = vshrl.u32 %v733, 7
          %v735 = vsub.s32 %v732, %v734
          %v736 = vrot.slane %v728, %v735
          %v738 = vunpack.c.l.s4 1934713408
          %v739 = vunpack.c.0.s8 %v738
          %v740 = vlaneseq
          %v741 = vshrl.u32 %v740, 7
          %v742 = vsub.s32 %v739, %v741
          %v743 = vrot.slane %v729, %v742
          %v744 = vcombine.high %v736, 0
          %v745 = vcombine.high %v743, 0
          %v748 = vpack.i.b16 %v736, %v702
          %v750 = vshrl.u32 %v702, 16
          %v751 = vshrl.u32 %v736, 16
          %v752 = vpack.i.b16 %v751, %v750
          %v756 = vpack.i.b16 %v744, %v710
          %v758 = vshrl.u32 %v710, 16
          %v759 = vshrl.u32 %v744, 16
          %v760 = vpack.i.b16 %v759, %v758
          %v764 = vpack.i.b16 %v743, %v709
          %v766 = vshrl.u32 %v709, 16
          %v767 = vshrl.u32 %v743, 16
          %v768 = vpack.i.b16 %v767, %v766
          %v772 = vpack.i.b16 %v745, %v711
          %v774 = vshrl.u32 %v711, 16
          %v775 = vshrl.u32 %v745, 16
          %v776 = vpack.i.b16 %v775, %v774
          %v778 = vcombine.low %v748, %v764
          %v780 = vunpack.c.l.s4 1983009808
          %v781 = vunpack.c.0.s8 %v780
          %v782 = vlaneseq
          %v783 = vshrl.u32 %v782, 7
          %v784 = vsub.s32 %v781, %v783
          %v785 = vrot.slane %v778, %v784
          %v786 = vcombine.low %v756, %v772
          %v788 = vunpack.c.l.s4 1983009808
          %v789 = vunpack.c.0.s8 %v788
          %v790 = vlaneseq
          %v791 = vshrl.u32 %v790, 7
          %v792 = vsub.s32 %v789, %v791
          %v793 = vrot.slane %v786, %v792
          %v794 = vcombine.low %v785, %v793
          %v796 = vunpack.c.l.s4 1934713408
          %v797 = vunpack.c.0.s8 %v796
          %v798 = vlaneseq
          %v799 = vshrl.u32 %v798, 7
          %v800 = vsub.s32 %v797, %v799
          %v801 = vrot.slane %v794, %v800
          %v802 = vcombine.high %v801, 0
          %v803 = vcombine.low %v752, %v768
          %v805 = vunpack.c.l.s4 1983009808
          %v806 = vunpack.c.0.s8 %v805
          %v807 = vlaneseq
          %v808 = vshrl.u32 %v807, 7
          %v809 = vsub.s32 %v806, %v808
          %v810 = vrot.slane %v803, %v809
          %v811 = vcombine.low %v760, %v776
          %v813 = vunpack.c.l.s4 1983009808
          %v814 = vunpack.c.0.s8 %v813
          %v815 = vlaneseq
          %v816 = vshrl.u32 %v815, 7
          %v817 = vsub.s32 %v814, %v816
          %v818 = vrot.slane %v811, %v817
          %v819 = vcombine.low %v810, %v818
          %v821 = vunpack.c.l.s4 1934713408
          %v822 = vunpack.c.0.s8 %v821
          %v823 = vlaneseq
          %v824 = vshrl.u32 %v823, 7
          %v825 = vsub.s32 %v822, %v824
          %v826 = vrot.slane %v819, %v825
          %v827 = vcombine.high %v826, 0
          %v830 = vpack.i.b16 %v826, %v801
          %v832 = vshrl.u32 %v801, 16
          %v833 = vshrl.u32 %v826, 16
          %v834 = vpack.i.b16 %v833, %v832
          %v838 = vpack.i.b16 %v827, %v802
          %v840 = vshrl.u32 %v802, 16
          %v841 = vshrl.u32 %v827, 16
          %v842 = vpack.i.b16 %v841, %v840
          %vm844 = vcmask 60416
          %845 = vst.msk [vmem:[#allocation2] sm:$0xf] %vm844, %v830
          %846 = vst.msk [vmem:[#allocation2 + $0x4] sm:$0xf] %vm844, %v834
          %847 = vst.msk [vmem:[#allocation2 + $0x8] sm:$0xf] %vm844, %v838
          %848 = vst.msk [vmem:[#allocation2 + $0xc] sm:$0xf] %vm844, %v842
          %vm849 = vcmask 7168
          %850 = vst.msk [vmem:[#allocation3] sm:$0xff] %vm849, -inf
          %851 = vst.msk [vmem:[#allocation3 + $0x8] sm:$0xff] %vm849, -inf
          %852 = vst.msk [vmem:[#allocation3 + $0x10] sm:$0xff] %vm849, -inf
          %853 = vst.msk [vmem:[#allocation3 + $0x18] sm:$0xff] %vm849, -inf
          %854 = vst.msk [vmem:[#allocation4] sm:$0xff] %vm849, 0.0
          %855 = vst.msk [vmem:[#allocation4 + $0x8] sm:$0xff] %vm849, 0.0
          %856 = vst.msk [vmem:[#allocation4 + $0x10] sm:$0xff] %vm849, 0.0
          %857 = vst.msk [vmem:[#allocation4 + $0x18] sm:$0xff] %vm849, 0.0
          %vm858 = vcmask 64512
          %859 = vst.msk [vmem:[#allocation5] sm:$0xff] %vm858, 0.0
          %860 = vst.msk [vmem:[#allocation5 + $0x8] sm:$0xff] %vm858, 0.0
          %861 = vst.msk [vmem:[#allocation5 + $0x10] sm:$0xff] %vm858, 0.0
          %862 = vst.msk [vmem:[#allocation5 + $0x18] sm:$0xff] %vm858, 0.0
        $region100: #{tpu_custom_call.1} parent=67 // pred_fallthru
          _
        %v863 = vld [vmem:[#allocation11] sm:$0xf]
        %v864 = vld [vmem:[#allocation11 + $0x4] sm:$0xf]
        %v865 = vld [vmem:[#allocation11 + $0x8] sm:$0xf]
        %v866 = vld [vmem:[#allocation11 + $0xc] sm:$0xf]
        %v867 = vpack.c.bf16 %v596, %v596
        %v868 = vld [vmem:[%s6] sm:$0x1]
        %v870 = vlaneseq
        %v871 = vshrl.u32 %v870, 7
        %v872 = vsub.s32 0, %v871
        %v873 = vrot.slane %v868, %v872
        %v879 = vunpack.c.l.b16 %v863
        %v880 = vunpack.c.l.b16 %v864
        %v881 = vunpack.c.l.b16 %v865
        %v882 = vunpack.c.l.b16 %v866
        %v883 = vpack.c.b16 %v880, %v879
        %v884 = vpack.c.b16 %v882, %v881
        %vm887 = vcmask 261120
        %v889 = vsel %vm887, %v867, 0
        %891 = vmatprep.subr.bf16.mxu0 0
        %892 = vmatpush1.bf16.msra.mxu0 0
        %893 = vmatprep.subr.bf16.mxu0 0
        %894 = vmatpush1.bf16.msra.mxu0 0
        %895 = vmatprep.subr.bf16.mxu0 0
        %896 = vmatpush1.bf16.msra.mxu0 0
        %897 = vmatprep.subr.bf16.mxu0 0
        %898 = vmatpush1.bf16.msra.mxu0 0
        %899 = vmatprep.subr.bf16.mxu0 0
        %900 = vmatpush1.bf16.msra.mxu0 0
        %901 = vmatprep.subr.bf16.mxu0 0
        %902 = vmatpush1.bf16.msra.mxu0 0
        %903 = vmatprep.subr.bf16.mxu0 0
        %904 = vmatpush1.bf16.msra.mxu0 %v884
        %905 = vmatprep.subr.bf16.mxu0 0
        %906 = vmatpush1.bf16.msra.mxu0 %v883
        %907 = vmatprep.subr.bf16.mxu0 0
        %908 = vmatpush2.bf16.msra.mxu0 0
        %909 = vmatprep.subr.bf16.mxu0 0
        %910 = vmatpush2.bf16.msra.mxu0 0
        %911 = vmatprep.subr.bf16.mxu0 0
        %912 = vmatpush2.bf16.msra.mxu0 0
        %913 = vmatprep.subr.bf16.mxu0 0
        %914 = vmatpush2.bf16.msra.mxu0 0
        %915 = vmatprep.subr.bf16.mxu0 0
        %916 = vmatpush2.bf16.msra.mxu0 0
        %917 = vmatprep.subr.bf16.mxu0 0
        %918 = vmatpush2.bf16.msra.mxu0 0
        %919 = vmatprep.subr.bf16.mxu0 0
        %920 = vmatpush2.bf16.msra.mxu0 0
        %921 = vmatprep.subr.bf16.mxu0 0
        %922 = vmatpush2.bf16.msra.mxu0 0
        %923 = vmatprep.mubr.bf16.mxu0 0
        %924 = vmatmul.mubr.bf16.gmra.mxu0 %v889
        %v925 = vpop.f32.mrf.mxu0
        %v926 = vadd.f32 %v873, %v925
        %v927 = vpop.f32.mrf.mxu0
        %v928 = vpop.f32.mrf.mxu0
        %v929 = vpop.f32.mrf.mxu0
        %930 = vdwg.mxu0
        %v931 = vpack.c.bf16 %v926, %v926
        %933 = vrot.lane.b32.xlu0 %v931, 120
        %v934 = vpop.permute.xlu0 %933
        %935 = vrot.lane.b32.xlu0 %v931, 112
        %v936 = vpop.permute.xlu0 %935
        %937 = vrot.lane.b32.xlu0 %v931, 104
        %v938 = vpop.permute.xlu0 %937
        %v940 = vunpack.c.l.s4 1983009808
        %v941 = vunpack.c.0.s8 %v940
        %v942 = vlaneseq
        %v943 = vshrl.u32 %v942, 7
        %v944 = vsub.s32 %v941, %v943
        %v945 = vrot.slane %v931, %v944
        %v948 = vunpack.c.l.s4 1983009808
        %v949 = vunpack.c.0.s8 %v948
        %v950 = vlaneseq
        %v951 = vshrl.u32 %v950, 7
        %v952 = vsub.s32 %v949, %v951
        %v953 = vrot.slane %v936, %v952
        %v954 = vcombine.low %v945, %v953
        %v955 = vcombine.high %v945, %v953
        %v957 = vunpack.c.l.s4 1934713408
        %v958 = vunpack.c.0.s8 %v957
        %v959 = vlaneseq
        %v960 = vshrl.u32 %v959, 7
        %v961 = vsub.s32 %v958, %v960
        %v962 = vrot.slane %v954, %v961
        %v964 = vunpack.c.l.s4 1934713408
        %v965 = vunpack.c.0.s8 %v964
        %v966 = vlaneseq
        %v967 = vshrl.u32 %v966, 7
        %v968 = vsub.s32 %v965, %v967
        %v969 = vrot.slane %v955, %v968
        %v970 = vcombine.high %v962, 0
        %v971 = vcombine.high %v969, 0
        %v974 = vunpack.c.l.s4 1983009808
        %v975 = vunpack.c.0.s8 %v974
        %v976 = vlaneseq
        %v977 = vshrl.u32 %v976, 7
        %v978 = vsub.s32 %v975, %v977
        %v979 = vrot.slane %v934, %v978
        %v982 = vunpack.c.l.s4 1983009808
        %v983 = vunpack.c.0.s8 %v982
        %v984 = vlaneseq
        %v985 = vshrl.u32 %v984, 7
        %v986 = vsub.s32 %v983, %v985
        %v987 = vrot.slane %v938, %v986
        %v988 = vcombine.low %v979, %v987
        %v989 = vcombine.high %v979, %v987
        %v991 = vunpack.c.l.s4 1934713408
        %v992 = vunpack.c.0.s8 %v991
        %v993 = vlaneseq
        %v994 = vshrl.u32 %v993, 7
        %v995 = vsub.s32 %v992, %v994
        %v996 = vrot.slane %v988, %v995
        %v998 = vunpack.c.l.s4 1934713408
        %v999 = vunpack.c.0.s8 %v998
        %v1000 = vlaneseq
        %v1001 = vshrl.u32 %v1000, 7
        %v1002 = vsub.s32 %v999, %v1001
        %v1003 = vrot.slane %v989, %v1002
        %v1004 = vcombine.high %v996, 0
        %v1005 = vcombine.high %v1003, 0
        %v1008 = vpack.i.b16 %v996, %v962
        %v1010 = vshrl.u32 %v962, 16
        %v1011 = vshrl.u32 %v996, 16
        %v1012 = vpack.i.b16 %v1011, %v1010
        %v1016 = vpack.i.b16 %v1004, %v970
        %v1018 = vshrl.u32 %v970, 16
        %v1019 = vshrl.u32 %v1004, 16
        %v1020 = vpack.i.b16 %v1019, %v1018
        %v1024 = vpack.i.b16 %v1003, %v969
        %v1026 = vshrl.u32 %v969, 16
        %v1027 = vshrl.u32 %v1003, 16
        %v1028 = vpack.i.b16 %v1027, %v1026
        %v1032 = vpack.i.b16 %v1005, %v971
        %v1034 = vshrl.u32 %v971, 16
        %v1035 = vshrl.u32 %v1005, 16
        %v1036 = vpack.i.b16 %v1035, %v1034
        %v1038 = vcombine.low %v1008, %v1024
        %v1040 = vunpack.c.l.s4 1983009808
        %v1041 = vunpack.c.0.s8 %v1040
        %v1042 = vlaneseq
        %v1043 = vshrl.u32 %v1042, 7
        %v1044 = vsub.s32 %v1041, %v1043
        %v1045 = vrot.slane %v1038, %v1044
        %v1046 = vcombine.low %v1016, %v1032
        %v1048 = vunpack.c.l.s4 1983009808
        %v1049 = vunpack.c.0.s8 %v1048
        %v1050 = vlaneseq
        %v1051 = vshrl.u32 %v1050, 7
        %v1052 = vsub.s32 %v1049, %v1051
        %v1053 = vrot.slane %v1046, %v1052
        %v1054 = vcombine.low %v1045, %v1053
        %v1056 = vunpack.c.l.s4 1934713408
        %v1057 = vunpack.c.0.s8 %v1056
        %v1058 = vlaneseq
        %v1059 = vshrl.u32 %v1058, 7
        %v1060 = vsub.s32 %v1057, %v1059
        %v1061 = vrot.slane %v1054, %v1060
        %v1062 = vcombine.high %v1061, 0
        %v1063 = vcombine.low %v1012, %v1028
        %v1065 = vunpack.c.l.s4 1983009808
        %v1066 = vunpack.c.0.s8 %v1065
        %v1067 = vlaneseq
        %v1068 = vshrl.u32 %v1067, 7
        %v1069 = vsub.s32 %v1066, %v1068
        %v1070 = vrot.slane %v1063, %v1069
        %v1071 = vcombine.low %v1020, %v1036
        %v1073 = vunpack.c.l.s4 1983009808
        %v1074 = vunpack.c.0.s8 %v1073
        %v1075 = vlaneseq
        %v1076 = vshrl.u32 %v1075, 7
        %v1077 = vsub.s32 %v1074, %v1076
        %v1078 = vrot.slane %v1071, %v1077
        %v1079 = vcombine.low %v1070, %v1078
        %v1081 = vunpack.c.l.s4 1934713408
        %v1082 = vunpack.c.0.s8 %v1081
        %v1083 = vlaneseq
        %v1084 = vshrl.u32 %v1083, 7
        %v1085 = vsub.s32 %v1082, %v1084
        %v1086 = vrot.slane %v1079, %v1085
        %v1087 = vcombine.high %v1086, 0
        %v1090 = vpack.i.b16 %v1086, %v1061
        %v1091 = vshrl.u32 %v1061, 16
        %v1092 = vshrl.u32 %v1086, 16
        %v1093 = vpack.i.b16 %v1092, %v1091
        %v1096 = vpack.i.b16 %v1087, %v1062
        %v1097 = vshrl.u32 %v1062, 16
        %v1098 = vshrl.u32 %v1087, 16
        %v1099 = vpack.i.b16 %v1098, %v1097
        %1100 = vrot.lane.b32.xlu0 %v931, 96
        %v1101 = vpop.permute.xlu0 %1100
        %1102 = vrot.lane.b32.xlu0 %v934, 96
        %v1103 = vpop.permute.xlu0 %1102
        %1104 = vrot.lane.b32.xlu0 %v936, 96
        %v1105 = vpop.permute.xlu0 %1104
        %1106 = vrot.lane.b32.xlu0 %v938, 96
        %v1107 = vpop.permute.xlu0 %1106
        %v1110 = vunpack.c.l.s4 1983009808
        %v1111 = vunpack.c.0.s8 %v1110
        %v1112 = vlaneseq
        %v1113 = vshrl.u32 %v1112, 7
        %v1114 = vsub.s32 %v1111, %v1113
        %v1115 = vrot.slane %v1101, %v1114
        %v1118 = vunpack.c.l.s4 1983009808
        %v1119 = vunpack.c.0.s8 %v1118
        %v1120 = vlaneseq
        %v1121 = vshrl.u32 %v1120, 7
        %v1122 = vsub.s32 %v1119, %v1121
        %v1123 = vrot.slane %v1105, %v1122
        %v1124 = vcombine.low %v1115, %v1123
        %v1125 = vcombine.high %v1115, %v1123
        %v1127 = vunpack.c.l.s4 1934713408
        %v1128 = vunpack.c.0.s8 %v1127
        %v1129 = vlaneseq
        %v1130 = vshrl.u32 %v1129, 7
        %v1131 = vsub.s32 %v1128, %v1130
        %v1132 = vrot.slane %v1124, %v1131
        %v1134 = vunpack.c.l.s4 1934713408
        %v1135 = vunpack.c.0.s8 %v1134
        %v1136 = vlaneseq
        %v1137 = vshrl.u32 %v1136, 7
        %v1138 = vsub.s32 %v1135, %v1137
        %v1139 = vrot.slane %v1125, %v1138
        %v1140 = vcombine.high %v1132, 0
        %v1141 = vcombine.high %v1139, 0
        %v1144 = vunpack.c.l.s4 1983009808
        %v1145 = vunpack.c.0.s8 %v1144
        %v1146 = vlaneseq
        %v1147 = vshrl.u32 %v1146, 7
        %v1148 = vsub.s32 %v1145, %v1147
        %v1149 = vrot.slane %v1103, %v1148
        %v1152 = vunpack.c.l.s4 1983009808
        %v1153 = vunpack.c.0.s8 %v1152
        %v1154 = vlaneseq
        %v1155 = vshrl.u32 %v1154, 7
        %v1156 = vsub.s32 %v1153, %v1155
        %v1157 = vrot.slane %v1107, %v1156
        %v1158 = vcombine.low %v1149, %v1157
        %v1159 = vcombine.high %v1149, %v1157
        %v1161 = vunpack.c.l.s4 1934713408
        %v1162 = vunpack.c.0.s8 %v1161
        %v1163 = vlaneseq
        %v1164 = vshrl.u32 %v1163, 7
        %v1165 = vsub.s32 %v1162, %v1164
        %v1166 = vrot.slane %v1158, %v1165
        %v1168 = vunpack.c.l.s4 1934713408
        %v1169 = vunpack.c.0.s8 %v1168
        %v1170 = vlaneseq
        %v1171 = vshrl.u32 %v1170, 7
        %v1172 = vsub.s32 %v1169, %v1171
        %v1173 = vrot.slane %v1159, %v1172
        %v1174 = vcombine.high %v1166, 0
        %v1175 = vcombine.high %v1173, 0
        %v1178 = vpack.i.b16 %v1166, %v1132
        %v1180 = vshrl.u32 %v1132, 16
        %v1181 = vshrl.u32 %v1166, 16
        %v1182 = vpack.i.b16 %v1181, %v1180
        %v1186 = vpack.i.b16 %v1174, %v1140
        %v1188 = vshrl.u32 %v1140, 16
        %v1189 = vshrl.u32 %v1174, 16
        %v1190 = vpack.i.b16 %v1189, %v1188
        %v1194 = vpack.i.b16 %v1173, %v1139
        %v1196 = vshrl.u32 %v1139, 16
        %v1197 = vshrl.u32 %v1173, 16
        %v1198 = vpack.i.b16 %v1197, %v1196
        %v1202 = vpack.i.b16 %v1175, %v1141
        %v1204 = vshrl.u32 %v1141, 16
        %v1205 = vshrl.u32 %v1175, 16
        %v1206 = vpack.i.b16 %v1205, %v1204
        %v1208 = vcombine.low %v1178, %v1194
        %v1210 = vunpack.c.l.s4 1983009808
        %v1211 = vunpack.c.0.s8 %v1210
        %v1212 = vlaneseq
        %v1213 = vshrl.u32 %v1212, 7
        %v1214 = vsub.s32 %v1211, %v1213
        %v1215 = vrot.slane %v1208, %v1214
        %v1216 = vcombine.low %v1186, %v1202
        %v1218 = vunpack.c.l.s4 1983009808
        %v1219 = vunpack.c.0.s8 %v1218
        %v1220 = vlaneseq
        %v1221 = vshrl.u32 %v1220, 7
        %v1222 = vsub.s32 %v1219, %v1221
        %v1223 = vrot.slane %v1216, %v1222
        %v1224 = vcombine.low %v1215, %v1223
        %v1226 = vunpack.c.l.s4 1934713408
        %v1227 = vunpack.c.0.s8 %v1226
        %v1228 = vlaneseq
        %v1229 = vshrl.u32 %v1228, 7
        %v1230 = vsub.s32 %v1227, %v1229
        %v1231 = vrot.slane %v1224, %v1230
        %v1232 = vcombine.high %v1231, 0
        %v1233 = vcombine.low %v1182, %v1198
        %v1235 = vunpack.c.l.s4 1983009808
        %v1236 = vunpack.c.0.s8 %v1235
        %v1237 = vlaneseq
        %v1238 = vshrl.u32 %v1237, 7
        %v1239 = vsub.s32 %v1236, %v1238
        %v1240 = vrot.slane %v1233, %v1239
        %v1241 = vcombine.low %v1190, %v1206
        %v1243 = vunpack.c.l.s4 1983009808
        %v1244 = vunpack.c.0.s8 %v1243
        %v1245 = vlaneseq
        %v1246 = vshrl.u32 %v1245, 7
        %v1247 = vsub.s32 %v1244, %v1246
        %v1248 = vrot.slane %v1241, %v1247
        %v1249 = vcombine.low %v1240, %v1248
        %v1251 = vunpack.c.l.s4 1934713408
        %v1252 = vunpack.c.0.s8 %v1251
        %v1253 = vlaneseq
        %v1254 = vshrl.u32 %v1253, 7
        %v1255 = vsub.s32 %v1252, %v1254
        %v1256 = vrot.slane %v1249, %v1255
        %v1257 = vcombine.high %v1256, 0
        %v1260 = vpack.i.b16 %v1256, %v1231
        %v1261 = vshrl.u32 %v1231, 16
        %v1262 = vshrl.u32 %v1256, 16
        %v1263 = vpack.i.b16 %v1262, %v1261
        %v1266 = vpack.i.b16 %v1257, %v1232
        %v1267 = vshrl.u32 %v1232, 16
        %v1268 = vshrl.u32 %v1257, 16
        %v1269 = vpack.i.b16 %v1268, %v1267
        %v1270 = vld [vmem:[#allocation2] sm:$0xf]
        %v1271 = vld [vmem:[#allocation2 + $0x4] sm:$0xf]
        %v1272 = vld [vmem:[#allocation2 + $0x8] sm:$0xf]
        %v1273 = vld [vmem:[#allocation2 + $0xc] sm:$0xf]
        %vm1274 = vcmask 64512
        %v1276 = vsel %vm1274, %v1270, 0
        %v1279 = vsel %vm1274, %v1090, 0
        %1281 = vmatprep.subr.bf16.mxu0 0
        %1282 = vmatpush1.bf16.xpose.msra.mxu0 0
        %1283 = vmatprep.subr.bf16.mxu0 0
        %1284 = vmatpush1.bf16.xpose.msra.mxu0 0
        %1285 = vmatprep.subr.bf16.mxu0 0
        %1286 = vmatpush1.bf16.xpose.msra.mxu0 0
        %1287 = vmatprep.subr.bf16.mxu0 0
        %1288 = vmatpush1.bf16.xpose.msra.mxu0 0
        %1289 = vmatprep.subr.bf16.mxu0 0
        %1290 = vmatpush1.bf16.xpose.msra.mxu0 0
        %1291 = vmatprep.subr.bf16.mxu0 0
        %1292 = vmatpush1.bf16.xpose.msra.mxu0 0
        %1293 = vmatprep.subr.bf16.mxu0 0
        %1294 = vmatpush1.bf16.xpose.msra.mxu0 0
        %1295 = vmatprep.subr.bf16.mxu0 0
        %1296 = vmatpush1.bf16.xpose.msra.mxu0 %v1279
        %1297 = vmatprep.subr.bf16.mxu0 0
        %1298 = vmatpush2.bf16.xpose.msra.mxu0 0
        %1299 = vmatprep.subr.bf16.mxu0 0
        %1300 = vmatpush2.bf16.xpose.msra.mxu0 0
        %1301 = vmatprep.subr.bf16.mxu0 0
        %1302 = vmatpush2.bf16.xpose.msra.mxu0 0
        %1303 = vmatprep.subr.bf16.mxu0 0
        %1304 = vmatpush2.bf16.xpose.msra.mxu0 0
        %1305 = vmatprep.subr.bf16.mxu0 0
        %1306 = vmatpush2.bf16.xpose.msra.mxu0 0
        %1307 = vmatprep.subr.bf16.mxu0 0
        %1308 = vmatpush2.bf16.xpose.msra.mxu0 0
        %1309 = vmatprep.subr.bf16.mxu0 0
        %1310 = vmatpush2.bf16.xpose.msra.mxu0 0
        %1311 = vmatprep.subr.bf16.mxu0 0
        %1312 = vmatpush2.bf16.xpose.msra.mxu0 0
        %1313 = vmatprep.mubr.bf16.mxu0 0
        %1314 = vmatmul.mubr.bf16.gmra.mxu0 %v1276
        %v1315 = vpop.f32.mrf.mxu0
        %v1316 = vadd.f32 0.0, %v1315
        %v1317 = vpop.f32.mrf.mxu0
        %v1318 = vpop.f32.mrf.mxu0
        %v1319 = vpop.f32.mrf.mxu0
        %1320 = vdwg.mxu0
        %v1322 = vsel %vm1274, %v1271, 0
        %v1325 = vsel %vm1274, %v1093, 0
        %1327 = vmatprep.subr.bf16.mxu0 0
        %1328 = vmatpush1.bf16.xpose.msra.mxu0 0
        %1329 = vmatprep.subr.bf16.mxu0 0
        %1330 = vmatpush1.bf16.xpose.msra.mxu0 0
        %1331 = vmatprep.subr.bf16.mxu0 0
        %1332 = vmatpush1.bf16.xpose.msra.mxu0 0
        %1333 = vmatprep.subr.bf16.mxu0 0
        %1334 = vmatpush1.bf16.xpose.msra.mxu0 0
        %1335 = vmatprep.subr.bf16.mxu0 0
        %1336 = vmatpush1.bf16.xpose.msra.mxu0 0
        %1337 = vmatprep.subr.bf16.mxu0 0
        %1338 = vmatpush1.bf16.xpose.msra.mxu0 0
        %1339 = vmatprep.subr.bf16.mxu0 0
        %1340 = vmatpush1.bf16.xpose.msra.mxu0 0
        %1341 = vmatprep.subr.bf16.mxu0 0
        %1342 = vmatpush1.bf16.xpose.msra.mxu0 %v1325
        %1343 = vmatprep.subr.bf16.mxu0 0
        %1344 = vmatpush2.bf16.xpose.msra.mxu0 0
        %1345 = vmatprep.subr.bf16.mxu0 0
        %1346 = vmatpush2.bf16.xpose.msra.mxu0 0
        %1347 = vmatprep.subr.bf16.mxu0 0
        %1348 = vmatpush2.bf16.xpose.msra.mxu0 0
        %1349 = vmatprep.subr.bf16.mxu0 0
        %1350 = vmatpush2.bf16.xpose.msra.mxu0 0
        %1351 = vmatprep.subr.bf16.mxu0 0
        %1352 = vmatpush2.bf16.xpose.msra.mxu0 0
        %1353 = vmatprep.subr.bf16.mxu0 0
        %1354 = vmatpush2.bf16.xpose.msra.mxu0 0
        %1355 = vmatprep.subr.bf16.mxu0 0
        %1356 = vmatpush2.bf16.xpose.msra.mxu0 0
        %1357 = vmatprep.subr.bf16.mxu0 0
        %1358 = vmatpush2.bf16.xpose.msra.mxu0 0
        %1359 = vmatprep.mubr.bf16.mxu0 0
        %1360 = vmatmul.mubr.bf16.gmra.mxu0 %v1322
        %v1361 = vpop.f32.mrf.mxu0
        %v1362 = vadd.f32 0.0, %v1361
        %v1363 = vpop.f32.mrf.mxu0
        %v1364 = vpop.f32.mrf.mxu0
        %v1365 = vpop.f32.mrf.mxu0
        %1366 = vdwg.mxu0
        %v1368 = vsel %vm1274, %v1272, 0
        %v1371 = vsel %vm1274, %v1096, 0
        %1373 = vmatprep.subr.bf16.mxu0 0
        %1374 = vmatpush1.bf16.xpose.msra.mxu0 0
        %1375 = vmatprep.subr.bf16.mxu0 0
        %1376 = vmatpush1.bf16.xpose.msra.mxu0 0
        %1377 = vmatprep.subr.bf16.mxu0 0
        %1378 = vmatpush1.bf16.xpose.msra.mxu0 0
        %1379 = vmatprep.subr.bf16.mxu0 0
        %1380 = vmatpush1.bf16.xpose.msra.mxu0 0
        %1381 = vmatprep.subr.bf16.mxu0 0
        %1382 = vmatpush1.bf16.xpose.msra.mxu0 0
        %1383 = vmatprep.subr.bf16.mxu0 0
        %1384 = vmatpush1.bf16.xpose.msra.mxu0 0
        %1385 = vmatprep.subr.bf16.mxu0 0
        %1386 = vmatpush1.bf16.xpose.msra.mxu0 0
        %1387 = vmatprep.subr.bf16.mxu0 0
        %1388 = vmatpush1.bf16.xpose.msra.mxu0 %v1371
        %1389 = vmatprep.subr.bf16.mxu0 0
        %1390 = vmatpush2.bf16.xpose.msra.mxu0 0
        %1391 = vmatprep.subr.bf16.mxu0 0
        %1392 = vmatpush2.bf16.xpose.msra.mxu0 0
        %1393 = vmatprep.subr.bf16.mxu0 0
        %1394 = vmatpush2.bf16.xpose.msra.mxu0 0
        %1395 = vmatprep.subr.bf16.mxu0 0
        %1396 = vmatpush2.bf16.xpose.msra.mxu0 0
        %1397 = vmatprep.subr.bf16.mxu0 0
        %1398 = vmatpush2.bf16.xpose.msra.mxu0 0
        %1399 = vmatprep.subr.bf16.mxu0 0
        %1400 = vmatpush2.bf16.xpose.msra.mxu0 0
        %1401 = vmatprep.subr.bf16.mxu0 0
        %1402 = vmatpush2.bf16.xpose.msra.mxu0 0
        %1403 = vmatprep.subr.bf16.mxu0 0
        %1404 = vmatpush2.bf16.xpose.msra.mxu0 0
        %1405 = vmatprep.mubr.bf16.mxu0 0
        %1406 = vmatmul.mubr.bf16.gmra.mxu0 %v1368
        %v1407 = vpop.f32.mrf.mxu0
        %v1408 = vadd.f32 0.0, %v1407
        %v1409 = vpop.f32.mrf.mxu0
        %v1410 = vpop.f32.mrf.mxu0
        %v1411 = vpop.f32.mrf.mxu0
        %1412 = vdwg.mxu0
        %v1414 = vsel %vm1274, %v1273, 0
        %v1417 = vsel %vm1274, %v1099, 0
        %1419 = vmatprep.subr.bf16.mxu0 0
        %1420 = vmatpush1.bf16.xpose.msra.mxu0 0
        %1421 = vmatprep.subr.bf16.mxu0 0
        %1422 = vmatpush1.bf16.xpose.msra.mxu0 0
        %1423 = vmatprep.subr.bf16.mxu0 0
        %1424 = vmatpush1.bf16.xpose.msra.mxu0 0
        %1425 = vmatprep.subr.bf16.mxu0 0
        %1426 = vmatpush1.bf16.xpose.msra.mxu0 0
        %1427 = vmatprep.subr.bf16.mxu0 0
        %1428 = vmatpush1.bf16.xpose.msra.mxu0 0
        %1429 = vmatprep.subr.bf16.mxu0 0
        %1430 = vmatpush1.bf16.xpose.msra.mxu0 0
        %1431 = vmatprep.subr.bf16.mxu0 0
        %1432 = vmatpush1.bf16.xpose.msra.mxu0 0
        %1433 = vmatprep.subr.bf16.mxu0 0
        %1434 = vmatpush1.bf16.xpose.msra.mxu0 %v1417
        %1435 = vmatprep.subr.bf16.mxu0 0
        %1436 = vmatpush2.bf16.xpose.msra.mxu0 0
        %1437 = vmatprep.subr.bf16.mxu0 0
        %1438 = vmatpush2.bf16.xpose.msra.mxu0 0
        %1439 = vmatprep.subr.bf16.mxu0 0
        %1440 = vmatpush2.bf16.xpose.msra.mxu0 0
        %1441 = vmatprep.subr.bf16.mxu0 0
        %1442 = vmatpush2.bf16.xpose.msra.mxu0 0
        %1443 = vmatprep.subr.bf16.mxu0 0
        %1444 = vmatpush2.bf16.xpose.msra.mxu0 0
        %1445 = vmatprep.subr.bf16.mxu0 0
        %1446 = vmatpush2.bf16.xpose.msra.mxu0 0
        %1447 = vmatprep.subr.bf16.mxu0 0
        %1448 = vmatpush2.bf16.xpose.msra.mxu0 0
        %1449 = vmatprep.subr.bf16.mxu0 0
        %1450 = vmatpush2.bf16.xpose.msra.mxu0 0
        %1451 = vmatprep.mubr.bf16.mxu0 0
        %1452 = vmatmul.mubr.bf16.gmra.mxu0 %v1414
        %v1453 = vpop.f32.mrf.mxu0
        %v1454 = vadd.f32 0.0, %v1453
        %v1455 = vpop.f32.mrf.mxu0
        %v1456 = vpop.f32.mrf.mxu0
        %v1457 = vpop.f32.mrf.mxu0
        %1458 = vdwg.mxu0
        %vm1459 = vcmp.gt.f32.partialorder %v597, 0.0
        %v1460 = vsel %vm1459, 1, 0
        %v1461 = vlaneseq
        %v1462 = vshrl.u32 %v1461, 7
        %v1463 = vsub.s32 0, %v1462
        %v1464 = vrot.slane %v1460, %v1463
        %vm1465 = vcmp.eq.s32.totalorder %v1464, 1
        %v1466 = vsel %vm1465, %v1316, -10000.0
        %v1467 = vsel %vm1465, %v1362, -10000.0
        %v1468 = vsel %vm1465, %v1408, -10000.0
        %v1469 = vsel %vm1465, %v1454, -10000.0
        %v1470 = vld [vmem:[#allocation3] sm:$0xff]
        %v1471 = vld [vmem:[#allocation3 + $0x8] sm:$0xff]
        %v1472 = vld [vmem:[#allocation3 + $0x10] sm:$0xff]
        %v1473 = vld [vmem:[#allocation3 + $0x18] sm:$0xff]
        %v1474 = vsel %vm1274, %v1466, -inf
        %1475 = vmax.xlane.f32.xlu0 %v1474
        %v1476 = vpop.xlane.xlu0 %1475
        %v1477 = vsel %vm1274, %v1467, -inf
        %1478 = vmax.xlane.f32.xlu0 %v1477
        %v1479 = vpop.xlane.xlu0 %1478
        %v1480 = vsel %vm1274, %v1468, -inf
        %1481 = vmax.xlane.f32.xlu0 %v1480
        %v1482 = vpop.xlane.xlu0 %1481
        %v1483 = vsel %vm1274, %v1469, -inf
        %1484 = vmax.xlane.f32.xlu0 %v1483
        %v1485 = vpop.xlane.xlu0 %1484
        %v1486 = vmax.f32 %v1470, %v1476
        %v1487 = vmax.f32 %v1471, %v1479
        %v1488 = vmax.f32 %v1472, %v1482
        %v1489 = vmax.f32 %v1473, %v1485
        %v1490 = vsub.f32 %v1470, %v1486
        %v1491 = vsub.f32 %v1471, %v1487
        %v1492 = vsub.f32 %v1472, %v1488
        %v1493 = vsub.f32 %v1473, %v1489
        %v1494 = vmul.f32 %v1490, 1.442695
        %v1495 = vpow.pop %v1494
        %v1496 = vmul.f32 %v1491, 1.442695
        %v1497 = vpow.pop %v1496
        %v1498 = vmul.f32 %v1492, 1.442695
        %v1499 = vpow.pop %v1498
        %v1500 = vmul.f32 %v1493, 1.442695
        %v1501 = vpow.pop %v1500
        %1503 = vset.pattern.permute.xlu0 0
        %1504 = vperm.xlu0 %1503, %v1486
        %v1505 = vpop.permute.xlu0 %1504
        %1508 = vset.pattern.permute.xlu0 0
        %1509 = vperm.xlu0 %1508, %v1487
        %v1510 = vpop.permute.xlu0 %1509
        %1513 = vset.pattern.permute.xlu0 0
        %1514 = vperm.xlu0 %1513, %v1488
        %v1515 = vpop.permute.xlu0 %1514
        %1518 = vset.pattern.permute.xlu0 0
        %1519 = vperm.xlu0 %1518, %v1489
        %v1520 = vpop.permute.xlu0 %1519
        %v1522 = vsub.f32 %v1466, %v1505
        %v1523 = vsub.f32 %v1467, %v1510
        %v1524 = vsub.f32 %v1468, %v1515
        %v1525 = vsub.f32 %v1469, %v1520
        %v1526 = vmul.f32 %v1522, 1.442695
        %v1527 = vpow.pop %v1526
        %v1528 = vmul.f32 %v1523, 1.442695
        %v1529 = vpow.pop %v1528
        %v1530 = vmul.f32 %v1524, 1.442695
        %v1531 = vpow.pop %v1530
        %v1532 = vmul.f32 %v1525, 1.442695
        %v1533 = vpow.pop %v1532
        %v1534 = vld [vmem:[#allocation4] sm:$0xff]
        %v1535 = vld [vmem:[#allocation4 + $0x8] sm:$0xff]
        %v1536 = vld [vmem:[#allocation4 + $0x10] sm:$0xff]
        %v1537 = vld [vmem:[#allocation4 + $0x18] sm:$0xff]
        %v1538 = vmul.f32 %v1495, %v1534
        %v1539 = vmul.f32 %v1497, %v1535
        %v1540 = vmul.f32 %v1499, %v1536
        %v1541 = vmul.f32 %v1501, %v1537
        %v1542 = vsel %vm1274, %v1527, 0.0
        %1543 = vadd.xlane.f32.xlu0 %v1542
        %v1544 = vpop.xlane.xlu0 %1543
        %v1545 = vsel %vm1274, %v1529, 0.0
        %1546 = vadd.xlane.f32.xlu0 %v1545
        %v1547 = vpop.xlane.xlu0 %1546
        %v1548 = vsel %vm1274, %v1531, 0.0
        %1549 = vadd.xlane.f32.xlu0 %v1548
        %v1550 = vpop.xlane.xlu0 %1549
        %v1551 = vsel %vm1274, %v1533, 0.0
        %1552 = vadd.xlane.f32.xlu0 %v1551
        %v1553 = vpop.xlane.xlu0 %1552
        %v1554 = vadd.f32 %v1538, %v1544
        %v1555 = vadd.f32 %v1539, %v1547
        %v1556 = vadd.f32 %v1540, %v1550
        %v1557 = vadd.f32 %v1541, %v1553
        %vm1558 = vcmask 7168
        %1559 = vst.msk [vmem:[#allocation4] sm:$0xff] %vm1558, %v1554
        %1560 = vst.msk [vmem:[#allocation4 + $0x8] sm:$0xff] %vm1558, %v1555
        %1561 = vst.msk [vmem:[#allocation4 + $0x10] sm:$0xff] %vm1558, %v1556
        %1562 = vst.msk [vmem:[#allocation4 + $0x18] sm:$0xff] %vm1558, %v1557
        %v1563 = vld [vmem:[#allocation5] sm:$0xff]
        %v1564 = vld [vmem:[#allocation5 + $0x8] sm:$0xff]
        %v1565 = vld [vmem:[#allocation5 + $0x10] sm:$0xff]
        %v1566 = vld [vmem:[#allocation5 + $0x18] sm:$0xff]
        %1568 = vset.pattern.permute.xlu0 0
        %1569 = vperm.xlu0 %1568, %v1495
        %v1570 = vpop.permute.xlu0 %1569
        %1573 = vset.pattern.permute.xlu0 0
        %1574 = vperm.xlu0 %1573, %v1497
        %v1575 = vpop.permute.xlu0 %1574
        %1578 = vset.pattern.permute.xlu0 0
        %1579 = vperm.xlu0 %1578, %v1499
        %v1580 = vpop.permute.xlu0 %1579
        %1583 = vset.pattern.permute.xlu0 0
        %1584 = vperm.xlu0 %1583, %v1501
        %v1585 = vpop.permute.xlu0 %1584
        %v1587 = vmul.f32 %v1570, %v1563
        %v1588 = vmul.f32 %v1575, %v1564
        %v1589 = vmul.f32 %v1580, %v1565
        %v1590 = vmul.f32 %v1585, %v1566
        %v1591 = vpack.c.bf16 %v1527, %v1527
        %v1592 = vpack.c.bf16 %v1529, %v1529
        %v1593 = vpack.c.bf16 %v1531, %v1531
        %v1594 = vpack.c.bf16 %v1533, %v1533
        %v1596 = vsel %vm1274, %v1591, 0
        %vm1598 = vcmask 1043456
        %v1600 = vsel %vm1598, %v1260, 0
        %1602 = vmatprep.subr.bf16.mxu0 0
        %1603 = vmatpush1.bf16.msra.mxu0 0
        %1604 = vmatprep.subr.bf16.mxu0 0
        %1605 = vmatpush1.bf16.msra.mxu0 0
        %1606 = vmatprep.subr.bf16.mxu0 0
        %1607 = vmatpush1.bf16.msra.mxu0 0
        %1608 = vmatprep.subr.bf16.mxu0 0
        %1609 = vmatpush1.bf16.msra.mxu0 0
        %1610 = vmatprep.subr.bf16.mxu0 0
        %1611 = vmatpush1.bf16.msra.mxu0 0
        %1612 = vmatprep.subr.bf16.mxu0 0
        %1613 = vmatpush1.bf16.msra.mxu0 0
        %1614 = vmatprep.subr.bf16.mxu0 0
        %1615 = vmatpush1.bf16.msra.mxu0 0
        %1616 = vmatprep.subr.bf16.mxu0 0
        %1617 = vmatpush1.bf16.msra.mxu0 %v1600
        %1618 = vmatprep.subr.bf16.mxu0 0
        %1619 = vmatpush2.bf16.msra.mxu0 0
        %1620 = vmatprep.subr.bf16.mxu0 0
        %1621 = vmatpush2.bf16.msra.mxu0 0
        %1622 = vmatprep.subr.bf16.mxu0 0
        %1623 = vmatpush2.bf16.msra.mxu0 0
        %1624 = vmatprep.subr.bf16.mxu0 0
        %1625 = vmatpush2.bf16.msra.mxu0 0
        %1626 = vmatprep.subr.bf16.mxu0 0
        %1627 = vmatpush2.bf16.msra.mxu0 0
        %1628 = vmatprep.subr.bf16.mxu0 0
        %1629 = vmatpush2.bf16.msra.mxu0 0
        %1630 = vmatprep.subr.bf16.mxu0 0
        %1631 = vmatpush2.bf16.msra.mxu0 0
        %1632 = vmatprep.subr.bf16.mxu0 0
        %1633 = vmatpush2.bf16.msra.mxu0 0
        %1634 = vmatprep.mubr.bf16.mxu0 0
        %1635 = vmatmul.mubr.bf16.gmra.mxu0 %v1596
        %v1636 = vpop.f32.mrf.mxu0
        %v1637 = vadd.f32 0.0, %v1636
        %v1638 = vpop.f32.mrf.mxu0
        %v1639 = vpop.f32.mrf.mxu0
        %v1640 = vpop.f32.mrf.mxu0
        %1641 = vdwg.mxu0
        %v1643 = vsel %vm1274, %v1592, 0
        %v1646 = vsel %vm1598, %v1263, 0
        %1648 = vmatprep.subr.bf16.mxu0 0
        %1649 = vmatpush1.bf16.msra.mxu0 0
        %1650 = vmatprep.subr.bf16.mxu0 0
        %1651 = vmatpush1.bf16.msra.mxu0 0
        %1652 = vmatprep.subr.bf16.mxu0 0
        %1653 = vmatpush1.bf16.msra.mxu0 0
        %1654 = vmatprep.subr.bf16.mxu0 0
        %1655 = vmatpush1.bf16.msra.mxu0 0
        %1656 = vmatprep.subr.bf16.mxu0 0
        %1657 = vmatpush1.bf16.msra.mxu0 0
        %1658 = vmatprep.subr.bf16.mxu0 0
        %1659 = vmatpush1.bf16.msra.mxu0 0
        %1660 = vmatprep.subr.bf16.mxu0 0
        %1661 = vmatpush1.bf16.msra.mxu0 0
        %1662 = vmatprep.subr.bf16.mxu0 0
        %1663 = vmatpush1.bf16.msra.mxu0 %v1646
        %1664 = vmatprep.subr.bf16.mxu0 0
        %1665 = vmatpush2.bf16.msra.mxu0 0
        %1666 = vmatprep.subr.bf16.mxu0 0
        %1667 = vmatpush2.bf16.msra.mxu0 0
        %1668 = vmatprep.subr.bf16.mxu0 0
        %1669 = vmatpush2.bf16.msra.mxu0 0
        %1670 = vmatprep.subr.bf16.mxu0 0
        %1671 = vmatpush2.bf16.msra.mxu0 0
        %1672 = vmatprep.subr.bf16.mxu0 0
        %1673 = vmatpush2.bf16.msra.mxu0 0
        %1674 = vmatprep.subr.bf16.mxu0 0
        %1675 = vmatpush2.bf16.msra.mxu0 0
        %1676 = vmatprep.subr.bf16.mxu0 0
        %1677 = vmatpush2.bf16.msra.mxu0 0
        %1678 = vmatprep.subr.bf16.mxu0 0
        %1679 = vmatpush2.bf16.msra.mxu0 0
        %1680 = vmatprep.mubr.bf16.mxu0 0
        %1681 = vmatmul.mubr.bf16.gmra.mxu0 %v1643
        %v1682 = vpop.f32.mrf.mxu0
        %v1683 = vadd.f32 0.0, %v1682
        %v1684 = vpop.f32.mrf.mxu0
        %v1685 = vpop.f32.mrf.mxu0
        %v1686 = vpop.f32.mrf.mxu0
        %1687 = vdwg.mxu0
        %v1689 = vsel %vm1274, %v1593, 0
        %v1692 = vsel %vm1598, %v1266, 0
        %1694 = vmatprep.subr.bf16.mxu0 0
        %1695 = vmatpush1.bf16.msra.mxu0 0
        %1696 = vmatprep.subr.bf16.mxu0 0
        %1697 = vmatpush1.bf16.msra.mxu0 0
        %1698 = vmatprep.subr.bf16.mxu0 0
        %1699 = vmatpush1.bf16.msra.mxu0 0
        %1700 = vmatprep.subr.bf16.mxu0 0
        %1701 = vmatpush1.bf16.msra.mxu0 0
        %1702 = vmatprep.subr.bf16.mxu0 0
        %1703 = vmatpush1.bf16.msra.mxu0 0
        %1704 = vmatprep.subr.bf16.mxu0 0
        %1705 = vmatpush1.bf16.msra.mxu0 0
        %1706 = vmatprep.subr.bf16.mxu0 0
        %1707 = vmatpush1.bf16.msra.mxu0 0
        %1708 = vmatprep.subr.bf16.mxu0 0
        %1709 = vmatpush1.bf16.msra.mxu0 %v1692
        %1710 = vmatprep.subr.bf16.mxu0 0
        %1711 = vmatpush2.bf16.msra.mxu0 0
        %1712 = vmatprep.subr.bf16.mxu0 0
        %1713 = vmatpush2.bf16.msra.mxu0 0
        %1714 = vmatprep.subr.bf16.mxu0 0
        %1715 = vmatpush2.bf16.msra.mxu0 0
        %1716 = vmatprep.subr.bf16.mxu0 0
        %1717 = vmatpush2.bf16.msra.mxu0 0
        %1718 = vmatprep.subr.bf16.mxu0 0
        %1719 = vmatpush2.bf16.msra.mxu0 0
        %1720 = vmatprep.subr.bf16.mxu0 0
        %1721 = vmatpush2.bf16.msra.mxu0 0
        %1722 = vmatprep.subr.bf16.mxu0 0
        %1723 = vmatpush2.bf16.msra.mxu0 0
        %1724 = vmatprep.subr.bf16.mxu0 0
        %1725 = vmatpush2.bf16.msra.mxu0 0
        %1726 = vmatprep.mubr.bf16.mxu0 0
        %1727 = vmatmul.mubr.bf16.gmra.mxu0 %v1689
        %v1728 = vpop.f32.mrf.mxu0
        %v1729 = vadd.f32 0.0, %v1728
        %v1730 = vpop.f32.mrf.mxu0
        %v1731 = vpop.f32.mrf.mxu0
        %v1732 = vpop.f32.mrf.mxu0
        %1733 = vdwg.mxu0
        %v1735 = vsel %vm1274, %v1594, 0
        %v1738 = vsel %vm1598, %v1269, 0
        %1740 = vmatprep.subr.bf16.mxu0 0
        %1741 = vmatpush1.bf16.msra.mxu0 0
        %1742 = vmatprep.subr.bf16.mxu0 0
        %1743 = vmatpush1.bf16.msra.mxu0 0
        %1744 = vmatprep.subr.bf16.mxu0 0
        %1745 = vmatpush1.bf16.msra.mxu0 0
        %1746 = vmatprep.subr.bf16.mxu0 0
        %1747 = vmatpush1.bf16.msra.mxu0 0
        %1748 = vmatprep.subr.bf16.mxu0 0
        %1749 = vmatpush1.bf16.msra.mxu0 0
        %1750 = vmatprep.subr.bf16.mxu0 0
        %1751 = vmatpush1.bf16.msra.mxu0 0
        %1752 = vmatprep.subr.bf16.mxu0 0
        %1753 = vmatpush1.bf16.msra.mxu0 0
        %1754 = vmatprep.subr.bf16.mxu0 0
        %1755 = vmatpush1.bf16.msra.mxu0 %v1738
        %1756 = vmatprep.subr.bf16.mxu0 0
        %1757 = vmatpush2.bf16.msra.mxu0 0
        %1758 = vmatprep.subr.bf16.mxu0 0
        %1759 = vmatpush2.bf16.msra.mxu0 0
        %1760 = vmatprep.subr.bf16.mxu0 0
        %1761 = vmatpush2.bf16.msra.mxu0 0
        %1762 = vmatprep.subr.bf16.mxu0 0
        %1763 = vmatpush2.bf16.msra.mxu0 0
        %1764 = vmatprep.subr.bf16.mxu0 0
        %1765 = vmatpush2.bf16.msra.mxu0 0
        %1766 = vmatprep.subr.bf16.mxu0 0
        %1767 = vmatpush2.bf16.msra.mxu0 0
        %1768 = vmatprep.subr.bf16.mxu0 0
        %1769 = vmatpush2.bf16.msra.mxu0 0
        %1770 = vmatprep.subr.bf16.mxu0 0
        %1771 = vmatpush2.bf16.msra.mxu0 0
        %1772 = vmatprep.mubr.bf16.mxu0 0
        %1773 = vmatmul.mubr.bf16.gmra.mxu0 %v1735
        %v1774 = vpop.f32.mrf.mxu0
        %v1775 = vadd.f32 0.0, %v1774
        %v1776 = vpop.f32.mrf.mxu0
        %v1777 = vpop.f32.mrf.mxu0
        %v1778 = vpop.f32.mrf.mxu0
        %1779 = vdwg.mxu0
        %v1780 = vadd.f32 %v1587, %v1637
        %v1781 = vadd.f32 %v1588, %v1683
        %v1782 = vadd.f32 %v1589, %v1729
        %v1783 = vadd.f32 %v1590, %v1775
        %1784 = vst.msk [vmem:[#allocation5] sm:$0xff] %vm1274, %v1780
        %1785 = vst.msk [vmem:[#allocation5 + $0x8] sm:$0xff] %vm1274, %v1781
        %1786 = vst.msk [vmem:[#allocation5 + $0x10] sm:$0xff] %vm1274, %v1782
        %1787 = vst.msk [vmem:[#allocation5 + $0x18] sm:$0xff] %vm1274, %v1783
        %1788 = vst.msk [vmem:[#allocation3] sm:$0xff] %vm1558, %v1486
        %1789 = vst.msk [vmem:[#allocation3 + $0x8] sm:$0xff] %vm1558, %v1487
        %1790 = vst.msk [vmem:[#allocation3 + $0x10] sm:$0xff] %vm1558, %v1488
        %1791 = vst.msk [vmem:[#allocation3 + $0x18] sm:$0xff] %vm1558, %v1489
        %p1792 = scmp.eq.s32.totalorder %s41, 1
        // Predicated region
        $region101: #{tpu_custom_call.1} parent=67 // pred_check
          %p1793 = pneg %p1792
        $region102: #{tpu_custom_call.1} parent=67 // pred_check_branch
          %1795 = sbr.rel (%p1793) target = $region104
        $region103: #{tpu_custom_call.1} parent=67 // pred_region
          %v1796 = vld [vmem:[#allocation17] sm:$0x1]
          %v1797 = vld [vmem:[#allocation17 + $0x1] sm:$0x1]
          %v1798 = vld [vmem:[#allocation17 + $0x2] sm:$0x1]
          %v1799 = vld [vmem:[#allocation17 + $0x3] sm:$0x1]
          %v1800 = vld [vmem:[#allocation17 + $0x4] sm:$0x1]
          %v1801 = vld [vmem:[#allocation17 + $0x5] sm:$0x1]
          %v1802 = vld [vmem:[#allocation5] sm:$0xff]
          %v1803 = vld [vmem:[#allocation5 + $0x8] sm:$0xff]
          %v1804 = vld [vmem:[#allocation5 + $0x10] sm:$0xff]
          %v1805 = vld [vmem:[#allocation5 + $0x18] sm:$0xff]
          %v1806 = vld [vmem:[#allocation4] sm:$0xff]
          %v1807 = vld [vmem:[#allocation4 + $0x8] sm:$0xff]
          %v1808 = vld [vmem:[#allocation4 + $0x10] sm:$0xff]
          %v1809 = vld [vmem:[#allocation4 + $0x18] sm:$0xff]
          %v1810 = vrcp.pop %v1806
          %v1811 = vrcp.pop %v1807
          %v1812 = vrcp.pop %v1808
          %v1813 = vrcp.pop %v1809
          %1815 = vset.pattern.permute.xlu0 0
          %1816 = vperm.xlu0 %1815, %v1810
          %v1817 = vpop.permute.xlu0 %1816
          %1820 = vset.pattern.permute.xlu0 0
          %1821 = vperm.xlu0 %1820, %v1811
          %v1822 = vpop.permute.xlu0 %1821
          %1825 = vset.pattern.permute.xlu0 0
          %1826 = vperm.xlu0 %1825, %v1812
          %v1827 = vpop.permute.xlu0 %1826
          %1830 = vset.pattern.permute.xlu0 0
          %1831 = vperm.xlu0 %1830, %v1813
          %v1832 = vpop.permute.xlu0 %1831
          %v1834 = vmul.f32 %v1802, %v1817
          %v1835 = vmul.f32 %v1803, %v1822
          %v1836 = vmul.f32 %v1804, %v1827
          %v1837 = vmul.f32 %v1805, %v1832
          %v1838 = vpack.c.bf16 %v1834, %v1834
          %v1839 = vpack.c.bf16 %v1835, %v1835
          %v1840 = vpack.c.bf16 %v1836, %v1836
          %v1841 = vpack.c.bf16 %v1837, %v1837
          %v1842 = vld [vmem:[#allocation12] sm:$0xf]
          %v1843 = vld [vmem:[#allocation12 + $0x4] sm:$0xf]
          %v1844 = vld [vmem:[#allocation12 + $0x8] sm:$0xf]
          %v1845 = vld [vmem:[#allocation12 + $0xc] sm:$0xf]
          %v1847 = vsel %vm1274, %v1838, 0
          %v1850 = vsel %vm1598, %v1842, 0
          %1852 = vmatprep.subr.bf16.mxu0 0
          %1853 = vmatpush1.bf16.msra.mxu0 0
          %1854 = vmatprep.subr.bf16.mxu0 0
          %1855 = vmatpush1.bf16.msra.mxu0 0
          %1856 = vmatprep.subr.bf16.mxu0 0
          %1857 = vmatpush1.bf16.msra.mxu0 0
          %1858 = vmatprep.subr.bf16.mxu0 0
          %1859 = vmatpush1.bf16.msra.mxu0 0
          %1860 = vmatprep.subr.bf16.mxu0 0
          %1861 = vmatpush1.bf16.msra.mxu0 0
          %1862 = vmatprep.subr.bf16.mxu0 0
          %1863 = vmatpush1.bf16.msra.mxu0 0
          %1864 = vmatprep.subr.bf16.mxu0 0
          %1865 = vmatpush1.bf16.msra.mxu0 0
          %1866 = vmatprep.subr.bf16.mxu0 0
          %1867 = vmatpush1.bf16.msra.mxu0 %v1850
          %1868 = vmatprep.subr.bf16.mxu0 0
          %1869 = vmatpush2.bf16.msra.mxu0 0
          %1870 = vmatprep.subr.bf16.mxu0 0
          %1871 = vmatpush2.bf16.msra.mxu0 0
          %1872 = vmatprep.subr.bf16.mxu0 0
          %1873 = vmatpush2.bf16.msra.mxu0 0
          %1874 = vmatprep.subr.bf16.mxu0 0
          %1875 = vmatpush2.bf16.msra.mxu0 0
          %1876 = vmatprep.subr.bf16.mxu0 0
          %1877 = vmatpush2.bf16.msra.mxu0 0
          %1878 = vmatprep.subr.bf16.mxu0 0
          %1879 = vmatpush2.bf16.msra.mxu0 0
          %1880 = vmatprep.subr.bf16.mxu0 0
          %1881 = vmatpush2.bf16.msra.mxu0 0
          %1882 = vmatprep.subr.bf16.mxu0 0
          %1883 = vmatpush2.bf16.msra.mxu0 0
          %1884 = vmatprep.mubr.bf16.mxu0 0
          %1885 = vmatmul.mubr.bf16.gmra.mxu0 %v1847
          %v1886 = vpop.f32.mrf.mxu0
          %v1887 = vadd.f32 0.0, %v1886
          %v1888 = vpop.f32.mrf.mxu0
          %v1889 = vpop.f32.mrf.mxu0
          %v1890 = vpop.f32.mrf.mxu0
          %1891 = vdwg.mxu0
          %v1893 = vsel %vm1274, %v1839, 0
          %v1896 = vsel %vm1598, %v1843, 0
          %1898 = vmatprep.subr.bf16.mxu0 0
          %1899 = vmatpush1.bf16.msra.mxu0 0
          %1900 = vmatprep.subr.bf16.mxu0 0
          %1901 = vmatpush1.bf16.msra.mxu0 0
          %1902 = vmatprep.subr.bf16.mxu0 0
          %1903 = vmatpush1.bf16.msra.mxu0 0
          %1904 = vmatprep.subr.bf16.mxu0 0
          %1905 = vmatpush1.bf16.msra.mxu0 0
          %1906 = vmatprep.subr.bf16.mxu0 0
          %1907 = vmatpush1.bf16.msra.mxu0 0
          %1908 = vmatprep.subr.bf16.mxu0 0
          %1909 = vmatpush1.bf16.msra.mxu0 0
          %1910 = vmatprep.subr.bf16.mxu0 0
          %1911 = vmatpush1.bf16.msra.mxu0 0
          %1912 = vmatprep.subr.bf16.mxu0 0
          %1913 = vmatpush1.bf16.msra.mxu0 %v1896
          %1914 = vmatprep.subr.bf16.mxu0 0
          %1915 = vmatpush2.bf16.msra.mxu0 0
          %1916 = vmatprep.subr.bf16.mxu0 0
          %1917 = vmatpush2.bf16.msra.mxu0 0
          %1918 = vmatprep.subr.bf16.mxu0 0
          %1919 = vmatpush2.bf16.msra.mxu0 0
          %1920 = vmatprep.subr.bf16.mxu0 0
          %1921 = vmatpush2.bf16.msra.mxu0 0
          %1922 = vmatprep.subr.bf16.mxu0 0
          %1923 = vmatpush2.bf16.msra.mxu0 0
          %1924 = vmatprep.subr.bf16.mxu0 0
          %1925 = vmatpush2.bf16.msra.mxu0 0
          %1926 = vmatprep.subr.bf16.mxu0 0
          %1927 = vmatpush2.bf16.msra.mxu0 0
          %1928 = vmatprep.subr.bf16.mxu0 0
          %1929 = vmatpush2.bf16.msra.mxu0 0
          %1930 = vmatprep.mubr.bf16.mxu0 0
          %1931 = vmatmul.mubr.bf16.gmra.mxu0 %v1893
          %v1932 = vpop.f32.mrf.mxu0
          %v1933 = vadd.f32 0.0, %v1932
          %v1934 = vpop.f32.mrf.mxu0
          %v1935 = vpop.f32.mrf.mxu0
          %v1936 = vpop.f32.mrf.mxu0
          %1937 = vdwg.mxu0
          %v1939 = vsel %vm1274, %v1840, 0
          %v1942 = vsel %vm1598, %v1844, 0
          %1944 = vmatprep.subr.bf16.mxu0 0
          %1945 = vmatpush1.bf16.msra.mxu0 0
          %1946 = vmatprep.subr.bf16.mxu0 0
          %1947 = vmatpush1.bf16.msra.mxu0 0
          %1948 = vmatprep.subr.bf16.mxu0 0
          %1949 = vmatpush1.bf16.msra.mxu0 0
          %1950 = vmatprep.subr.bf16.mxu0 0
          %1951 = vmatpush1.bf16.msra.mxu0 0
          %1952 = vmatprep.subr.bf16.mxu0 0
          %1953 = vmatpush1.bf16.msra.mxu0 0
          %1954 = vmatprep.subr.bf16.mxu0 0
          %1955 = vmatpush1.bf16.msra.mxu0 0
          %1956 = vmatprep.subr.bf16.mxu0 0
          %1957 = vmatpush1.bf16.msra.mxu0 0
          %1958 = vmatprep.subr.bf16.mxu0 0
          %1959 = vmatpush1.bf16.msra.mxu0 %v1942
          %1960 = vmatprep.subr.bf16.mxu0 0
          %1961 = vmatpush2.bf16.msra.mxu0 0
          %1962 = vmatprep.subr.bf16.mxu0 0
          %1963 = vmatpush2.bf16.msra.mxu0 0
          %1964 = vmatprep.subr.bf16.mxu0 0
          %1965 = vmatpush2.bf16.msra.mxu0 0
          %1966 = vmatprep.subr.bf16.mxu0 0
          %1967 = vmatpush2.bf16.msra.mxu0 0
          %1968 = vmatprep.subr.bf16.mxu0 0
          %1969 = vmatpush2.bf16.msra.mxu0 0
          %1970 = vmatprep.subr.bf16.mxu0 0
          %1971 = vmatpush2.bf16.msra.mxu0 0
          %1972 = vmatprep.subr.bf16.mxu0 0
          %1973 = vmatpush2.bf16.msra.mxu0 0
          %1974 = vmatprep.subr.bf16.mxu0 0
          %1975 = vmatpush2.bf16.msra.mxu0 0
          %1976 = vmatprep.mubr.bf16.mxu0 0
          %1977 = vmatmul.mubr.bf16.gmra.mxu0 %v1939
          %v1978 = vpop.f32.mrf.mxu0
          %v1979 = vadd.f32 0.0, %v1978
          %v1980 = vpop.f32.mrf.mxu0
          %v1981 = vpop.f32.mrf.mxu0
          %v1982 = vpop.f32.mrf.mxu0
          %1983 = vdwg.mxu0
          %v1985 = vsel %vm1274, %v1841, 0
          %v1988 = vsel %vm1598, %v1845, 0
          %1990 = vmatprep.subr.bf16.mxu0 0
          %1991 = vmatpush1.bf16.msra.mxu0 0
          %1992 = vmatprep.subr.bf16.mxu0 0
          %1993 = vmatpush1.bf16.msra.mxu0 0
          %1994 = vmatprep.subr.bf16.mxu0 0
          %1995 = vmatpush1.bf16.msra.mxu0 0
          %1996 = vmatprep.subr.bf16.mxu0 0
          %1997 = vmatpush1.bf16.msra.mxu0 0
          %1998 = vmatprep.subr.bf16.mxu0 0
          %1999 = vmatpush1.bf16.msra.mxu0 0
          %2000 = vmatprep.subr.bf16.mxu0 0
          %2001 = vmatpush1.bf16.msra.mxu0 0
          %2002 = vmatprep.subr.bf16.mxu0 0
          %2003 = vmatpush1.bf16.msra.mxu0 0
          %2004 = vmatprep.subr.bf16.mxu0 0
          %2005 = vmatpush1.bf16.msra.mxu0 %v1988
          %2006 = vmatprep.subr.bf16.mxu0 0
          %2007 = vmatpush2.bf16.msra.mxu0 0
          %2008 = vmatprep.subr.bf16.mxu0 0
          %2009 = vmatpush2.bf16.msra.mxu0 0
          %2010 = vmatprep.subr.bf16.mxu0 0
          %2011 = vmatpush2.bf16.msra.mxu0 0
          %2012 = vmatprep.subr.bf16.mxu0 0
          %2013 = vmatpush2.bf16.msra.mxu0 0
          %2014 = vmatprep.subr.bf16.mxu0 0
          %2015 = vmatpush2.bf16.msra.mxu0 0
          %2016 = vmatprep.subr.bf16.mxu0 0
          %2017 = vmatpush2.bf16.msra.mxu0 0
          %2018 = vmatprep.subr.bf16.mxu0 0
          %2019 = vmatpush2.bf16.msra.mxu0 0
          %2020 = vmatprep.subr.bf16.mxu0 0
          %2021 = vmatpush2.bf16.msra.mxu0 0
          %2022 = vmatprep.mubr.bf16.mxu0 0
          %2023 = vmatmul.mubr.bf16.gmra.mxu0 %v1985
          %v2024 = vpop.f32.mrf.mxu0
          %v2025 = vadd.f32 0.0, %v2024
          %v2026 = vpop.f32.mrf.mxu0
          %v2027 = vpop.f32.mrf.mxu0
          %v2028 = vpop.f32.mrf.mxu0
          %2029 = vdwg.mxu0
          %v2030 = vsel %vm887, %v1887, 0.0
          %v2031 = vsel %vm887, %v1933, 0.0
          %v2032 = vadd.f32 %v2030, %v2031
          %v2033 = vsel %vm887, %v1979, 0.0
          %v2034 = vadd.f32 %v2032, %v2033
          %v2035 = vsel %vm887, %v2025, 0.0
          %v2036 = vadd.f32 %v2034, %v2035
          %v2037 = vlaneseq
          %v2038 = vshrl.u32 %v2037, 7
          %v2039 = vsub.s32 0, %v2038
          %v2040 = vrot.slane %v1796, %v2039
          %v2041 = vadd.f32 %v2036, %v2040
          %v2042 = vadd.f32 %v2041, %v595
          %v2043 = vsel %vm887, %v2042, 0.0
          %2044 = vadd.xlane.f32.xlu0 %v2043
          %v2045 = vpop.xlane.xlu0 %2044
          %v2046 = vrcp.pop 32.0
          %v2047 = vmul.f32 %v2045, %v2046
          %v2048 = vsub.f32 %v2042, %v2047
          %v2049 = vmul.f32 %v2048, %v2048
          %v2050 = vsel %vm887, %v2049, 0.0
          %2051 = vadd.xlane.f32.xlu0 %v2050
          %v2052 = vpop.xlane.xlu0 %2051
          %v2053 = vmul.f32 %v2052, %v2046
          %v2054 = vadd.f32 %v2053, 1e-05
          %v2055 = vrsqrt.pop %v2054
          %v2056 = vmul.f32 %v2048, %v2055
          %v2057 = vlaneseq
          %v2058 = vshrl.u32 %v2057, 7
          %v2059 = vsub.s32 0, %v2058
          %v2060 = vrot.slane %v1798, %v2059
          %v2061 = vmul.f32 %v2060, %v2056
          %v2062 = vlaneseq
          %v2063 = vshrl.u32 %v2062, 7
          %v2064 = vsub.s32 0, %v2063
          %v2065 = vrot.slane %v1799, %v2064
          %v2066 = vadd.f32 %v2061, %v2065
          %v2067 = vld [vmem:[#allocation14] sm:$0xf]
          %v2068 = vld [vmem:[#allocation14 + $0x4] sm:$0xf]
          %v2069 = vld [vmem:[#allocation14 + $0x8] sm:$0xf]
          %v2070 = vld [vmem:[#allocation14 + $0xc] sm:$0xf]
          %v2071 = vpack.c.bf16 %v2066, %v2066
          %v2072 = vld [vmem:[#allocation15] sm:$0x1]
          %v2074 = vlaneseq
          %v2075 = vshrl.u32 %v2074, 7
          %v2076 = vsub.s32 0, %v2075
          %v2077 = vrot.slane %v2072, %v2076
          %v2083 = vunpack.c.l.b16 %v2067
          %v2084 = vunpack.c.l.b16 %v2068
          %v2085 = vunpack.c.l.b16 %v2069
          %v2086 = vunpack.c.l.b16 %v2070
          %v2087 = vpack.c.b16 %v2084, %v2083
          %v2088 = vpack.c.b16 %v2086, %v2085
          %v2092 = vsel %vm887, %v2071, 0
          %2094 = vmatprep.subr.bf16.mxu0 0
          %2095 = vmatpush1.bf16.msra.mxu0 0
          %2096 = vmatprep.subr.bf16.mxu0 0
          %2097 = vmatpush1.bf16.msra.mxu0 0
          %2098 = vmatprep.subr.bf16.mxu0 0
          %2099 = vmatpush1.bf16.msra.mxu0 0
          %2100 = vmatprep.subr.bf16.mxu0 0
          %2101 = vmatpush1.bf16.msra.mxu0 0
          %2102 = vmatprep.subr.bf16.mxu0 0
          %2103 = vmatpush1.bf16.msra.mxu0 0
          %2104 = vmatprep.subr.bf16.mxu0 0
          %2105 = vmatpush1.bf16.msra.mxu0 0
          %2106 = vmatprep.subr.bf16.mxu0 0
          %2107 = vmatpush1.bf16.msra.mxu0 %v2088
          %2108 = vmatprep.subr.bf16.mxu0 0
          %2109 = vmatpush1.bf16.msra.mxu0 %v2087
          %2110 = vmatprep.subr.bf16.mxu0 0
          %2111 = vmatpush2.bf16.msra.mxu0 0
          %2112 = vmatprep.subr.bf16.mxu0 0
          %2113 = vmatpush2.bf16.msra.mxu0 0
          %2114 = vmatprep.subr.bf16.mxu0 0
          %2115 = vmatpush2.bf16.msra.mxu0 0
          %2116 = vmatprep.subr.bf16.mxu0 0
          %2117 = vmatpush2.bf16.msra.mxu0 0
          %2118 = vmatprep.subr.bf16.mxu0 0
          %2119 = vmatpush2.bf16.msra.mxu0 0
          %2120 = vmatprep.subr.bf16.mxu0 0
          %2121 = vmatpush2.bf16.msra.mxu0 0
          %2122 = vmatprep.subr.bf16.mxu0 0
          %2123 = vmatpush2.bf16.msra.mxu0 0
          %2124 = vmatprep.subr.bf16.mxu0 0
          %2125 = vmatpush2.bf16.msra.mxu0 0
          %2126 = vmatprep.mubr.bf16.mxu0 0
          %2127 = vmatmul.mubr.bf16.gmra.mxu0 %v2092
          %v2128 = vpop.f32.mrf.mxu0
          %v2129 = vadd.f32 %v2077, %v2128
          %v2130 = vpop.f32.mrf.mxu0
          %v2131 = vpop.f32.mrf.mxu0
          %v2132 = vpop.f32.mrf.mxu0
          %2133 = vdwg.mxu0
          %v2134 = vmax.f32 %v2129, 0.0
          %v2135 = vld [vmem:[%s10] sm:$0xf]
          %v2136 = vld [vmem:[%s10 + $0x4] sm:$0xf]
          %v2137 = vld [vmem:[%s10 + $0x8] sm:$0xf]
          %v2138 = vld [vmem:[%s10 + $0xc] sm:$0xf]
          %v2139 = vld [vmem:[%s10 + $0x10] sm:$0xf]
          %v2140 = vld [vmem:[%s10 + $0x14] sm:$0xf]
          %v2141 = vld [vmem:[%s10 + $0x18] sm:$0xf]
          %v2142 = vld [vmem:[%s10 + $0x1c] sm:$0xf]
          %v2143 = vpack.c.bf16 %v2134, %v2134
          %v2144 = vlaneseq
          %v2145 = vshrl.u32 %v2144, 7
          %v2146 = vsub.s32 0, %v2145
          %v2147 = vrot.slane %v1797, %v2146
          %v2156 = vunpack.c.l.b16 %v2135
          %v2157 = vunpack.c.l.b16 %v2136
          %v2158 = vunpack.c.l.b16 %v2137
          %v2159 = vunpack.c.l.b16 %v2138
          %v2160 = vunpack.c.l.b16 %v2139
          %v2161 = vunpack.c.l.b16 %v2140
          %v2162 = vunpack.c.l.b16 %v2141
          %v2163 = vunpack.c.l.b16 %v2142
          %v2164 = vpack.c.b16 %v2157, %v2156
          %v2165 = vpack.c.b16 %v2159, %v2158
          %v2166 = vpack.c.b16 %v2161, %v2160
          %v2167 = vpack.c.b16 %v2163, %v2162
          %vm2172 = vcmask 523264
          %v2174 = vsel %vm2172, %v2143, 0
          %2176 = vmatprep.subr.bf16.mxu0 0
          %2177 = vmatpush1.bf16.msra.mxu0 0
          %2178 = vmatprep.subr.bf16.mxu0 0
          %2179 = vmatpush1.bf16.msra.mxu0 0
          %2180 = vmatprep.subr.bf16.mxu0 0
          %2181 = vmatpush1.bf16.msra.mxu0 0
          %2182 = vmatprep.subr.bf16.mxu0 0
          %2183 = vmatpush1.bf16.msra.mxu0 0
          %2184 = vmatprep.subr.bf16.mxu0 0
          %2185 = vmatpush1.bf16.msra.mxu0 %v2167
          %2186 = vmatprep.subr.bf16.mxu0 0
          %2187 = vmatpush1.bf16.msra.mxu0 %v2166
          %2188 = vmatprep.subr.bf16.mxu0 0
          %2189 = vmatpush1.bf16.msra.mxu0 %v2165
          %2190 = vmatprep.subr.bf16.mxu0 0
          %2191 = vmatpush1.bf16.msra.mxu0 %v2164
          %2192 = vmatprep.subr.bf16.mxu0 0
          %2193 = vmatpush2.bf16.msra.mxu0 0
          %2194 = vmatprep.subr.bf16.mxu0 0
          %2195 = vmatpush2.bf16.msra.mxu0 0
          %2196 = vmatprep.subr.bf16.mxu0 0
          %2197 = vmatpush2.bf16.msra.mxu0 0
          %2198 = vmatprep.subr.bf16.mxu0 0
          %2199 = vmatpush2.bf16.msra.mxu0 0
          %2200 = vmatprep.subr.bf16.mxu0 0
          %2201 = vmatpush2.bf16.msra.mxu0 0
          %2202 = vmatprep.subr.bf16.mxu0 0
          %2203 = vmatpush2.bf16.msra.mxu0 0
          %2204 = vmatprep.subr.bf16.mxu0 0
          %2205 = vmatpush2.bf16.msra.mxu0 0
          %2206 = vmatprep.subr.bf16.mxu0 0
          %2207 = vmatpush2.bf16.msra.mxu0 0
          %2208 = vmatprep.mubr.bf16.mxu0 0
          %2209 = vmatmul.mubr.bf16.gmra.mxu0 %v2174
          %v2210 = vpop.f32.mrf.mxu0
          %v2211 = vadd.f32 %v2147, %v2210
          %v2212 = vpop.f32.mrf.mxu0
          %v2213 = vpop.f32.mrf.mxu0
          %v2214 = vpop.f32.mrf.mxu0
          %2215 = vdwg.mxu0
          %v2216 = vadd.f32 %v2211, %v2066
          %v2217 = vsel %vm887, %v2216, 0.0
          %2218 = vadd.xlane.f32.xlu0 %v2217
          %v2219 = vpop.xlane.xlu0 %2218
          %v2220 = vmul.f32 %v2219, %v2046
          %v2221 = vsub.f32 %v2216, %v2220
          %v2222 = vmul.f32 %v2221, %v2221
          %v2223 = vsel %vm887, %v2222, 0.0
          %2224 = vadd.xlane.f32.xlu0 %v2223
          %v2225 = vpop.xlane.xlu0 %2224
          %v2226 = vmul.f32 %v2225, %v2046
          %v2227 = vadd.f32 %v2226, 1e-05
          %v2228 = vrsqrt.pop %v2227
          %v2229 = vmul.f32 %v2221, %v2228
          %v2230 = vlaneseq
          %v2231 = vshrl.u32 %v2230, 7
          %v2232 = vsub.s32 0, %v2231
          %v2233 = vrot.slane %v1800, %v2232
          %v2234 = vmul.f32 %v2233, %v2229
          %v2235 = vlaneseq
          %v2236 = vshrl.u32 %v2235, 7
          %v2237 = vsub.s32 0, %v2236
          %v2238 = vrot.slane %v1801, %v2237
          %v2239 = vadd.f32 %v2234, %v2238
          %2240 = vst.msk [vmem:[%s585] sm:$0xff] %vm887, %v2239
        $region104: #{tpu_custom_call.1} parent=67 // pred_fallthru
          _
        %s2241 = sand.u32 %s336, 1
        %s2242 = scalar_lea.sflag [#allocation8], %s2241
        %s2243 = sand.u32 %s336, 1
        %s2244 = smul.addr %s2243, 8
        %s2245 = scalar_lea.vmem [#allocation18], %s2244
        // Predicated region
        $region105: #{tpu_custom_call.1} parent=67 // pred_check
          %p2246 = pneg %p346
        $region106: #{tpu_custom_call.1} parent=67 // pred_check_branch
          %2248 = sbr.rel (%p2246) target = $region108
        $region107: #{tpu_custom_call.1} parent=67 // pred_region
          %s2250 = ssub.s32 128, 128
          %2251 = vsyncadd %s2242, %s2250
          %s2252 = smul.addr %s39, 2
          %s2253 = sadd.s32 %s40, %s2252
          %s2254 = smul.addr %s2253, 128
          %s2255 = scalar_lea.hbm %s12, %s2254
          %s2257 = sshll.u32 %s2245, 4
          %s2258 = int_to_ptr.vmem [resolvable:$true] %s2257
          %2260 = dma.vmem_to_hbm [thread:$0]  %s2258, 128, %s2255, %s2242
        $region108: #{tpu_custom_call.1} parent=67 // pred_fallthru
          _
      $region68: #{tpu_custom_call.1} parent=5 // pred_fallthru
        _
      %p2261 = scmp.le.s32.totalorder 2, %s29
      // Predicated region
      $region109: #{tpu_custom_call.1} parent=5 // pred_check
        %p2262 = pneg %p2261
      $region110: #{tpu_custom_call.1} parent=5 // pred_check_branch
        %2264 = sbr.rel (%p2262) target = $region112
      $region111: #{tpu_custom_call.1} parent=5 // pred_region
        %s2265 = ssub.s32 %s29, 2
        // Predicated region
        $region113: #{tpu_custom_call.1} parent=111 // pred_check
          %p2266 = pneg %p352
        $region114: #{tpu_custom_call.1} parent=111 // pred_check_branch
          %2268 = sbr.rel (%p2266) target = $region116
        $region115: #{tpu_custom_call.1} parent=111 // pred_region
          %s2269 = sand.u32 %s337, 1
          %s2270 = scalar_lea.sflag [#allocation8], %s2269
          %s2271 = sand.u32 %s337, 1
          %s2272 = smul.addr %s2271, 8
          %s2273 = scalar_lea.vmem [#allocation18], %s2272
          %2274 = dma.done %s2270, 128
        $region116: #{tpu_custom_call.1} parent=111 // pred_fallthru
          _
      $region112: #{tpu_custom_call.1} parent=5 // pred_fallthru
        _
    $region6: #{tpu_custom_call.1} parent=1 // loop_footer
      %s33 = sadd.s32 1, %s29
    $region7: #{tpu_custom_call.1} parent=1 // loop_footer_branch
      %28 = sbr.rel target = $region3
    $region8: #{tpu_custom_call.1} parent=1 // loop_exit
      _
    %2275 = vsyncpa [#allocation7], 1
    %s2276 = scalar_lea.sflag [#allocation7], 1
    %2277 = vsyncpa %s2276, 1
    %2278 = vsyncpa [#allocation10], 1
    %s2279 = scalar_lea.sflag [#allocation10], 1
    %2280 = vsyncpa %s2279, 1
    %2281 = vsyncpa [#allocation13], 1
    %2282 = vsyncpa [#allocation16], 1
    %2283 = vsyncpa [#allocation8], 1
    %s2284 = scalar_lea.sflag [#allocation8], 1
    %2285 = vsyncpa %s2284, 1

// kernel: tpu_custom_call.1
$region0: #{tpu_custom_call.1}
  #allocation0 [shape = 'u32[]', space=smem, size = 0x4, offset = 0x4, fixed_abs, tag = 'smem constant byte address 0x4 - core index']
  #allocation1 [shape = 'u32[144,128]{1,0:T(1,128)}', space=vmem, size = 0x12000, scoped, tag = 'internal scratch']
  #allocation2 [shape = 'bf16[4,8,8]{2,1,0:T(8,128)(2,1)}', space=vmem, size = 0x2000, scoped, tag = 'scratch operand']
  #allocation3 [shape = 'f32[4,8,1]{2,1,0:T(8,128)}', space=vmem, size = 0x4000, scoped, tag = 'scratch operand']
  #allocation4 [shape = 'f32[4,8,1]{2,1,0:T(8,128)}', space=vmem, size = 0x4000, scoped, tag = 'scratch operand']
  #allocation5 [shape = 'f32[4,8,8]{2,1,0:T(8,128)}', space=vmem, size = 0x4000, scoped, tag = 'scratch operand']
  %s0 = inlined_call_operand.vmem [shape: f32[2,16,32], index: 0, kind: input, shape index: {}]
  %s1 = inlined_call_operand.hbm [shape: f32[2,16,32], index: 1, kind: input, shape index: {}]
  %s2 = inlined_call_operand.hbm [shape: f32[2,2,8,8], index: 2, kind: input, shape index: {}]
  %s3 = inlined_call_operand.vmem [shape: bf16[32,32], index: 3, kind: input, shape index: {}]
  %s4 = inlined_call_operand.vmem [shape: f32[1,32], index: 4, kind: input, shape index: {}]
  %s5 = inlined_call_operand.hbm [shape: bf16[32,64], index: 5, kind: input, shape index: {}]
  %s6 = inlined_call_operand.vmem [shape: f32[1,64], index: 6, kind: input, shape index: {}]
  %s7 = inlined_call_operand.hbm [shape: bf16[4,8,32], index: 7, kind: input, shape index: {}]
  %s8 = inlined_call_operand.hbm [shape: bf16[32,64], index: 8, kind: input, shape index: {}]
  %s9 = inlined_call_operand.hbm [shape: f32[1,64], index: 9, kind: input, shape index: {}]
  %s10 = inlined_call_operand.vmem [shape: bf16[64,32], index: 10, kind: input, shape index: {}]
  %s11 = inlined_call_operand.hbm [shape: f32[6,32], index: 11, kind: input, shape index: {}]
  %s12 = inlined_call_operand.hbm [shape: f32[2,16,32], index: 12, kind: output, shape index: {}]
  %s13 = sld [smem:[#allocation0]]
  $region117: #{tpu_custom_call.1} parent=0
    _
  %s15 = ssub.s32 1, %s13
  %s16 = scalar_select 0, %s15, %s13
  $region1: #{tpu_custom_call.1} parent=0
    #allocation6 [shape = 'u8[8192]{0}', space=vmem, size = 0x2000, scoped, tag = 'input window, operand 1']
    #allocation7 [shape = 's32[2]{0}', space=sflag, size = 0x8, scoped, tag = 'scoped memory for tpu_custom_call.1']
    #allocation8 [shape = 's32[2]{0}', space=sflag, size = 0x8, scoped, tag = 'scoped memory for tpu_custom_call.1']
    #allocation9 [shape = 'u8[8192]{0}', space=vmem, size = 0x2000, scoped, tag = 'input window, operand 2']
    #allocation10 [shape = 's32[2]{0}', space=sflag, size = 0x8, scoped, tag = 'scoped memory for tpu_custom_call.1']
    #allocation11 [shape = 'u8[8192]{0}', space=vmem, size = 0x2000, scoped, tag = 'input window, operand 5, single buffered']
    #allocation12 [shape = 'u8[8192]{0}', space=vmem, size = 0x2000, scoped, tag = 'input window, operand 7, single buffered']
    #allocation13 [shape = 's32[1]{0}', space=sflag, size = 0x4, scoped, tag = 'scoped memory for tpu_custom_call.1']
    #allocation14 [shape = 'u8[8192]{0}', space=vmem, size = 0x2000, scoped, tag = 'input window, operand 8, single buffered']
    #allocation15 [shape = 'u8[512]{0}', space=vmem, size = 0x400, scoped, tag = 'input window, operand 9, single buffered']
    #allocation16 [shape = 's32[1]{0}', space=sflag, size = 0x4, scoped, tag = 'scoped memory for tpu_custom_call.1']
    #allocation17 [shape = 'u8[4096]{0}', space=vmem, size = 0x1000, scoped, tag = 'input window, operand 11, single buffered']
    #allocation18 [shape = 'u8[8192]{0}', space=vmem, size = 0x2000, scoped, tag = 'output window, operand 0']
    %17 = vsyncpa [#allocation7], 0
    %s18 = scalar_lea.sflag [#allocation7], 1
    %19 = vsyncpa %s18, 0
    %20 = vsyncpa [#allocation10], 0
    %s21 = scalar_lea.sflag [#allocation10], 1
    %22 = vsyncpa %s21, 0
    %23 = vsyncpa [#allocation13], 0
    %24 = vsyncpa [#allocation16], 0
    %25 = vsyncpa [#allocation8], 0
    %s26 = scalar_lea.sflag [#allocation8], 1
    %27 = vsyncpa %s26, 0
    loop: start=0, step=1, limit=10
    $region2: #{tpu_custom_call.1} parent=1 // loop_pre_header
      _
    $region3: #{tpu_custom_call.1} parent=1 // loop_header
      %s29 = sphi 0, %s33
      %p30 = scmp.ge.s32.totalorder %s29, 10
      %s36 = sphi 0, %s55
      %s37 = sphi 0, %s51
      %s38 = sphi 0, %s47
      %s39 = sphi 0, %s36
      %s40 = sphi 0, %s37
      %s41 = sphi 0, %s38
      %s42 = sphi 0, %s39
      %s43 = sphi 0, %s40
      %s44 = sphi 0, %s41
      %s60 = sphi 0, %s62
      %s63 = sphi 0, %s60
      %s64 = sphi 0, %s63
      %s80 = sphi 0, %s64
      %s88 = sphi 0, %s90
      %s91 = sphi 0, %s88
      %s92 = sphi 0, %s91
      %s108 = sphi 0, %s92
      %s116 = sphi 0, %s118
      %s119 = sphi 0, %s116
      %s120 = sphi 0, %s119
      %s136 = sphi 0, %s120
      %s140 = sphi 0, %s140
      %s142 = sphi 0, %s140
      %s143 = sphi 0, %s142
      %s157 = sphi 0, %s143
      %s161 = sphi 0, %s161
      %s163 = sphi 0, %s161
      %s164 = sphi 0, %s163
      %s178 = sphi 0, %s164
      %s182 = sphi 0, %s182
      %s184 = sphi 0, %s182
      %s185 = sphi 0, %s184
      %s199 = sphi 0, %s185
      %s203 = sphi 0, %s203
      %s205 = sphi 0, %s203
      %s206 = sphi 0, %s205
      %s220 = sphi 0, %s206
      %s224 = sphi 0, %s224
      %s226 = sphi 0, %s224
      %s227 = sphi 0, %s226
      %s241 = sphi 0, %s227
      %s245 = sphi 0, %s245
      %s247 = sphi 0, %s245
      %s248 = sphi 0, %s247
      %s262 = sphi 0, %s248
      %s266 = sphi 0, %s266
      %s268 = sphi 0, %s266
      %s269 = sphi 0, %s268
      %s283 = sphi 0, %s269
      %s287 = sphi 0, %s287
      %s289 = sphi 0, %s287
      %s290 = sphi 0, %s289
      %s304 = sphi 0, %s290
      %s308 = sphi 0, %s308
      %s310 = sphi 0, %s308
      %s311 = sphi 0, %s310
      %s325 = sphi 0, %s311
      %s333 = sphi 0, %s335
      %s336 = sphi 0, %s333
      %s337 = sphi 0, %s336
      %s353 = sphi 0, %s337
    $region4: #{tpu_custom_call.1} parent=1 // loop_header_branch
      %32 = sbr.rel (%p30) target = $region8
    $region5: #{tpu_custom_call.1} parent=1 // loop_body
      %s34 = ssub.s32 %s29, 1
      %s35 = ssub.s32 %s29, 2
      %s45 = sadd.s32 1, %s38
      %p46 = scmp.ge.s32.totalorder %s45, 2
      %s47 = scalar_select %p46, 0, %s45
      %s48 = sadd.s32 1, %s37
      %s49 = scalar_select %p46, %s48, %s37
      %p50 = scmp.ge.s32.totalorder %s49, 2
      %s51 = scalar_select %p50, 0, %s49
      %s52 = sadd.s32 1, %s36
      %s53 = scalar_select %p50, %s52, %s36
      %p54 = scmp.ge.s32.totalorder %s53, 2
      %s55 = scalar_select %p54, 0, %s53
      %s56 = ssub.s32 %s36, %s55
      %s57 = ssub.s32 %s37, %s51
      %s58 = sor.u32 %s56, %s57
      %p59 = scmp.eq.s32.totalorder %s58, 0
      %s61 = sadd.s32 %s60, 1
      %s62 = scalar_select %p59, %s60, %s61
      %p65 = pneg %p59
      %p66 = scmp.eq.s32.totalorder %s29, 7
      %p67 = por %p65, %p66
      %p68 = scmp.ne.s32.totalorder %s60, %s63
      %p69 = scmp.eq.s32.totalorder %s29, 0
      %p70 = por %p68, %p69
      %p71 = scmp.ne.s32.totalorder %s60, %s63
      %p72 = scmp.eq.s32.totalorder %s34, 7
      %p73 = por %p71, %p72
      %p74 = scmp.ne.s32.totalorder %s63, %s64
      %p75 = scmp.eq.s32.totalorder %s34, 0
      %p76 = por %p74, %p75
      %p77 = scmp.ne.s32.totalorder %s63, %s64
      %p78 = scmp.eq.s32.totalorder %s35, 7
      %p79 = por %p77, %p78
      %p81 = scmp.ne.s32.totalorder %s64, %s80
      %p82 = scmp.eq.s32.totalorder %s35, 0
      %p83 = por %p81, %p82
      %s84 = ssub.s32 %s36, %s55
      %s85 = ssub.s32 %s38, %s47
      %s86 = sor.u32 %s84, %s85
      %p87 = scmp.eq.s32.totalorder %s86, 0
      %s89 = sadd.s32 %s88, 1
      %s90 = scalar_select %p87, %s88, %s89
      %p93 = pneg %p87
      %p94 = scmp.eq.s32.totalorder %s29, 7
      %p95 = por %p93, %p94
      %p96 = scmp.ne.s32.totalorder %s88, %s91
      %p97 = scmp.eq.s32.totalorder %s29, 0
      %p98 = por %p96, %p97
      %p99 = scmp.ne.s32.totalorder %s88, %s91
      %p100 = scmp.eq.s32.totalorder %s34, 7
      %p101 = por %p99, %p100
      %p102 = scmp.ne.s32.totalorder %s91, %s92
      %p103 = scmp.eq.s32.totalorder %s34, 0
      %p104 = por %p102, %p103
      %p105 = scmp.ne.s32.totalorder %s91, %s92
      %p106 = scmp.eq.s32.totalorder %s35, 7
      %p107 = por %p105, %p106
      %p109 = scmp.ne.s32.totalorder %s92, %s108
      %p110 = scmp.eq.s32.totalorder %s35, 0
      %p111 = por %p109, %p110
      %s112 = ssub.s32 %s36, %s55
      %s113 = ssub.s32 %s38, %s47
      %s114 = sor.u32 %s112, %s113
      %p115 = scmp.eq.s32.totalorder %s114, 0
      %s117 = sadd.s32 %s116, 1
      %s118 = scalar_select %p115, %s116, %s117
      %p121 = pneg %p115
      %p122 = scmp.eq.s32.totalorder %s29, 7
      %p123 = por %p121, %p122
      %p124 = scmp.ne.s32.totalorder %s116, %s119
      %p125 = scmp.eq.s32.totalorder %s29, 0
      %p126 = por %p124, %p125
      %p127 = scmp.ne.s32.totalorder %s116, %s119
      %p128 = scmp.eq.s32.totalorder %s34, 7
      %p129 = por %p127, %p128
      %p130 = scmp.ne.s32.totalorder %s119, %s120
      %p131 = scmp.eq.s32.totalorder %s34, 0
      %p132 = por %p130, %p131
      %p133 = scmp.ne.s32.totalorder %s119, %s120
      %p134 = scmp.eq.s32.totalorder %s35, 7
      %p135 = por %p133, %p134
      %p137 = scmp.ne.s32.totalorder %s120, %s136
      %p138 = scmp.eq.s32.totalorder %s35, 0
      %p139 = por %p137, %p138
      %s141 = sadd.s32 %s140, 1
      %p144 = scmp.eq.s32.totalorder %s29, 7
      %p145 = scmp.ne.s32.totalorder %s140, %s142
      %p146 = scmp.eq.s32.totalorder %s29, 0
      %p147 = por %p145, %p146
      %p148 = scmp.ne.s32.totalorder %s140, %s142
      %p149 = scmp.eq.s32.totalorder %s34, 7
      %p150 = por %p148, %p149
      %p151 = scmp.ne.s32.totalorder %s142, %s143
      %p152 = scmp.eq.s32.totalorder %s34, 0
      %p153 = por %p151, %p152
      %p154 = scmp.ne.s32.totalorder %s142, %s143
      %p155 = scmp.eq.s32.totalorder %s35, 7
      %p156 = por %p154, %p155
      %p158 = scmp.ne.s32.totalorder %s143, %s157
      %p159 = scmp.eq.s32.totalorder %s35, 0
      %p160 = por %p158, %p159
      %s162 = sadd.s32 %s161, 1
      %p165 = scmp.eq.s32.totalorder %s29, 7
      %p166 = scmp.ne.s32.totalorder %s161, %s163
      %p167 = scmp.eq.s32.totalorder %s29, 0
      %p168 = por %p166, %p167
      %p169 = scmp.ne.s32.totalorder %s161, %s163
      %p170 = scmp.eq.s32.totalorder %s34, 7
      %p171 = por %p169, %p170
      %p172 = scmp.ne.s32.totalorder %s163, %s164
      %p173 = scmp.eq.s32.totalorder %s34, 0
      %p174 = por %p172, %p173
      %p175 = scmp.ne.s32.totalorder %s163, %s164
      %p176 = scmp.eq.s32.totalorder %s35, 7
      %p177 = por %p175, %p176
      %p179 = scmp.ne.s32.totalorder %s164, %s178
      %p180 = scmp.eq.s32.totalorder %s35, 0
      %p181 = por %p179, %p180
      %s183 = sadd.s32 %s182, 1
      %p186 = scmp.eq.s32.totalorder %s29, 7
      %p187 = scmp.ne.s32.totalorder %s182, %s184
      %p188 = scmp.eq.s32.totalorder %s29, 0
      %p189 = por %p187, %p188
      %p190 = scmp.ne.s32.totalorder %s182, %s184
      %p191 = scmp.eq.s32.totalorder %s34, 7
      %p192 = por %p190, %p191
      %p193 = scmp.ne.s32.totalorder %s184, %s185
      %p194 = scmp.eq.s32.totalorder %s34, 0
      %p195 = por %p193, %p194
      %p196 = scmp.ne.s32.totalorder %s184, %s185
      %p197 = scmp.eq.s32.totalorder %s35, 7
      %p198 = por %p196, %p197
      %p200 = scmp.ne.s32.totalorder %s185, %s199
      %p201 = scmp.eq.s32.totalorder %s35, 0
      %p202 = por %p200, %p201
      %s204 = sadd.s32 %s203, 1
      %p207 = scmp.eq.s32.totalorder %s29, 7
      %p208 = scmp.ne.s32.totalorder %s203, %s205
      %p209 = scmp.eq.s32.totalorder %s29, 0
      %p210 = por %p208, %p209
      %p211 = scmp.ne.s32.totalorder %s203, %s205
      %p212 = scmp.eq.s32.totalorder %s34, 7
      %p213 = por %p211, %p212
      %p214 = scmp.ne.s32.totalorder %s205, %s206
      %p215 = scmp.eq.s32.totalorder %s34, 0
      %p216 = por %p214, %p215
      %p217 = scmp.ne.s32.totalorder %s205, %s206
      %p218 = scmp.eq.s32.totalorder %s35, 7
      %p219 = por %p217, %p218
      %p221 = scmp.ne.s32.totalorder %s206, %s220
      %p222 = scmp.eq.s32.totalorder %s35, 0
      %p223 = por %p221, %p222
      %s225 = sadd.s32 %s224, 1
      %p228 = scmp.eq.s32.totalorder %s29, 7
      %p229 = scmp.ne.s32.totalorder %s224, %s226
      %p230 = scmp.eq.s32.totalorder %s29, 0
      %p231 = por %p229, %p230
      %p232 = scmp.ne.s32.totalorder %s224, %s226
      %p233 = scmp.eq.s32.totalorder %s34, 7
      %p234 = por %p232, %p233
      %p235 = scmp.ne.s32.totalorder %s226, %s227
      %p236 = scmp.eq.s32.totalorder %s34, 0
      %p237 = por %p235, %p236
      %p238 = scmp.ne.s32.totalorder %s226, %s227
      %p239 = scmp.eq.s32.totalorder %s35, 7
      %p240 = por %p238, %p239
      %p242 = scmp.ne.s32.totalorder %s227, %s241
      %p243 = scmp.eq.s32.totalorder %s35, 0
      %p244 = por %p242, %p243
      %s246 = sadd.s32 %s245, 1
      %p249 = scmp.eq.s32.totalorder %s29, 7
      %p250 = scmp.ne.s32.totalorder %s245, %s247
      %p251 = scmp.eq.s32.totalorder %s29, 0
      %p252 = por %p250, %p251
      %p253 = scmp.ne.s32.totalorder %s245, %s247
      %p254 = scmp.eq.s32.totalorder %s34, 7
      %p255 = por %p253, %p254
      %p256 = scmp.ne.s32.totalorder %s247, %s248
      %p257 = scmp.eq.s32.totalorder %s34, 0
      %p258 = por %p256, %p257
      %p259 = scmp.ne.s32.totalorder %s247, %s248
      %p260 = scmp.eq.s32.totalorder %s35, 7
      %p261 = por %p259, %p260
      %p263 = scmp.ne.s32.totalorder %s248, %s262
      %p264 = scmp.eq.s32.totalorder %s35, 0
      %p265 = por %p263, %p264
      %s267 = sadd.s32 %s266, 1
      %p270 = scmp.eq.s32.totalorder %s29, 7
      %p271 = scmp.ne.s32.totalorder %s266, %s268
      %p272 = scmp.eq.s32.totalorder %s29, 0
      %p273 = por %p271, %p272
      %p274 = scmp.ne.s32.totalorder %s266, %s268
      %p275 = scmp.eq.s32.totalorder %s34, 7
      %p276 = por %p274, %p275
      %p277 = scmp.ne.s32.totalorder %s268, %s269
      %p278 = scmp.eq.s32.totalorder %s34, 0
      %p279 = por %p277, %p278
      %p280 = scmp.ne.s32.totalorder %s268, %s269
      %p281 = scmp.eq.s32.totalorder %s35, 7
      %p282 = por %p280, %p281
      %p284 = scmp.ne.s32.totalorder %s269, %s283
      %p285 = scmp.eq.s32.totalorder %s35, 0
      %p286 = por %p284, %p285
      %s288 = sadd.s32 %s287, 1
      %p291 = scmp.eq.s32.totalorder %s29, 7
      %p292 = scmp.ne.s32.totalorder %s287, %s289
      %p293 = scmp.eq.s32.totalorder %s29, 0
      %p294 = por %p292, %p293
      %p295 = scmp.ne.s32.totalorder %s287, %s289
      %p296 = scmp.eq.s32.totalorder %s34, 7
      %p297 = por %p295, %p296
      %p298 = scmp.ne.s32.totalorder %s289, %s290
      %p299 = scmp.eq.s32.totalorder %s34, 0
      %p300 = por %p298, %p299
      %p301 = scmp.ne.s32.totalorder %s289, %s290
      %p302 = scmp.eq.s32.totalorder %s35, 7
      %p303 = por %p301, %p302
      %p305 = scmp.ne.s32.totalorder %s290, %s304
      %p306 = scmp.eq.s32.totalorder %s35, 0
      %p307 = por %p305, %p306
      %s309 = sadd.s32 %s308, 1
      %p312 = scmp.eq.s32.totalorder %s29, 7
      %p313 = scmp.ne.s32.totalorder %s308, %s310
      %p314 = scmp.eq.s32.totalorder %s29, 0
      %p315 = por %p313, %p314
      %p316 = scmp.ne.s32.totalorder %s308, %s310
      %p317 = scmp.eq.s32.totalorder %s34, 7
      %p318 = por %p316, %p317
      %p319 = scmp.ne.s32.totalorder %s310, %s311
      %p320 = scmp.eq.s32.totalorder %s34, 0
      %p321 = por %p319, %p320
      %p322 = scmp.ne.s32.totalorder %s310, %s311
      %p323 = scmp.eq.s32.totalorder %s35, 7
      %p324 = por %p322, %p323
      %p326 = scmp.ne.s32.totalorder %s311, %s325
      %p327 = scmp.eq.s32.totalorder %s35, 0
      %p328 = por %p326, %p327
      %s329 = ssub.s32 %s36, %s55
      %s330 = ssub.s32 %s37, %s51
      %s331 = sor.u32 %s329, %s330
      %p332 = scmp.eq.s32.totalorder %s331, 0
      %s334 = sadd.s32 %s333, 1
      %s335 = scalar_select %p332, %s333, %s334
      %p338 = pneg %p332
      %p339 = scmp.eq.s32.totalorder %s29, 7
      %p340 = por %p338, %p339
      %p341 = scmp.ne.s32.totalorder %s333, %s336
      %p342 = scmp.eq.s32.totalorder %s29, 0
      %p343 = por %p341, %p342
      %p344 = scmp.ne.s32.totalorder %s333, %s336
      %p345 = scmp.eq.s32.totalorder %s34, 7
      %p346 = por %p344, %p345
      %p347 = scmp.ne.s32.totalorder %s336, %s337
      %p348 = scmp.eq.s32.totalorder %s34, 0
      %p349 = por %p347, %p348
      %p350 = scmp.ne.s32.totalorder %s336, %s337
      %p351 = scmp.eq.s32.totalorder %s35, 7
      %p352 = por %p350, %p351
      %p354 = scmp.ne.s32.totalorder %s337, %s353
      %p355 = scmp.eq.s32.totalorder %s35, 0
      %p356 = por %p354, %p355
      %p357 = scmp.le.s32.totalorder 1, %s29
      %p358 = scmp.lt.s32.totalorder %s29, 9
      %p359 = pnand %p357, %p358
      %p360 = pneg %p359
      // Predicated region
      $region9: #{tpu_custom_call.1} parent=5 // pred_check
        _
      $region10: #{tpu_custom_call.1} parent=5 // pred_check_branch
        %362 = sbr.rel (%p359) target = $region12
      $region11: #{tpu_custom_call.1} parent=5 // pred_region
        %s363 = ssub.s32 %s29, 1
        // Predicated region
        $region13: #{tpu_custom_call.1} parent=11 // pred_check
          %p364 = pneg %p153
        $region14: #{tpu_custom_call.1} parent=11 // pred_check_branch
          %366 = sbr.rel (%p364) target = $region16
        $region15: #{tpu_custom_call.1} parent=11 // pred_region
          _
        $region16: #{tpu_custom_call.1} parent=11 // pred_fallthru
          _
        // Predicated region
        $region17: #{tpu_custom_call.1} parent=11 // pred_check
          %p367 = pneg %p174
        $region18: #{tpu_custom_call.1} parent=11 // pred_check_branch
          %369 = sbr.rel (%p367) target = $region20
        $region19: #{tpu_custom_call.1} parent=11 // pred_region
          _
        $region20: #{tpu_custom_call.1} parent=11 // pred_fallthru
          _
        // Predicated region
        $region21: #{tpu_custom_call.1} parent=11 // pred_check
          %p370 = pneg %p195
        $region22: #{tpu_custom_call.1} parent=11 // pred_check_branch
          %372 = sbr.rel (%p370) target = $region24
        $region23: #{tpu_custom_call.1} parent=11 // pred_region
          %s374 = ssub.s32 256, 256
          %375 = vsyncadd [#allocation10], %s374
          %s376 = sshll.u32 [#allocation11], 4
          %s377 = int_to_ptr.vmem [resolvable:$true] %s376
          %382 = dma.hbm_to_vmem [thread:$0]  %s5, 256, %s377, [#allocation10], 64, 64, 4
        $region24: #{tpu_custom_call.1} parent=11 // pred_fallthru
          _
        // Predicated region
        $region25: #{tpu_custom_call.1} parent=11 // pred_check
          %p383 = pneg %p216
        $region26: #{tpu_custom_call.1} parent=11 // pred_check_branch
          %385 = sbr.rel (%p383) target = $region28
        $region27: #{tpu_custom_call.1} parent=11 // pred_region
          _
        $region28: #{tpu_custom_call.1} parent=11 // pred_fallthru
          _
        // Predicated region
        $region29: #{tpu_custom_call.1} parent=11 // pred_check
          %p386 = pneg %p237
        $region30: #{tpu_custom_call.1} parent=11 // pred_check_branch
          %388 = sbr.rel (%p386) target = $region32
        $region31: #{tpu_custom_call.1} parent=11 // pred_region
          %s390 = ssub.s32 256, 256
          %391 = vsyncadd [#allocation13], %s390
          %s392 = sshll.u32 [#allocation12], 4
          %s393 = int_to_ptr.vmem [resolvable:$true] %s392
          %398 = dma.hbm_to_vmem [thread:$0]  %s7, 256, %s393, [#allocation13], 64, 64, 4
        $region32: #{tpu_custom_call.1} parent=11 // pred_fallthru
          _
        // Predicated region
        $region33: #{tpu_custom_call.1} parent=11 // pred_check
          %p399 = pneg %p258
        $region34: #{tpu_custom_call.1} parent=11 // pred_check_branch
          %401 = sbr.rel (%p399) target = $region36
        $region35: #{tpu_custom_call.1} parent=11 // pred_region
          %s403 = ssub.s32 256, 256
          %404 = vsyncadd [#allocation13], %s403
          %s405 = sshll.u32 [#allocation14], 4
          %s406 = int_to_ptr.vmem [resolvable:$true] %s405
          %411 = dma.hbm_to_vmem [thread:$0]  %s8, 256, %s406, [#allocation13], 64, 64, 4
        $region36: #{tpu_custom_call.1} parent=11 // pred_fallthru
          _
        // Predicated region
        $region37: #{tpu_custom_call.1} parent=11 // pred_check
          %p412 = pneg %p279
        $region38: #{tpu_custom_call.1} parent=11 // pred_check_branch
          %414 = sbr.rel (%p412) target = $region40
        $region39: #{tpu_custom_call.1} parent=11 // pred_region
          %s416 = ssub.s32 16, 16
          %417 = vsyncadd [#allocation16], %s416
          %s419 = sshll.u32 [#allocation15], 4
          %s420 = int_to_ptr.vmem [resolvable:$true] %s419
          %422 = dma.hbm_to_vmem [thread:$0]  %s9, 16, %s420, [#allocation16]
        $region40: #{tpu_custom_call.1} parent=11 // pred_fallthru
          _
        // Predicated region
        $region41: #{tpu_custom_call.1} parent=11 // pred_check
          %p423 = pneg %p300
        $region42: #{tpu_custom_call.1} parent=11 // pred_check_branch
          %425 = sbr.rel (%p423) target = $region44
        $region43: #{tpu_custom_call.1} parent=11 // pred_region
          _
        $region44: #{tpu_custom_call.1} parent=11 // pred_fallthru
          _
        // Predicated region
        $region45: #{tpu_custom_call.1} parent=11 // pred_check
          %p426 = pneg %p321
        $region46: #{tpu_custom_call.1} parent=11 // pred_check_branch
          %428 = sbr.rel (%p426) target = $region48
        $region47: #{tpu_custom_call.1} parent=11 // pred_region
          %s430 = ssub.s32 128, 128
          %431 = vsyncadd [#allocation16], %s430
          %s433 = sshll.u32 [#allocation17], 4
          %s434 = int_to_ptr.vmem [resolvable:$true] %s433
          %436 = dma.hbm_to_vmem [thread:$0]  %s11, 128, %s434, [#allocation16]
        $region48: #{tpu_custom_call.1} parent=11 // pred_fallthru
          _
      $region12: #{tpu_custom_call.1} parent=5 // pred_fallthru
        _
      %p437 = scmp.lt.s32.totalorder %s29, 8
      // Predicated region
      $region49: #{tpu_custom_call.1} parent=5 // pred_check
        %p438 = pneg %p437
      $region50: #{tpu_custom_call.1} parent=5 // pred_check_branch
        %440 = sbr.rel (%p438) target = $region52
      $region51: #{tpu_custom_call.1} parent=5 // pred_region
        // Predicated region
        $region53: #{tpu_custom_call.1} parent=51 // pred_check
          %p441 = pneg %p70
        $region54: #{tpu_custom_call.1} parent=51 // pred_check_branch
          %443 = sbr.rel (%p441) target = $region56
        $region55: #{tpu_custom_call.1} parent=51 // pred_region
          %p444 = scmp.lt.s32.totalorder %s36, 1
          %s445 = scalar_select %p444, %s36, 1
          %p446 = scmp.lt.s32.totalorder %s37, 1
          %s447 = scalar_select %p446, %s37, 1
          %s448 = smul.addr %s445, 2
          %s449 = sadd.s32 %s447, %s448
          %s450 = smul.addr %s449, 8
          %s451 = scalar_lea.vmem %s0, %s450
        $region56: #{tpu_custom_call.1} parent=51 // pred_fallthru
          _
        // Predicated region
        $region57: #{tpu_custom_call.1} parent=51 // pred_check
          %p452 = pneg %p98
        $region58: #{tpu_custom_call.1} parent=51 // pred_check_branch
          %454 = sbr.rel (%p452) target = $region60
        $region59: #{tpu_custom_call.1} parent=51 // pred_region
          %s455 = sand.u32 %s88, 1
          %s456 = scalar_lea.sflag [#allocation7], %s455
          %s457 = sand.u32 %s88, 1
          %s458 = smul.addr %s457, 8
          %s459 = scalar_lea.vmem [#allocation6], %s458
          %s461 = ssub.s32 128, 128
          %462 = vsyncadd %s456, %s461
          %s463 = smul.addr %s36, 2
          %s464 = sadd.s32 %s38, %s463
          %s465 = smul.addr %s464, 128
          %s466 = scalar_lea.hbm %s1, %s465
          %s468 = sshll.u32 %s459, 4
          %s469 = int_to_ptr.vmem [resolvable:$true] %s468
          %471 = dma.hbm_to_vmem [thread:$0]  %s466, 128, %s469, %s456
        $region60: #{tpu_custom_call.1} parent=51 // pred_fallthru
          _
        // Predicated region
        $region61: #{tpu_custom_call.1} parent=51 // pred_check
          %p472 = pneg %p126
        $region62: #{tpu_custom_call.1} parent=51 // pred_check_branch
          %474 = sbr.rel (%p472) target = $region64
        $region63: #{tpu_custom_call.1} parent=51 // pred_region
          %s475 = sand.u32 %s29, 1
          %s476 = scalar_lea.sflag [#allocation10], %s475
          %s477 = sand.u32 %s116, 1
          %s478 = smul.addr %s477, 8
          %s479 = scalar_lea.vmem [#allocation9], %s478
          %s481 = ssub.s32 128, 128
          %482 = vsyncadd %s476, %s481
          %s483 = smul.addr %s36, 2
          %s484 = sadd.s32 %s38, %s483
          %s485 = smul.addr %s484, 128
          %s486 = scalar_lea.hbm %s2, %s485
          %s488 = sshll.u32 %s479, 4
          %s489 = int_to_ptr.vmem [resolvable:$true] %s488
          %491 = dma.hbm_to_vmem [thread:$0]  %s486, 128, %s489, %s476
        $region64: #{tpu_custom_call.1} parent=51 // pred_fallthru
          _
      $region52: #{tpu_custom_call.1} parent=5 // pred_fallthru
        _
      %p492 = scmp.le.s32.totalorder 1, %s29
      %p493 = scmp.lt.s32.totalorder %s29, 9
      %p494 = pnand %p492, %p493
      %p495 = pneg %p494
      // Predicated region
      $region65: #{tpu_custom_call.1} parent=5 // pred_check
        _
      $region66: #{tpu_custom_call.1} parent=5 // pred_check_branch
        %497 = sbr.rel (%p494) target = $region68
      $region67: #{tpu_custom_call.1} parent=5 // pred_region
        %s498 = ssub.s32 %s29, 1
        %s499 = sand.u32 %s91, 1
        %s500 = scalar_lea.sflag [#allocation7], %s499
        %s501 = sand.u32 %s91, 1
        %s502 = smul.addr %s501, 8
        %s503 = scalar_lea.vmem [#allocation6], %s502
        // Predicated region
        $region69: #{tpu_custom_call.1} parent=67 // pred_check
          %p504 = pneg %p104
        $region70: #{tpu_custom_call.1} parent=67 // pred_check_branch
          %506 = sbr.rel (%p504) target = $region72
        $region71: #{tpu_custom_call.1} parent=67 // pred_region
          %507 = dma.done %s500, 128
        $region72: #{tpu_custom_call.1} parent=67 // pred_fallthru
          _
        %s508 = sand.u32 %s34, 1
        %s509 = scalar_lea.sflag [#allocation10], %s508
        %s510 = sand.u32 %s119, 1
        %s511 = smul.addr %s510, 8
        %s512 = scalar_lea.vmem [#allocation9], %s511
        // Predicated region
        $region73: #{tpu_custom_call.1} parent=67 // pred_check
          %p513 = pneg %p132
        $region74: #{tpu_custom_call.1} parent=67 // pred_check_branch
          %515 = sbr.rel (%p513) target = $region76
        $region75: #{tpu_custom_call.1} parent=67 // pred_region
          %516 = dma.done %s509, 128
        $region76: #{tpu_custom_call.1} parent=67 // pred_fallthru
          _
        // Predicated region
        $region77: #{tpu_custom_call.1} parent=67 // pred_check
          %p517 = pneg %p195
        $region78: #{tpu_custom_call.1} parent=67 // pred_check_branch
          %519 = sbr.rel (%p517) target = $region80
        $region79: #{tpu_custom_call.1} parent=67 // pred_region
          %520 = dma.done [#allocation10], 256
        $region80: #{tpu_custom_call.1} parent=67 // pred_fallthru
          _
        // Predicated region
        $region81: #{tpu_custom_call.1} parent=67 // pred_check
          %p521 = pneg %p237
        $region82: #{tpu_custom_call.1} parent=67 // pred_check_branch
          %523 = sbr.rel (%p521) target = $region84
        $region83: #{tpu_custom_call.1} parent=67 // pred_region
          %524 = dma.done [#allocation13], 256
        $region84: #{tpu_custom_call.1} parent=67 // pred_fallthru
          _
        // Predicated region
        $region85: #{tpu_custom_call.1} parent=67 // pred_check
          %p525 = pneg %p258
        $region86: #{tpu_custom_call.1} parent=67 // pred_check_branch
          %527 = sbr.rel (%p525) target = $region88
        $region87: #{tpu_custom_call.1} parent=67 // pred_region
          %528 = dma.done [#allocation13], 256
        $region88: #{tpu_custom_call.1} parent=67 // pred_fallthru
          _
        // Predicated region
        $region89: #{tpu_custom_call.1} parent=67 // pred_check
          %p529 = pneg %p279
        $region90: #{tpu_custom_call.1} parent=67 // pred_check_branch
          %531 = sbr.rel (%p529) target = $region92
        $region91: #{tpu_custom_call.1} parent=67 // pred_region
          %532 = dma.done [#allocation16], 16
        $region92: #{tpu_custom_call.1} parent=67 // pred_fallthru
          _
        // Predicated region
        $region93: #{tpu_custom_call.1} parent=67 // pred_check
          %p533 = pneg %p321
        $region94: #{tpu_custom_call.1} parent=67 // pred_check_branch
          %535 = sbr.rel (%p533) target = $region96
        $region95: #{tpu_custom_call.1} parent=67 // pred_region
          %536 = dma.done [#allocation16], 128
        $region96: #{tpu_custom_call.1} parent=67 // pred_fallthru
          _
        %p537 = scmp.lt.s32.totalorder %s39, 1
        %s538 = scalar_select %p537, %s39, 1
        %p539 = scmp.lt.s32.totalorder %s40, 1
        %s540 = scalar_select %p539, %s40, 1
        %s541 = smul.addr %s538, 2
        %s542 = sadd.s32 %s540, %s541
        %s543 = smul.addr %s542, 8
        %s544 = scalar_lea.vmem %s0, %s543
        %p545 = pneg %p76
        %p546 = pneg %p73
        %s547 = sand.u32 %s91, 1
        %s548 = scalar_lea.sflag [#allocation7], %s547
        %s549 = sand.u32 %s91, 1
        %s550 = smul.addr %s549, 8
        %s551 = scalar_lea.vmem [#allocation6], %s550
        %p552 = pneg %p104
        %p553 = pneg %p101
        %s554 = sand.u32 %s34, 1
        %s555 = scalar_lea.sflag [#allocation10], %s554
        %s556 = sand.u32 %s119, 1
        %s557 = smul.addr %s556, 8
        %s558 = scalar_lea.vmem [#allocation9], %s557
        %p559 = pneg %p132
        %p560 = pneg %p129
        %p561 = pneg %p153
        %p562 = pneg %p150
        %p563 = pneg %p174
        %p564 = pneg %p171
        %p565 = pneg %p195
        %p566 = pneg %p192
        %p567 = pneg %p216
        %p568 = pneg %p213
        %p569 = pneg %p237
        %p570 = pneg %p234
        %p571 = pneg %p258
        %p572 = pneg %p255
        %p573 = pneg %p279
        %p574 = pneg %p276
        %p575 = pneg %p300
        %p576 = pneg %p297
        %p577 = pneg %p321
        %p578 = pneg %p318
        %p579 = pneg %p349
        %p580 = pneg %p346
        %s581 = sand.u32 %s336, 1
        %s582 = scalar_lea.sflag [#allocation8], %s581
        %s583 = sand.u32 %s336, 1
        %s584 = smul.addr %s583, 8
        %s585 = scalar_lea.vmem [#allocation18], %s584
        %p586 = scmp.lt.s32.totalorder %s39, 1
        %s587 = scalar_select %p586, %s39, 1
        %p588 = scmp.lt.s32.totalorder %s40, 1
        %s589 = scalar_select %p588, %s40, 1
        %s590 = smul.addr %s587, 2
        %s591 = sadd.s32 %s589, %s590
        %s592 = smul.addr %s591, 8
        %s593 = scalar_lea.vmem %s0, %s592
        %v595 = vld [vmem:[%s593] sm:$0xff]
        %v596 = vld [vmem:[%s503] sm:$0xff]
        %v597 = vld [vmem:[%s512] sm:$0x1]
        %p598 = scmp.eq.s32.totalorder %s41, 0
        // Predicated region
        $region97: #{tpu_custom_call.1} parent=67 // pred_check
          %p599 = pneg %p598
        $region98: #{tpu_custom_call.1} parent=67 // pred_check_branch
          %601 = sbr.rel (%p599) target = $region100
        $region99: #{tpu_custom_call.1} parent=67 // pred_region
          %v602 = vld [vmem:[%s3] sm:$0xf]
          %v603 = vld [vmem:[%s3 + $0x4] sm:$0xf]
          %v604 = vld [vmem:[%s3 + $0x8] sm:$0xf]
          %v605 = vld [vmem:[%s3 + $0xc] sm:$0xf]
          %v606 = vpack.c.bf16 %v595, %v595
          %v607 = vld [vmem:[%s4] sm:$0x1]
          %v609 = vlaneseq
          %v610 = vshrl.u32 %v609, 7
          %v611 = vsub.s32 0, %v610
          %v612 = vrot.slane %v607, %v611
          %v618 = vunpack.c.l.b16 %v602
          %v619 = vunpack.c.l.b16 %v603
          %v620 = vunpack.c.l.b16 %v604
          %v621 = vunpack.c.l.b16 %v605
          %v622 = vpack.c.b16 %v619, %v618
          %v623 = vpack.c.b16 %v621, %v620
          %vm626 = vcmask 261120
          %v628 = vsel %vm626, %v606, 0
          %630 = vmatprep.subr.bf16.mxu0 0
          %631 = vmatpush1.bf16.msra.mxu0 0
          %632 = vmatprep.subr.bf16.mxu0 0
          %633 = vmatpush1.bf16.msra.mxu0 0
          %634 = vmatprep.subr.bf16.mxu0 0
          %635 = vmatpush1.bf16.msra.mxu0 0
          %636 = vmatprep.subr.bf16.mxu0 0
          %637 = vmatpush1.bf16.msra.mxu0 0
          %638 = vmatprep.subr.bf16.mxu0 0
          %639 = vmatpush1.bf16.msra.mxu0 0
          %640 = vmatprep.subr.bf16.mxu0 0
          %641 = vmatpush1.bf16.msra.mxu0 0
          %642 = vmatprep.subr.bf16.mxu0 0
          %643 = vmatpush1.bf16.msra.mxu0 %v623
          %644 = vmatprep.subr.bf16.mxu0 0
          %645 = vmatpush1.bf16.msra.mxu0 %v622
          %646 = vmatprep.subr.bf16.mxu0 0
          %647 = vmatpush2.bf16.msra.mxu0 0
          %648 = vmatprep.subr.bf16.mxu0 0
          %649 = vmatpush2.bf16.msra.mxu0 0
          %650 = vmatprep.subr.bf16.mxu0 0
          %651 = vmatpush2.bf16.msra.mxu0 0
          %652 = vmatprep.subr.bf16.mxu0 0
          %653 = vmatpush2.bf16.msra.mxu0 0
          %654 = vmatprep.subr.bf16.mxu0 0
          %655 = vmatpush2.bf16.msra.mxu0 0
          %656 = vmatprep.subr.bf16.mxu0 0
          %657 = vmatpush2.bf16.msra.mxu0 0
          %658 = vmatprep.subr.bf16.mxu0 0
          %659 = vmatpush2.bf16.msra.mxu0 0
          %660 = vmatprep.subr.bf16.mxu0 0
          %661 = vmatpush2.bf16.msra.mxu0 0
          %662 = vmatprep.mubr.bf16.mxu0 0
          %663 = vmatmul.mubr.bf16.gmra.mxu0 %v628
          %v664 = vpop.f32.mrf.mxu0
          %v665 = vadd.f32 %v612, %v664
          %v666 = vpop.f32.mrf.mxu0
          %v667 = vpop.f32.mrf.mxu0
          %v668 = vpop.f32.mrf.mxu0
          %669 = vdwg.mxu0
          %v670 = vmul.f32 %v665, 0.35355338
          %v671 = vpack.c.bf16 %v670, %v670
          %673 = vrot.lane.b32.xlu0 %v671, 120
          %v674 = vpop.permute.xlu0 %673
          %675 = vrot.lane.b32.xlu0 %v671, 112
          %v676 = vpop.permute.xlu0 %675
          %677 = vrot.lane.b32.xlu0 %v671, 104
          %v678 = vpop.permute.xlu0 %677
          %v680 = vunpack.c.l.s4 1983009808
          %v681 = vunpack.c.0.s8 %v680
          %v682 = vlaneseq
          %v683 = vshrl.u32 %v682, 7
          %v684 = vsub.s32 %v681, %v683
          %v685 = vrot.slane %v671, %v684
          %v688 = vunpack.c.l.s4 1983009808
          %v689 = vunpack.c.0.s8 %v688
          %v690 = vlaneseq
          %v691 = vshrl.u32 %v690, 7
          %v692 = vsub.s32 %v689, %v691
          %v693 = vrot.slane %v676, %v692
          %v694 = vcombine.low %v685, %v693
          %v695 = vcombine.high %v685, %v693
          %v697 = vunpack.c.l.s4 1934713408
          %v698 = vunpack.c.0.s8 %v697
          %v699 = vlaneseq
          %v700 = vshrl.u32 %v699, 7
          %v701 = vsub.s32 %v698, %v700
          %v702 = vrot.slane %v694, %v701
          %v704 = vunpack.c.l.s4 1934713408
          %v705 = vunpack.c.0.s8 %v704
          %v706 = vlaneseq
          %v707 = vshrl.u32 %v706, 7
          %v708 = vsub.s32 %v705, %v707
          %v709 = vrot.slane %v695, %v708
          %v710 = vcombine.high %v702, 0
          %v711 = vcombine.high %v709, 0
          %v714 = vunpack.c.l.s4 1983009808
          %v715 = vunpack.c.0.s8 %v714
          %v716 = vlaneseq
          %v717 = vshrl.u32 %v716, 7
          %v718 = vsub.s32 %v715, %v717
          %v719 = vrot.slane %v674, %v718
          %v722 = vunpack.c.l.s4 1983009808
          %v723 = vunpack.c.0.s8 %v722
          %v724 = vlaneseq
          %v725 = vshrl.u32 %v724, 7
          %v726 = vsub.s32 %v723, %v725
          %v727 = vrot.slane %v678, %v726
          %v728 = vcombine.low %v719, %v727
          %v729 = vcombine.high %v719, %v727
          %v731 = vunpack.c.l.s4 1934713408
          %v732 = vunpack.c.0.s8 %v731
          %v733 = vlaneseq
          %v734 = vshrl.u32 %v733, 7
          %v735 = vsub.s32 %v732, %v734
          %v736 = vrot.slane %v728, %v735
          %v738 = vunpack.c.l.s4 1934713408
          %v739 = vunpack.c.0.s8 %v738
          %v740 = vlaneseq
          %v741 = vshrl.u32 %v740, 7
          %v742 = vsub.s32 %v739, %v741
          %v743 = vrot.slane %v729, %v742
          %v744 = vcombine.high %v736, 0
          %v745 = vcombine.high %v743, 0
          %v748 = vpack.i.b16 %v736, %v702
          %v750 = vshrl.u32 %v702, 16
          %v751 = vshrl.u32 %v736, 16
          %v752 = vpack.i.b16 %v751, %v750
          %v756 = vpack.i.b16 %v744, %v710
          %v758 = vshrl.u32 %v710, 16
          %v759 = vshrl.u32 %v744, 16
          %v760 = vpack.i.b16 %v759, %v758
          %v764 = vpack.i.b16 %v743, %v709
          %v766 = vshrl.u32 %v709, 16
          %v767 = vshrl.u32 %v743, 16
          %v768 = vpack.i.b16 %v767, %v766
          %v772 = vpack.i.b16 %v745, %v711
          %v774 = vshrl.u32 %v711, 16
          %v775 = vshrl.u32 %v745, 16
          %v776 = vpack.i.b16 %v775, %v774
          %v778 = vcombine.low %v748, %v764
          %v780 = vunpack.c.l.s4 1983009808
          %v781 = vunpack.c.0.s8 %v780
          %v782 = vlaneseq
          %v783 = vshrl.u32 %v782, 7
          %v784 = vsub.s32 %v781, %v783
          %v785 = vrot.slane %v778, %v784
          %v786 = vcombine.low %v756, %v772
          %v788 = vunpack.c.l.s4 1983009808
          %v789 = vunpack.c.0.s8 %v788
          %v790 = vlaneseq
          %v791 = vshrl.u32 %v790, 7
          %v792 = vsub.s32 %v789, %v791
          %v793 = vrot.slane %v786, %v792
          %v794 = vcombine.low %v785, %v793
          %v796 = vunpack.c.l.s4 1934713408
          %v797 = vunpack.c.0.s8 %v796
          %v798 = vlaneseq
          %v799 = vshrl.u32 %v798, 7
          %v800 = vsub.s32 %v797, %v799
          %v801 = vrot.slane %v794, %v800
          %v802 = vcombine.high %v801, 0
          %v803 = vcombine.low %v752, %v768
          %v805 = vunpack.c.l.s4 1983009808
          %v806 = vunpack.c.0.s8 %v805
          %v807 = vlaneseq
          %v808 = vshrl.u32 %v807, 7
          %v809 = vsub.s32 %v806, %v808
          %v810 = vrot.slane %v803, %v809
          %v811 = vcombine.low %v760, %v776
          %v813 = vunpack.c.l.s4 1983009808
          %v814 = vunpack.c.0.s8 %v813
          %v815 = vlaneseq
          %v816 = vshrl.u32 %v815, 7
          %v817 = vsub.s32 %v814, %v816
          %v818 = vrot.slane %v811, %v817
          %v819 = vcombine.low %v810, %v818
          %v821 = vunpack.c.l.s4 1934713408
          %v822 = vunpack.c.0.s8 %v821
          %v823 = vlaneseq
          %v824 = vshrl.u32 %v823, 7
          %v825 = vsub.s32 %v822, %v824
          %v826 = vrot.slane %v819, %v825
          %v827 = vcombine.high %v826, 0
          %v830 = vpack.i.b16 %v826, %v801
          %v832 = vshrl.u32 %v801, 16
          %v833 = vshrl.u32 %v826, 16
          %v834 = vpack.i.b16 %v833, %v832
          %v838 = vpack.i.b16 %v827, %v802
          %v840 = vshrl.u32 %v802, 16
          %v841 = vshrl.u32 %v827, 16
          %v842 = vpack.i.b16 %v841, %v840
          %vm844 = vcmask 60416
          %845 = vst.msk [vmem:[#allocation2] sm:$0xf] %vm844, %v830
          %846 = vst.msk [vmem:[#allocation2 + $0x4] sm:$0xf] %vm844, %v834
          %847 = vst.msk [vmem:[#allocation2 + $0x8] sm:$0xf] %vm844, %v838
          %848 = vst.msk [vmem:[#allocation2 + $0xc] sm:$0xf] %vm844, %v842
          %vm849 = vcmask 7168
          %850 = vst.msk [vmem:[#allocation3] sm:$0xff] %vm849, -inf
          %851 = vst.msk [vmem:[#allocation3 + $0x8] sm:$0xff] %vm849, -inf
          %852 = vst.msk [vmem:[#allocation3 + $0x10] sm:$0xff] %vm849, -inf
          %853 = vst.msk [vmem:[#allocation3 + $0x18] sm:$0xff] %vm849, -inf
          %854 = vst.msk [vmem:[#allocation4] sm:$0xff] %vm849, 0.0
          %855 = vst.msk [vmem:[#allocation4 + $0x8] sm:$0xff] %vm849, 0.0
          %856 = vst.msk [vmem:[#allocation4 + $0x10] sm:$0xff] %vm849, 0.0
          %857 = vst.msk [vmem:[#allocation4 + $0x18] sm:$0xff] %vm849, 0.0
          %vm858 = vcmask 64512
          %859 = vst.msk [vmem:[#allocation5] sm:$0xff] %vm858, 0.0
          %860 = vst.msk [vmem:[#allocation5 + $0x8] sm:$0xff] %vm858, 0.0
          %861 = vst.msk [vmem:[#allocation5 + $0x10] sm:$0xff] %vm858, 0.0
          %862 = vst.msk [vmem:[#allocation5 + $0x18] sm:$0xff] %vm858, 0.0
        $region100: #{tpu_custom_call.1} parent=67 // pred_fallthru
          _
        %v863 = vld [vmem:[#allocation11] sm:$0xf]
        %v864 = vld [vmem:[#allocation11 + $0x4] sm:$0xf]
        %v865 = vld [vmem:[#allocation11 + $0x8] sm:$0xf]
        %v866 = vld [vmem:[#allocation11 + $0xc] sm:$0xf]
        %v867 = vpack.c.bf16 %v596, %v596
        %v868 = vld [vmem:[%s6] sm:$0x1]
        %v870 = vlaneseq
        %v871 = vshrl.u32 %v870, 7
        %v872 = vsub.s32 0, %v871
        %v873 = vrot.slane %v868, %v872
        %v879 = vunpack.c.l.b16 %v863
        %v880 = vunpack.c.l.b16 %v864
        %v881 = vunpack.c.l.b16 %v865
        %v882 = vunpack.c.l.b16 %v866
        %v883 = vpack.c.b16 %v880, %v879
        %v884 = vpack.c.b16 %v882, %v881
        %vm887 = vcmask 261120
        %v889 = vsel %vm887, %v867, 0
        %891 = vmatprep.subr.bf16.mxu0 0
        %892 = vmatpush1.bf16.msra.mxu0 0
        %893 = vmatprep.subr.bf16.mxu0 0
        %894 = vmatpush1.bf16.msra.mxu0 0
        %895 = vmatprep.subr.bf16.mxu0 0
        %896 = vmatpush1.bf16.msra.mxu0 0
        %897 = vmatprep.subr.bf16.mxu0 0
        %898 = vmatpush1.bf16.msra.mxu0 0
        %899 = vmatprep.subr.bf16.mxu0 0
        %900 = vmatpush1.bf16.msra.mxu0 0
        %901 = vmatprep.subr.bf16.mxu0 0
        %902 = vmatpush1.bf16.msra.mxu0 0
        %903 = vmatprep.subr.bf16.mxu0 0
        %904 = vmatpush1.bf16.msra.mxu0 %v884
        %905 = vmatprep.subr.bf16.mxu0 0
        %906 = vmatpush1.bf16.msra.mxu0 %v883
        %907 = vmatprep.subr.bf16.mxu0 0
        %908 = vmatpush2.bf16.msra.mxu0 0
        %909 = vmatprep.subr.bf16.mxu0 0
        %910 = vmatpush2.bf16.msra.mxu0 0
        %911 = vmatprep.subr.bf16.mxu0 0
        %912 = vmatpush2.bf16.msra.mxu0 0
        %913 = vmatprep.subr.bf16.mxu0 0
        %914 = vmatpush2.bf16.msra.mxu0 0
        %915 = vmatprep.subr.bf16.mxu0 0
        %916 = vmatpush2.bf16.msra.mxu0 0
        %917 = vmatprep.subr.bf16.mxu0 0
        %918 = vmatpush2.bf16.msra.mxu0 0
        %919 = vmatprep.subr.bf16.mxu0 0
        %920 = vmatpush2.bf16.msra.mxu0 0
        %921 = vmatprep.subr.bf16.mxu0 0
        %922 = vmatpush2.bf16.msra.mxu0 0
        %923 = vmatprep.mubr.bf16.mxu0 0
        %924 = vmatmul.mubr.bf16.gmra.mxu0 %v889
        %v925 = vpop.f32.mrf.mxu0
        %v926 = vadd.f32 %v873, %v925
        %v927 = vpop.f32.mrf.mxu0
        %v928 = vpop.f32.mrf.mxu0
        %v929 = vpop.f32.mrf.mxu0
        %930 = vdwg.mxu0
        %v931 = vpack.c.bf16 %v926, %v926
        %933 = vrot.lane.b32.xlu0 %v931, 120
        %v934 = vpop.permute.xlu0 %933
        %935 = vrot.lane.b32.xlu0 %v931, 112
        %v936 = vpop.permute.xlu0 %935
        %937 = vrot.lane.b32.xlu0 %v931, 104
        %v938 = vpop.permute.xlu0 %937
        %v940 = vunpack.c.l.s4 1983009808
        %v941 = vunpack.c.0.s8 %v940
        %v942 = vlaneseq
        %v943 = vshrl.u32 %v942, 7
        %v944 = vsub.s32 %v941, %v943
        %v945 = vrot.slane %v931, %v944
        %v948 = vunpack.c.l.s4 1983009808
        %v949 = vunpack.c.0.s8 %v948
        %v950 = vlaneseq
        %v951 = vshrl.u32 %v950, 7
        %v952 = vsub.s32 %v949, %v951
        %v953 = vrot.slane %v936, %v952
        %v954 = vcombine.low %v945, %v953
        %v955 = vcombine.high %v945, %v953
        %v957 = vunpack.c.l.s4 1934713408
        %v958 = vunpack.c.0.s8 %v957
        %v959 = vlaneseq
        %v960 = vshrl.u32 %v959, 7
        %v961 = vsub.s32 %v958, %v960
        %v962 = vrot.slane %v954, %v961
        %v964 = vunpack.c.l.s4 1934713408
        %v965 = vunpack.c.0.s8 %v964
        %v966 = vlaneseq
        %v967 = vshrl.u32 %v966, 7
        %v968 = vsub.s32 %v965, %v967
        %v969 = vrot.slane %v955, %v968
        %v970 = vcombine.high %v962, 0
        %v971 = vcombine.high %v969, 0
        %v974 = vunpack.c.l.s4 1983009808
        %v975 = vunpack.c.0.s8 %v974
        %v976 = vlaneseq
        %v977 = vshrl.u32 %v976, 7
        %v978 = vsub.s32 %v975, %v977
        %v979 = vrot.slane %v934, %v978
        %v982 = vunpack.c.l.s4 1983009808
        %v983 = vunpack.c.0.s8 %v982
        %v984 = vlaneseq
        %v985 = vshrl.u32 %v984, 7
        %v986 = vsub.s32 %v983, %v985
        %v987 = vrot.slane %v938, %v986
        %v988 = vcombine.low %v979, %v987
        %v989 = vcombine.high %v979, %v987
        %v991 = vunpack.c.l.s4 1934713408
        %v992 = vunpack.c.0.s8 %v991
        %v993 = vlaneseq
        %v994 = vshrl.u32 %v993, 7
        %v995 = vsub.s32 %v992, %v994
        %v996 = vrot.slane %v988, %v995
        %v998 = vunpack.c.l.s4 1934713408
        %v999 = vunpack.c.0.s8 %v998
        %v1000 = vlaneseq
        %v1001 = vshrl.u32 %v1000, 7
        %v1002 = vsub.s32 %v999, %v1001
        %v1003 = vrot.slane %v989, %v1002
        %v1004 = vcombine.high %v996, 0
        %v1005 = vcombine.high %v1003, 0
        %v1008 = vpack.i.b16 %v996, %v962
        %v1010 = vshrl.u32 %v962, 16
        %v1011 = vshrl.u32 %v996, 16
        %v1012 = vpack.i.b16 %v1011, %v1010
        %v1016 = vpack.i.b16 %v1004, %v970
        %v1018 = vshrl.u32 %v970, 16
        %v1019 = vshrl.u32 %v1004, 16
        %v1020 = vpack.i.b16 %v1019, %v1018
        %v1024 = vpack.i.b16 %v1003, %v969
        %v1026 = vshrl.u32 %v969, 16
        %v1027 = vshrl.u32 %v1003, 16
        %v1028 = vpack.i.b16 %v1027, %v1026
        %v1032 = vpack.i.b16 %v1005, %v971
        %v1034 = vshrl.u32 %v971, 16
        %v1035 = vshrl.u32 %v1005, 16
        %v1036 = vpack.i.b16 %v1035, %v1034
        %v1038 = vcombine.low %v1008, %v1024
        %v1040 = vunpack.c.l.s4 1983009808
        %v1041 = vunpack.c.0.s8 %v1040
        %v1042 = vlaneseq
        %v1043 = vshrl.u32 %v1042, 7
        %v1044 = vsub.s32 %v1041, %v1043
        %v1045 = vrot.slane %v1038, %v1044
        %v1046 = vcombine.low %v1016, %v1032
        %v1048 = vunpack.c.l.s4 1983009808
        %v1049 = vunpack.c.0.s8 %v1048
        %v1050 = vlaneseq
        %v1051 = vshrl.u32 %v1050, 7
        %v1052 = vsub.s32 %v1049, %v1051
        %v1053 = vrot.slane %v1046, %v1052
        %v1054 = vcombine.low %v1045, %v1053
        %v1056 = vunpack.c.l.s4 1934713408
        %v1057 = vunpack.c.0.s8 %v1056
        %v1058 = vlaneseq
        %v1059 = vshrl.u32 %v1058, 7
        %v1060 = vsub.s32 %v1057, %v1059
        %v1061 = vrot.slane %v1054, %v1060
        %v1062 = vcombine.high %v1061, 0
        %v1063 = vcombine.low %v1012, %v1028
        %v1065 = vunpack.c.l.s4 1983009808
        %v1066 = vunpack.c.0.s8 %v1065
        %v1067 = vlaneseq
        %v1068 = vshrl.u32 %v1067, 7
        %v1069 = vsub.s32 %v1066, %v1068
        %v1070 = vrot.slane %v1063, %v1069
        %v1071 = vcombine.low %v1020, %v1036
        %v1073 = vunpack.c.l.s4 1983009808
        %v1074 = vunpack.c.0.s8 %v1073
        %v1075 = vlaneseq
        %v1076 = vshrl.u32 %v1075, 7
        %v1077 = vsub.s32 %v1074, %v1076
        %v1078 = vrot.slane %v1071, %v1077
        %v1079 = vcombine.low %v1070, %v1078
        %v1081 = vunpack.c.l.s4 1934713408
        %v1082 = vunpack.c.0.s8 %v1081
        %v1083 = vlaneseq
        %v1084 = vshrl.u32 %v1083, 7
        %v1085 = vsub.s32 %v1082, %v1084
        %v1086 = vrot.slane %v1079, %v1085
        %v1087 = vcombine.high %v1086, 0
        %v1090 = vpack.i.b16 %v1086, %v1061
        %v1091 = vshrl.u32 %v1061, 16
        %v1092 = vshrl.u32 %v1086, 16
        %v1093 = vpack.i.b16 %v1092, %v1091
        %v1096 = vpack.i.b16 %v1087, %v1062
        %v1097 = vshrl.u32 %v1062, 16
        %v1098 = vshrl.u32 %v1087, 16
        %v1099 = vpack.i.b16 %v1098, %v1097
        %1100 = vrot.lane.b32.xlu0 %v931, 96
        %v1101 = vpop.permute.xlu0 %1100
        %1102 = vrot.lane.b32.xlu0 %v934, 96
        %v1103 = vpop.permute.xlu0 %1102
        %1104 = vrot.lane.b32.xlu0 %v936, 96
        %v1105 = vpop.permute.xlu0 %1104
        %1106 = vrot.lane.b32.xlu0 %v938, 96
        %v1107 = vpop.permute.xlu0 %1106
        %v1110 = vunpack.c.l.s4 1983009808
        %v1111 = vunpack.c.0.s8 %v1110
        %v1112 = vlaneseq
        %v1113 = vshrl.u32 %v1112, 7
        %v1114 = vsub.s32 %v1111, %v1113
        %v1115 = vrot.slane %v1101, %v1114
        %v1118 = vunpack.c.l.s4 1983009808
        %v1119 = vunpack.c.0.s8 %v1118
        %v1120 = vlaneseq
        %v1121 = vshrl.u32 %v1120, 7
        %v1122 = vsub.s32 %v1119, %v1121
        %v1123 = vrot.slane %v1105, %v1122
        %v1124 = vcombine.low %v1115, %v1123
        %v1125 = vcombine.high %v1115, %v1123
        %v1127 = vunpack.c.l.s4 1934713408
        %v1128 = vunpack.c.0.s8 %v1127
        %v1129 = vlaneseq
        %v1130 = vshrl.u32 %v1129, 7
        %v1131 = vsub.s32 %v1128, %v1130
        %v1132 = vrot.slane %v1124, %v1131
        %v1134 = vunpack.c.l.s4 1934713408
        %v1135 = vunpack.c.0.s8 %v1134
        %v1136 = vlaneseq
        %v1137 = vshrl.u32 %v1136, 7
        %v1138 = vsub.s32 %v1135, %v1137
        %v1139 = vrot.slane %v1125, %v1138
        %v1140 = vcombine.high %v1132, 0
        %v1141 = vcombine.high %v1139, 0
        %v1144 = vunpack.c.l.s4 1983009808
        %v1145 = vunpack.c.0.s8 %v1144
        %v1146 = vlaneseq
        %v1147 = vshrl.u32 %v1146, 7
        %v1148 = vsub.s32 %v1145, %v1147
        %v1149 = vrot.slane %v1103, %v1148
        %v1152 = vunpack.c.l.s4 1983009808
        %v1153 = vunpack.c.0.s8 %v1152
        %v1154 = vlaneseq
        %v1155 = vshrl.u32 %v1154, 7
        %v1156 = vsub.s32 %v1153, %v1155
        %v1157 = vrot.slane %v1107, %v1156
        %v1158 = vcombine.low %v1149, %v1157
        %v1159 = vcombine.high %v1149, %v1157
        %v1161 = vunpack.c.l.s4 1934713408
        %v1162 = vunpack.c.0.s8 %v1161
        %v1163 = vlaneseq
        %v1164 = vshrl.u32 %v1163, 7
        %v1165 = vsub.s32 %v1162, %v1164
        %v1166 = vrot.slane %v1158, %v1165
        %v1168 = vunpack.c.l.s4 1934713408
        %v1169 = vunpack.c.0.s8 %v1168
        %v1170 = vlaneseq
        %v1171 = vshrl.u32 %v1170, 7
        %v1172 = vsub.s32 %v1169, %v1171
        %v1173 = vrot.slane %v1159, %v1172
        %v1174 = vcombine.high %v1166, 0
        %v1175 = vcombine.high %v1173, 0
        %v1178 = vpack.i.b16 %v1166, %v1132
        %v1180 = vshrl.u32 %v1132, 16
        %v1181 = vshrl.u32 %v1166, 16
        %v1182 = vpack.i.b16 %v1181, %v1180
        %v1186 = vpack.i.b16 %v1174, %v1140
        %v1188 = vshrl.u32 %v1140, 16
        %v1189 = vshrl.u32 %v1174, 16
        %v1190 = vpack.i.b16 %v1189, %v1188
        %v1194 = vpack.i.b16 %v1173, %v1139
        %v1196 = vshrl.u32 %v1139, 16
        %v1197 = vshrl.u32 %v1173, 16
        %v1198 = vpack.i.b16 %v1197, %v1196
        %v1202 = vpack.i.b16 %v1175, %v1141
        %v1204 = vshrl.u32 %v1141, 16
        %v1205 = vshrl.u32 %v1175, 16
        %v1206 = vpack.i.b16 %v1205, %v1204
        %v1208 = vcombine.low %v1178, %v1194
        %v1210 = vunpack.c.l.s4 1983009808
        %v1211 = vunpack.c.0.s8 %v1210
        %v1212 = vlaneseq
        %v1213 = vshrl.u32 %v1212, 7
        %v1214 = vsub.s32 %v1211, %v1213
        %v1215 = vrot.slane %v1208, %v1214
        %v1216 = vcombine.low %v1186, %v1202
        %v1218 = vunpack.c.l.s4 1983009808
        %v1219 = vunpack.c.0.s8 %v1218
        %v1220 = vlaneseq
        %v1221 = vshrl.u32 %v1220, 7
        %v1222 = vsub.s32 %v1219, %v1221
        %v1223 = vrot.slane %v1216, %v1222
        %v1224 = vcombine.low %v1215, %v1223
        %v1226 = vunpack.c.l.s4 1934713408
        %v1227 = vunpack.c.0.s8 %v1226
        %v1228 = vlaneseq
        %v1229 = vshrl.u32 %v1228, 7
        %v1230 = vsub.s32 %v1227, %v1229
        %v1231 = vrot.slane %v1224, %v1230
        %v1232 = vcombine.high %v1231, 0
        %v1233 = vcombine.low %v1182, %v1198
        %v1235 = vunpack.c.l.s4 1983009808
        %v1236 = vunpack.c.0.s8 %v1235
        %v1237 = vlaneseq
        %v1238 = vshrl.u32 %v1237, 7
        %v1239 = vsub.s32 %v1236, %v1238
        %v1240 = vrot.slane %v1233, %v1239
        %v1241 = vcombine.low %v1190, %v1206
        %v1243 = vunpack.c.l.s4 1983009808
        %v1244 = vunpack.c.0.s8 %v1243
        %v1245 = vlaneseq
        %v1246 = vshrl.u32 %v1245, 7
        %v1247 = vsub.s32 %v1244, %v1246
        %v1248 = vrot.slane %v1241, %v1247
        %v1249 = vcombine.low %v1240, %v1248
        %v1251 = vunpack.c.l.s4 1934713408
        %v1252 = vunpack.c.0.s8 %v1251
        %v1253 = vlaneseq
        %v1254 = vshrl.u32 %v1253, 7
        %v1255 = vsub.s32 %v1252, %v1254
        %v1256 = vrot.slane %v1249, %v1255
        %v1257 = vcombine.high %v1256, 0
        %v1260 = vpack.i.b16 %v1256, %v1231
        %v1261 = vshrl.u32 %v1231, 16
        %v1262 = vshrl.u32 %v1256, 16
        %v1263 = vpack.i.b16 %v1262, %v1261
        %v1266 = vpack.i.b16 %v1257, %v1232
        %v1267 = vshrl.u32 %v1232, 16
        %v1268 = vshrl.u32 %v1257, 16
        %v1269 = vpack.i.b16 %v1268, %v1267
        %v1270 = vld [vmem:[#allocation2] sm:$0xf]
        %v1271 = vld [vmem:[#allocation2 + $0x4] sm:$0xf]
        %v1272 = vld [vmem:[#allocation2 + $0x8] sm:$0xf]
        %v1273 = vld [vmem:[#allocation2 + $0xc] sm:$0xf]
        %vm1274 = vcmask 64512
        %v1276 = vsel %vm1274, %v1270, 0
        %v1279 = vsel %vm1274, %v1090, 0
        %1281 = vmatprep.subr.bf16.mxu0 0
        %1282 = vmatpush1.bf16.xpose.msra.mxu0 0
        %1283 = vmatprep.subr.bf16.mxu0 0
        %1284 = vmatpush1.bf16.xpose.msra.mxu0 0
        %1285 = vmatprep.subr.bf16.mxu0 0
        %1286 = vmatpush1.bf16.xpose.msra.mxu0 0
        %1287 = vmatprep.subr.bf16.mxu0 0
        %1288 = vmatpush1.bf16.xpose.msra.mxu0 0
        %1289 = vmatprep.subr.bf16.mxu0 0
        %1290 = vmatpush1.bf16.xpose.msra.mxu0 0
        %1291 = vmatprep.subr.bf16.mxu0 0
        %1292 = vmatpush1.bf16.xpose.msra.mxu0 0
        %1293 = vmatprep.subr.bf16.mxu0 0
        %1294 = vmatpush1.bf16.xpose.msra.mxu0 0
        %1295 = vmatprep.subr.bf16.mxu0 0
        %1296 = vmatpush1.bf16.xpose.msra.mxu0 %v1279
        %1297 = vmatprep.subr.bf16.mxu0 0
        %1298 = vmatpush2.bf16.xpose.msra.mxu0 0
        %1299 = vmatprep.subr.bf16.mxu0 0
        %1300 = vmatpush2.bf16.xpose.msra.mxu0 0
        %1301 = vmatprep.subr.bf16.mxu0 0
        %1302 = vmatpush2.bf16.xpose.msra.mxu0 0
        %1303 = vmatprep.subr.bf16.mxu0 0
        %1304 = vmatpush2.bf16.xpose.msra.mxu0 0
        %1305 = vmatprep.subr.bf16.mxu0 0
        %1306 = vmatpush2.bf16.xpose.msra.mxu0 0
        %1307 = vmatprep.subr.bf16.mxu0 0
        %1308 = vmatpush2.bf16.xpose.msra.mxu0 0
        %1309 = vmatprep.subr.bf16.mxu0 0
        %1310 = vmatpush2.bf16.xpose.msra.mxu0 0
        %1311 = vmatprep.subr.bf16.mxu0 0
        %1312 = vmatpush2.bf16.xpose.msra.mxu0 0
        %1313 = vmatprep.mubr.bf16.mxu0 0
        %1314 = vmatmul.mubr.bf16.gmra.mxu0 %v1276
        %v1315 = vpop.f32.mrf.mxu0
        %v1316 = vadd.f32 0.0, %v1315
        %v1317 = vpop.f32.mrf.mxu0
        %v1318 = vpop.f32.mrf.mxu0
        %v1319 = vpop.f32.mrf.mxu0
        %1320 = vdwg.mxu0
        %v1322 = vsel %vm1274, %v1271, 0
        %v1325 = vsel %vm1274, %v1093, 0
        %1327 = vmatprep.subr.bf16.mxu0 0
        %1328 = vmatpush1.bf16.xpose.msra.mxu0 0
        %1329 = vmatprep.subr.bf16.mxu0 0
        %1330 = vmatpush1.bf16.xpose.msra.mxu0 0
        %1331 = vmatprep.subr.bf16.mxu0 0
        %1332 = vmatpush1.bf16.xpose.msra.mxu0 0
        %1333 = vmatprep.subr.bf16.mxu0 0
        %1334 = vmatpush1.bf16.xpose.msra.mxu0 0
        %1335 = vmatprep.subr.bf16.mxu0 0
        %1336 = vmatpush1.bf16.xpose.msra.mxu0 0
        %1337 = vmatprep.subr.bf16.mxu0 0
        %1338 = vmatpush1.bf16.xpose.msra.mxu0 0
        %1339 = vmatprep.subr.bf16.mxu0 0
        %1340 = vmatpush1.bf16.xpose.msra.mxu0 0
        %1341 = vmatprep.subr.bf16.mxu0 0
        %1342 = vmatpush1.bf16.xpose.msra.mxu0 %v1325
        %1343 = vmatprep.subr.bf16.mxu0 0
        %1344 = vmatpush2.bf16.xpose.msra.mxu0 0
        %1345 = vmatprep.subr.bf16.mxu0 0
        %1346 = vmatpush2.bf16.xpose.msra.mxu0 0
        %1347 = vmatprep.subr.bf16.mxu0 0
        %1348 = vmatpush2.bf16.xpose.msra.mxu0 0
        %1349 = vmatprep.subr.bf16.mxu0 0
        %1350 = vmatpush2.bf16.xpose.msra.mxu0 0
        %1351 = vmatprep.subr.bf16.mxu0 0
        %1352 = vmatpush2.bf16.xpose.msra.mxu0 0
        %1353 = vmatprep.subr.bf16.mxu0 0
        %1354 = vmatpush2.bf16.xpose.msra.mxu0 0
        %1355 = vmatprep.subr.bf16.mxu0 0
        %1356 = vmatpush2.bf16.xpose.msra.mxu0 0
        %1357 = vmatprep.subr.bf16.mxu0 0
        %1358 = vmatpush2.bf16.xpose.msra.mxu0 0
        %1359 = vmatprep.mubr.bf16.mxu0 0
        %1360 = vmatmul.mubr.bf16.gmra.mxu0 %v1322
        %v1361 = vpop.f32.mrf.mxu0
        %v1362 = vadd.f32 0.0, %v1361
        %v1363 = vpop.f32.mrf.mxu0
        %v1364 = vpop.f32.mrf.mxu0
        %v1365 = vpop.f32.mrf.mxu0
        %1366 = vdwg.mxu0
        %v1368 = vsel %vm1274, %v1272, 0
        %v1371 = vsel %vm1274, %v1096, 0
        %1373 = vmatprep.subr.bf16.mxu0 0
        %1374 = vmatpush1.bf16.xpose.msra.mxu0 0
        %1375 = vmatprep.subr.bf16.mxu0 0
        %1376 = vmatpush1.bf16.xpose.msra.mxu0 0
        %1377 = vmatprep.subr.bf16.mxu0 0
        %1378 = vmatpush1.bf16.xpose.msra.mxu0 0
        %1379 = vmatprep.subr.bf16.mxu0 0
        %1380 = vmatpush1.bf16.xpose.msra.mxu0 0
        %1381 = vmatprep.subr.bf16.mxu0 0
        %1382 = vmatpush1.bf16.xpose.msra.mxu0 0
        %1383 = vmatprep.subr.bf16.mxu0 0
        %1384 = vmatpush1.bf16.xpose.msra.mxu0 0
        %1385 = vmatprep.subr.bf16.mxu0 0
        %1386 = vmatpush1.bf16.xpose.msra.mxu0 0
        %1387 = vmatprep.subr.bf16.mxu0 0
        %1388 = vmatpush1.bf16.xpose.msra.mxu0 %v1371
        %1389 = vmatprep.subr.bf16.mxu0 0
        %1390 = vmatpush2.bf16.xpose.msra.mxu0 0
        %1391 = vmatprep.subr.bf16.mxu0 0
        %1392 = vmatpush2.bf16.xpose.msra.mxu0 0
        %1393 = vmatprep.subr.bf16.mxu0 0
        %1394 = vmatpush2.bf16.xpose.msra.mxu0 0
        %1395 = vmatprep.subr.bf16.mxu0 0
        %1396 = vmatpush2.bf16.xpose.msra.mxu0 0
        %1397 = vmatprep.subr.bf16.mxu0 0
        %1398 = vmatpush2.bf16.xpose.msra.mxu0 0
        %1399 = vmatprep.subr.bf16.mxu0 0
        %1400 = vmatpush2.bf16.xpose.msra.mxu0 0
        %1401 = vmatprep.subr.bf16.mxu0 0
        %1402 = vmatpush2.bf16.xpose.msra.mxu0 0
        %1403 = vmatprep.subr.bf16.mxu0 0
        %1404 = vmatpush2.bf16.xpose.msra.mxu0 0
        %1405 = vmatprep.mubr.bf16.mxu0 0
        %1406 = vmatmul.mubr.bf16.gmra.mxu0 %v1368
        %v1407 = vpop.f32.mrf.mxu0
        %v1408 = vadd.f32 0.0, %v1407
        %v1409 = vpop.f32.mrf.mxu0
        %v1410 = vpop.f32.mrf.mxu0
        %v1411 = vpop.f32.mrf.mxu0
        %1412 = vdwg.mxu0
        %v1414 = vsel %vm1274, %v1273, 0
        %v1417 = vsel %vm1274, %v1099, 0
        %1419 = vmatprep.subr.bf16.mxu0 0
        %1420 = vmatpush1.bf16.xpose.msra.mxu0 0
        %1421 = vmatprep.subr.bf16.mxu0 0
        %1422 = vmatpush1.bf16.xpose.msra.mxu0 0
        %1423 = vmatprep.subr.bf16.mxu0 0
        %1424 = vmatpush1.bf16.xpose.msra.mxu0 0
        %1425 = vmatprep.subr.bf16.mxu0 0
        %1426 = vmatpush1.bf16.xpose.msra.mxu0 0
        %1427 = vmatprep.subr.bf16.mxu0 0
        %1428 = vmatpush1.bf16.xpose.msra.mxu0 0
        %1429 = vmatprep.subr.bf16.mxu0 0
        %1430 = vmatpush1.bf16.xpose.msra.mxu0 0
        %1431 = vmatprep.subr.bf16.mxu0 0
        %1432 = vmatpush1.bf16.xpose.msra.mxu0 0
        %1433 = vmatprep.subr.bf16.mxu0 0
        %1434 = vmatpush1.bf16.xpose.msra.mxu0 %v1417
        %1435 = vmatprep.subr.bf16.mxu0 0
        %1436 = vmatpush2.bf16.xpose.msra.mxu0 0
        %1437 = vmatprep.subr.bf16.mxu0 0
        %1438 = vmatpush2.bf16.xpose.msra.mxu0 0
        %1439 = vmatprep.subr.bf16.mxu0 0
        %1440 = vmatpush2.bf16.xpose.msra.mxu0 0
        %1441 = vmatprep.subr.bf16.mxu0 0
        %1442 = vmatpush2.bf16.xpose.msra.mxu0 0
        %1443 = vmatprep.subr.bf16.mxu0 0
        %1444 = vmatpush2.bf16.xpose.msra.mxu0 0
        %1445 = vmatprep.subr.bf16.mxu0 0
        %1446 = vmatpush2.bf16.xpose.msra.mxu0 0
        %1447 = vmatprep.subr.bf16.mxu0 0
        %1448 = vmatpush2.bf16.xpose.msra.mxu0 0
        %1449 = vmatprep.subr.bf16.mxu0 0
        %1450 = vmatpush2.bf16.xpose.msra.mxu0 0
        %1451 = vmatprep.mubr.bf16.mxu0 0
        %1452 = vmatmul.mubr.bf16.gmra.mxu0 %v1414
        %v1453 = vpop.f32.mrf.mxu0
        %v1454 = vadd.f32 0.0, %v1453
        %v1455 = vpop.f32.mrf.mxu0
        %v1456 = vpop.f32.mrf.mxu0
        %v1457 = vpop.f32.mrf.mxu0
        %1458 = vdwg.mxu0
        %vm1459 = vcmp.gt.f32.partialorder %v597, 0.0
        %v1460 = vsel %vm1459, 1, 0
        %v1461 = vlaneseq
        %v1462 = vshrl.u32 %v1461, 7
        %v1463 = vsub.s32 0, %v1462
        %v1464 = vrot.slane %v1460, %v1463
        %vm1465 = vcmp.eq.s32.totalorder %v1464, 1
        %v1466 = vsel %vm1465, %v1316, -10000.0
        %v1467 = vsel %vm1465, %v1362, -10000.0
        %v1468 = vsel %vm1465, %v1408, -10000.0
        %v1469 = vsel %vm1465, %v1454, -10000.0
        %v1470 = vld [vmem:[#allocation3] sm:$0xff]
        %v1471 = vld [vmem:[#allocation3 + $0x8] sm:$0xff]
        %v1472 = vld [vmem:[#allocation3 + $0x10] sm:$0xff]
        %v1473 = vld [vmem:[#allocation3 + $0x18] sm:$0xff]
        %v1474 = vsel %vm1274, %v1466, -inf
        %1475 = vmax.xlane.f32.xlu0 %v1474
        %v1476 = vpop.xlane.xlu0 %1475
        %v1477 = vsel %vm1274, %v1467, -inf
        %1478 = vmax.xlane.f32.xlu0 %v1477
        %v1479 = vpop.xlane.xlu0 %1478
        %v1480 = vsel %vm1274, %v1468, -inf
        %1481 = vmax.xlane.f32.xlu0 %v1480
        %v1482 = vpop.xlane.xlu0 %1481
        %v1483 = vsel %vm1274, %v1469, -inf
        %1484 = vmax.xlane.f32.xlu0 %v1483
        %v1485 = vpop.xlane.xlu0 %1484
        %v1486 = vmax.f32 %v1470, %v1476
        %v1487 = vmax.f32 %v1471, %v1479
        %v1488 = vmax.f32 %v1472, %v1482
        %v1489 = vmax.f32 %v1473, %v1485
        %v1490 = vsub.f32 %v1470, %v1486
        %v1491 = vsub.f32 %v1471, %v1487
        %v1492 = vsub.f32 %v1472, %v1488
        %v1493 = vsub.f32 %v1473, %v1489
        %v1494 = vmul.f32 %v1490, 1.442695
        %v1495 = vpow.pop %v1494
        %v1496 = vmul.f32 %v1491, 1.442695
        %v1497 = vpow.pop %v1496
        %v1498 = vmul.f32 %v1492, 1.442695
        %v1499 = vpow.pop %v1498
        %v1500 = vmul.f32 %v1493, 1.442695
        %v1501 = vpow.pop %v1500
        %1503 = vset.pattern.permute.xlu0 0
        %1504 = vperm.xlu0 %1503, %v1486
        %v1505 = vpop.permute.xlu0 %1504
        %1508 = vset.pattern.permute.xlu0 0
        %1509 = vperm.xlu0 %1508, %v1487
        %v1510 = vpop.permute.xlu0 %1509
        %1513 = vset.pattern.permute.xlu0 0
        %1514 = vperm.xlu0 %1513, %v1488
        %v1515 = vpop.permute.xlu0 %1514
        %1518 = vset.pattern.permute.xlu0 0
        %1519 = vperm.xlu0 %1518, %v1489
        %v1520 = vpop.permute.xlu0 %1519
        %v1522 = vsub.f32 %v1466, %v1505
        %v1523 = vsub.f32 %v1467, %v1510
        %v1524 = vsub.f32 %v1468, %v1515
        %v1525 = vsub.f32 %v1469, %v1520
        %v1526 = vmul.f32 %v1522, 1.442695
        %v1527 = vpow.pop %v1526
        %v1528 = vmul.f32 %v1523, 1.442695
        %v1529 = vpow.pop %v1528
        %v1530 = vmul.f32 %v1524, 1.442695
        %v1531 = vpow.pop %v1530
        %v1532 = vmul.f32 %v1525, 1.442695
        %v1533 = vpow.pop %v1532
        %v1534 = vld [vmem:[#allocation4] sm:$0xff]
        %v1535 = vld [vmem:[#allocation4 + $0x8] sm:$0xff]
        %v1536 = vld [vmem:[#allocation4 + $0x10] sm:$0xff]
        %v1537 = vld [vmem:[#allocation4 + $0x18] sm:$0xff]
        %v1538 = vmul.f32 %v1495, %v1534
        %v1539 = vmul.f32 %v1497, %v1535
        %v1540 = vmul.f32 %v1499, %v1536
        %v1541 = vmul.f32 %v1501, %v1537
        %v1542 = vsel %vm1274, %v1527, 0.0
        %1543 = vadd.xlane.f32.xlu0 %v1542
        %v1544 = vpop.xlane.xlu0 %1543
        %v1545 = vsel %vm1274, %v1529, 0.0
        %1546 = vadd.xlane.f32.xlu0 %v1545
        %v1547 = vpop.xlane.xlu0 %1546
        %v1548 = vsel %vm1274, %v1531, 0.0
        %1549 = vadd.xlane.f32.xlu0 %v1548
        %v1550 = vpop.xlane.xlu0 %1549
        %v1551 = vsel %vm1274, %v1533, 0.0
        %1552 = vadd.xlane.f32.xlu0 %v1551
        %v1553 = vpop.xlane.xlu0 %1552
        %v1554 = vadd.f32 %v1538, %v1544
        %v1555 = vadd.f32 %v1539, %v1547
        %v1556 = vadd.f32 %v1540, %v1550
        %v1557 = vadd.f32 %v1541, %v1553
        %vm1558 = vcmask 7168
        %1559 = vst.msk [vmem:[#allocation4] sm:$0xff] %vm1558, %v1554
        %1560 = vst.msk [vmem:[#allocation4 + $0x8] sm:$0xff] %vm1558, %v1555
        %1561 = vst.msk [vmem:[#allocation4 + $0x10] sm:$0xff] %vm1558, %v1556
        %1562 = vst.msk [vmem:[#allocation4 + $0x18] sm:$0xff] %vm1558, %v1557
        %v1563 = vld [vmem:[#allocation5] sm:$0xff]
        %v1564 = vld [vmem:[#allocation5 + $0x8] sm:$0xff]
        %v1565 = vld [vmem:[#allocation5 + $0x10] sm:$0xff]
        %v1566 = vld [vmem:[#allocation5 + $0x18] sm:$0xff]
        %1568 = vset.pattern.permute.xlu0 0
        %1569 = vperm.xlu0 %1568, %v1495
        %v1570 = vpop.permute.xlu0 %1569
        %1573 = vset.pattern.permute.xlu0 0
        %1574 = vperm.xlu0 %1573, %v1497
        %v1575 = vpop.permute.xlu0 %1574
        %1578 = vset.pattern.permute.xlu0 0
        %1579 = vperm.xlu0 %1578, %v1499
        %v1580 = vpop.permute.xlu0 %1579
        %1583 = vset.pattern.permute.xlu0 0
        %1584 = vperm.xlu0 %1583, %v1501
        %v1585 = vpop.permute.xlu0 %1584
        %v1587 = vmul.f32 %v1570, %v1563
        %v1588 = vmul.f32 %v1575, %v1564
        %v1589 = vmul.f32 %v1580, %v1565
        %v1590 = vmul.f32 %v1585, %v1566
        %v1591 = vpack.c.bf16 %v1527, %v1527
        %v1592 = vpack.c.bf16 %v1529, %v1529
        %v1593 = vpack.c.bf16 %v1531, %v1531
        %v1594 = vpack.c.bf16 %v1533, %v1533
        %v1596 = vsel %vm1274, %v1591, 0
        %vm1598 = vcmask 1043456
        %v1600 = vsel %vm1598, %v1260, 0
        %1602 = vmatprep.subr.bf16.mxu0 0
        %1603 = vmatpush1.bf16.msra.mxu0 0
        %1604 = vmatprep.subr.bf16.mxu0 0
        %1605 = vmatpush1.bf16.msra.mxu0 0
        %1606 = vmatprep.subr.bf16.mxu0 0
        %1607 = vmatpush1.bf16.msra.mxu0 0
        %1608 = vmatprep.subr.bf16.mxu0 0
        %1609 = vmatpush1.bf16.msra.mxu0 0
        %1610 = vmatprep.subr.bf16.mxu0 0
        %1611 = vmatpush1.bf16.msra.mxu0 0
        %1612 = vmatprep.subr.bf16.mxu0 0
        %1613 = vmatpush1.bf16.msra.mxu0 0
        %1614 = vmatprep.subr.bf16.mxu0 0
        %1615 = vmatpush1.bf16.msra.mxu0 0
        %1616 = vmatprep.subr.bf16.mxu0 0
        %1617 = vmatpush1.bf16.msra.mxu0 %v1600
        %1618 = vmatprep.subr.bf16.mxu0 0
        %1619 = vmatpush2.bf16.msra.mxu0 0
        %1620 = vmatprep.subr.bf16.mxu0 0
        %1621 = vmatpush2.bf16.msra.mxu0 0
        %1622 = vmatprep.subr.bf16.mxu0 0
        %1623 = vmatpush2.bf16.msra.mxu0 0
        %1624 = vmatprep.subr.bf16.mxu0 0
        %1625 = vmatpush2.bf16.msra.mxu0 0
        %1626 = vmatprep.subr.bf16.mxu0 0
        %1627 = vmatpush2.bf16.msra.mxu0 0
        %1628 = vmatprep.subr.bf16.mxu0 0
        %1629 = vmatpush2.bf16.msra.mxu0 0
        %1630 = vmatprep.subr.bf16.mxu0 0
        %1631 = vmatpush2.bf16.msra.mxu0 0
        %1632 = vmatprep.subr.bf16.mxu0 0
        %1633 = vmatpush2.bf16.msra.mxu0 0
        %1634 = vmatprep.mubr.bf16.mxu0 0
        %1635 = vmatmul.mubr.bf16.gmra.mxu0 %v1596
        %v1636 = vpop.f32.mrf.mxu0
        %v1637 = vadd.f32 0.0, %v1636
        %v1638 = vpop.f32.mrf.mxu0
        %v1639 = vpop.f32.mrf.mxu0
        %v1640 = vpop.f32.mrf.mxu0
        %1641 = vdwg.mxu0
        %v1643 = vsel %vm1274, %v1592, 0
        %v1646 = vsel %vm1598, %v1263, 0
        %1648 = vmatprep.subr.bf16.mxu0 0
        %1649 = vmatpush1.bf16.msra.mxu0 0
        %1650 = vmatprep.subr.bf16.mxu0 0
        %1651 = vmatpush1.bf16.msra.mxu0 0
        %1652 = vmatprep.subr.bf16.mxu0 0
        %1653 = vmatpush1.bf16.msra.mxu0 0
        %1654 = vmatprep.subr.bf16.mxu0 0
        %1655 = vmatpush1.bf16.msra.mxu0 0
        %1656 = vmatprep.subr.bf16.mxu0 0
        %1657 = vmatpush1.bf16.msra.mxu0 0
        %1658 = vmatprep.subr.bf16.mxu0 0
        %1659 = vmatpush1.bf16.msra.mxu0 0
        %1660 = vmatprep.subr.bf16.mxu0 0
        %1661 = vmatpush1.bf16.msra.mxu0 0
        %1662 = vmatprep.subr.bf16.mxu0 0
        %1663 = vmatpush1.bf16.msra.mxu0 %v1646
        %1664 = vmatprep.subr.bf16.mxu0 0
        %1665 = vmatpush2.bf16.msra.mxu0 0
        %1666 = vmatprep.subr.bf16.mxu0 0
        %1667 = vmatpush2.bf16.msra.mxu0 0
        %1668 = vmatprep.subr.bf16.mxu0 0
        %1669 = vmatpush2.bf16.msra.mxu0 0
        %1670 = vmatprep.subr.bf16.mxu0 0
        %1671 = vmatpush2.bf16.msra.mxu0 0
        %1672 = vmatprep.subr.bf16.mxu0 0
        %1673 = vmatpush2.bf16.msra.mxu0 0
        %1674 = vmatprep.subr.bf16.mxu0 0
        %1675 = vmatpush2.bf16.msra.mxu0 0
        %1676 = vmatprep.subr.bf16.mxu0 0
        %1677 = vmatpush2.bf16.msra.mxu0 0
        %1678 = vmatprep.subr.bf16.mxu0 0
        %1679 = vmatpush2.bf16.msra.mxu0 0
        %1680 = vmatprep.mubr.bf16.mxu0 0
        %1681 = vmatmul.mubr.bf16.gmra.mxu0 %v1643
        %v1682 = vpop.f32.mrf.mxu0
        %v1683 = vadd.f32 0.0, %v1682
        %v1684 = vpop.f32.mrf.mxu0
        %v1685 = vpop.f32.mrf.mxu0
        %v1686 = vpop.f32.mrf.mxu0
        %1687 = vdwg.mxu0
        %v1689 = vsel %vm1274, %v1593, 0
        %v1692 = vsel %vm1598, %v1266, 0
        %1694 = vmatprep.subr.bf16.mxu0 0
        %1695 = vmatpush1.bf16.msra.mxu0 0
        %1696 = vmatprep.subr.bf16.mxu0 0
        %1697 = vmatpush1.bf16.msra.mxu0 0
        %1698 = vmatprep.subr.bf16.mxu0 0
        %1699 = vmatpush1.bf16.msra.mxu0 0
        %1700 = vmatprep.subr.bf16.mxu0 0
        %1701 = vmatpush1.bf16.msra.mxu0 0
        %1702 = vmatprep.subr.bf16.mxu0 0
        %1703 = vmatpush1.bf16.msra.mxu0 0
        %1704 = vmatprep.subr.bf16.mxu0 0
        %1705 = vmatpush1.bf16.msra.mxu0 0
        %1706 = vmatprep.subr.bf16.mxu0 0
        %1707 = vmatpush1.bf16.msra.mxu0 0
        %1708 = vmatprep.subr.bf16.mxu0 0
        %1709 = vmatpush1.bf16.msra.mxu0 %v1692
        %1710 = vmatprep.subr.bf16.mxu0 0
        %1711 = vmatpush2.bf16.msra.mxu0 0
        %1712 = vmatprep.subr.bf16.mxu0 0
        %1713 = vmatpush2.bf16.msra.mxu0 0
        %1714 = vmatprep.subr.bf16.mxu0 0
        %1715 = vmatpush2.bf16.msra.mxu0 0
        %1716 = vmatprep.subr.bf16.mxu0 0
        %1717 = vmatpush2.bf16.msra.mxu0 0
        %1718 = vmatprep.subr.bf16.mxu0 0
        %1719 = vmatpush2.bf16.msra.mxu0 0
        %1720 = vmatprep.subr.bf16.mxu0 0
        %1721 = vmatpush2.bf16.msra.mxu0 0
        %1722 = vmatprep.subr.bf16.mxu0 0
        %1723 = vmatpush2.bf16.msra.mxu0 0
        %1724 = vmatprep.subr.bf16.mxu0 0
        %1725 = vmatpush2.bf16.msra.mxu0 0
        %1726 = vmatprep.mubr.bf16.mxu0 0
        %1727 = vmatmul.mubr.bf16.gmra.mxu0 %v1689
        %v1728 = vpop.f32.mrf.mxu0
        %v1729 = vadd.f32 0.0, %v1728
        %v1730 = vpop.f32.mrf.mxu0
        %v1731 = vpop.f32.mrf.mxu0
        %v1732 = vpop.f32.mrf.mxu0
        %1733 = vdwg.mxu0
        %v1735 = vsel %vm1274, %v1594, 0
        %v1738 = vsel %vm1598, %v1269, 0
        %1740 = vmatprep.subr.bf16.mxu0 0
        %1741 = vmatpush1.bf16.msra.mxu0 0
        %1742 = vmatprep.subr.bf16.mxu0 0
        %1743 = vmatpush1.bf16.msra.mxu0 0
        %1744 = vmatprep.subr.bf16.mxu0 0
        %1745 = vmatpush1.bf16.msra.mxu0 0
        %1746 = vmatprep.subr.bf16.mxu0 0
        %1747 = vmatpush1.bf16.msra.mxu0 0
        %1748 = vmatprep.subr.bf16.mxu0 0
        %1749 = vmatpush1.bf16.msra.mxu0 0
        %1750 = vmatprep.subr.bf16.mxu0 0
        %1751 = vmatpush1.bf16.msra.mxu0 0
        %1752 = vmatprep.subr.bf16.mxu0 0
        %1753 = vmatpush1.bf16.msra.mxu0 0
        %1754 = vmatprep.subr.bf16.mxu0 0
        %1755 = vmatpush1.bf16.msra.mxu0 %v1738
        %1756 = vmatprep.subr.bf16.mxu0 0
        %1757 = vmatpush2.bf16.msra.mxu0 0
        %1758 = vmatprep.subr.bf16.mxu0 0
        %1759 = vmatpush2.bf16.msra.mxu0 0
        %1760 = vmatprep.subr.bf16.mxu0 0
        %1761 = vmatpush2.bf16.msra.mxu0 0
        %1762 = vmatprep.subr.bf16.mxu0 0
        %1763 = vmatpush2.bf16.msra.mxu0 0
        %1764 = vmatprep.subr.bf16.mxu0 0
        %1765 = vmatpush2.bf16.msra.mxu0 0
        %1766 = vmatprep.subr.bf16.mxu0 0
        %1767 = vmatpush2.bf16.msra.mxu0 0
        %1768 = vmatprep.subr.bf16.mxu0 0
        %1769 = vmatpush2.bf16.msra.mxu0 0
        %1770 = vmatprep.subr.bf16.mxu0 0
        %1771 = vmatpush2.bf16.msra.mxu0 0
        %1772 = vmatprep.mubr.bf16.mxu0 0
        %1773 = vmatmul.mubr.bf16.gmra.mxu0 %v1735
        %v1774 = vpop.f32.mrf.mxu0
        %v1775 = vadd.f32 0.0, %v1774
        %v1776 = vpop.f32.mrf.mxu0
        %v1777 = vpop.f32.mrf.mxu0
        %v1778 = vpop.f32.mrf.mxu0
        %1779 = vdwg.mxu0
        %v1780 = vadd.f32 %v1587, %v1637
        %v1781 = vadd.f32 %v1588, %v1683
        %v1782 = vadd.f32 %v1589, %v1729
        %v1783 = vadd.f32 %v1590, %v1775
        %1784 = vst.msk [vmem:[#allocation5] sm:$0xff] %vm1274, %v1780
        %1785 = vst.msk [vmem:[#allocation5 + $0x8] sm:$0xff] %vm1274, %v1781
        %1786 = vst.msk [vmem:[#allocation5 + $0x10] sm:$0xff] %vm1274, %v1782
        %1787 = vst.msk [vmem:[#allocation5 + $0x18] sm:$0xff] %vm1274, %v1783
        %1788 = vst.msk [vmem:[#allocation3] sm:$0xff] %vm1558, %v1486
        %1789 = vst.msk [vmem:[#allocation3 + $0x8] sm:$0xff] %vm1558, %v1487
        %1790 = vst.msk [vmem:[#allocation3 + $0x10] sm:$0xff] %vm1558, %v1488
        %1791 = vst.msk [vmem:[#allocation3 + $0x18] sm:$0xff] %vm1558, %v1489
        %p1792 = scmp.eq.s32.totalorder %s41, 1
        // Predicated region
        $region101: #{tpu_custom_call.1} parent=67 // pred_check
          %p1793 = pneg %p1792
        $region102: #{tpu_custom_call.1} parent=67 // pred_check_branch
          %1795 = sbr.rel (%p1793) target = $region104
        $region103: #{tpu_custom_call.1} parent=67 // pred_region
          %v1796 = vld [vmem:[#allocation17] sm:$0x1]
          %v1797 = vld [vmem:[#allocation17 + $0x1] sm:$0x1]
          %v1798 = vld [vmem:[#allocation17 + $0x2] sm:$0x1]
          %v1799 = vld [vmem:[#allocation17 + $0x3] sm:$0x1]
          %v1800 = vld [vmem:[#allocation17 + $0x4] sm:$0x1]
          %v1801 = vld [vmem:[#allocation17 + $0x5] sm:$0x1]
          %v1802 = vld [vmem:[#allocation5] sm:$0xff]
          %v1803 = vld [vmem:[#allocation5 + $0x8] sm:$0xff]
          %v1804 = vld [vmem:[#allocation5 + $0x10] sm:$0xff]
          %v1805 = vld [vmem:[#allocation5 + $0x18] sm:$0xff]
          %v1806 = vld [vmem:[#allocation4] sm:$0xff]
          %v1807 = vld [vmem:[#allocation4 + $0x8] sm:$0xff]
          %v1808 = vld [vmem:[#allocation4 + $0x10] sm:$0xff]
          %v1809 = vld [vmem:[#allocation4 + $0x18] sm:$0xff]
          %v1810 = vrcp.pop %v1806
          %v1811 = vrcp.pop %v1807
          %v1812 = vrcp.pop %v1808
          %v1813 = vrcp.pop %v1809
          %1815 = vset.pattern.permute.xlu0 0
          %1816 = vperm.xlu0 %1815, %v1810
          %v1817 = vpop.permute.xlu0 %1816
          %1820 = vset.pattern.permute.xlu0 0
          %1821 = vperm.xlu0 %1820, %v1811
          %v1822 = vpop.permute.xlu0 %1821
          %1825 = vset.pattern.permute.xlu0 0
          %1826 = vperm.xlu0 %1825, %v1812
          %v1827 = vpop.permute.xlu0 %1826
          %1830 = vset.pattern.permute.xlu0 0
          %1831 = vperm.xlu0 %1830, %v1813
          %v1832 = vpop.permute.xlu0 %1831
          %v1834 = vmul.f32 %v1802, %v1817
          %v1835 = vmul.f32 %v1803, %v1822
          %v1836 = vmul.f32 %v1804, %v1827
          %v1837 = vmul.f32 %v1805, %v1832
          %v1838 = vpack.c.bf16 %v1834, %v1834
          %v1839 = vpack.c.bf16 %v1835, %v1835
          %v1840 = vpack.c.bf16 %v1836, %v1836
          %v1841 = vpack.c.bf16 %v1837, %v1837
          %v1842 = vld [vmem:[#allocation12] sm:$0xf]
          %v1843 = vld [vmem:[#allocation12 + $0x4] sm:$0xf]
          %v1844 = vld [vmem:[#allocation12 + $0x8] sm:$0xf]
          %v1845 = vld [vmem:[#allocation12 + $0xc] sm:$0xf]
          %v1847 = vsel %vm1274, %v1838, 0
          %v1850 = vsel %vm1598, %v1842, 0
          %1852 = vmatprep.subr.bf16.mxu0 0
          %1853 = vmatpush1.bf16.msra.mxu0 0
          %1854 = vmatprep.subr.bf16.mxu0 0
          %1855 = vmatpush1.bf16.msra.mxu0 0
          %1856 = vmatprep.subr.bf16.mxu0 0
          %1857 = vmatpush1.bf16.msra.mxu0 0
          %1858 = vmatprep.subr.bf16.mxu0 0
          %1859 = vmatpush1.bf16.msra.mxu0 0
          %1860 = vmatprep.subr.bf16.mxu0 0
          %1861 = vmatpush1.bf16.msra.mxu0 0
          %1862 = vmatprep.subr.bf16.mxu0 0
          %1863 = vmatpush1.bf16.msra.mxu0 0
          %1864 = vmatprep.subr.bf16.mxu0 0
          %1865 = vmatpush1.bf16.msra.mxu0 0
          %1866 = vmatprep.subr.bf16.mxu0 0
          %1867 = vmatpush1.bf16.msra.mxu0 %v1850
          %1868 = vmatprep.subr.bf16.mxu0 0
          %1869 = vmatpush2.bf16.msra.mxu0 0
          %1870 = vmatprep.subr.bf16.mxu0 0
          %1871 = vmatpush2.bf16.msra.mxu0 0
          %1872 = vmatprep.subr.bf16.mxu0 0
          %1873 = vmatpush2.bf16.msra.mxu0 0
          %1874 = vmatprep.subr.bf16.mxu0 0
          %1875 = vmatpush2.bf16.msra.mxu0 0
          %1876 = vmatprep.subr.bf16.mxu0 0
          %1877 = vmatpush2.bf16.msra.mxu0 0
          %1878 = vmatprep.subr.bf16.mxu0 0
          %1879 = vmatpush2.bf16.msra.mxu0 0
          %1880 = vmatprep.subr.bf16.mxu0 0
          %1881 = vmatpush2.bf16.msra.mxu0 0
          %1882 = vmatprep.subr.bf16.mxu0 0
          %1883 = vmatpush2.bf16.msra.mxu0 0
          %1884 = vmatprep.mubr.bf16.mxu0 0
          %1885 = vmatmul.mubr.bf16.gmra.mxu0 %v1847
          %v1886 = vpop.f32.mrf.mxu0
          %v1887 = vadd.f32 0.0, %v1886
          %v1888 = vpop.f32.mrf.mxu0
          %v1889 = vpop.f32.mrf.mxu0
          %v1890 = vpop.f32.mrf.mxu0
          %1891 = vdwg.mxu0
          %v1893 = vsel %vm1274, %v1839, 0
          %v1896 = vsel %vm1598, %v1843, 0
          %1898 = vmatprep.subr.bf16.mxu0 0
          %1899 = vmatpush1.bf16.msra.mxu0 0
          %1900 = vmatprep.subr.bf16.mxu0 0
          %1901 = vmatpush1.bf16.msra.mxu0 0
          %1902 = vmatprep.subr.bf16.mxu0 0
          %1903 = vmatpush1.bf16.msra.mxu0 0
          %1904 = vmatprep.subr.bf16.mxu0 0
          %1905 = vmatpush1.bf16.msra.mxu0 0
          %1906 = vmatprep.subr.bf16.mxu0 0
          %1907 = vmatpush1.bf16.msra.mxu0 0
          %1908 = vmatprep.subr.bf16.mxu0 0
          %1909 = vmatpush1.bf16.msra.mxu0 0
          %1910 = vmatprep.subr.bf16.mxu0 0
          %1911 = vmatpush1.bf16.msra.mxu0 0
          %1912 = vmatprep.subr.bf16.mxu0 0
          %1913 = vmatpush1.bf16.msra.mxu0 %v1896
          %1914 = vmatprep.subr.bf16.mxu0 0
          %1915 = vmatpush2.bf16.msra.mxu0 0
          %1916 = vmatprep.subr.bf16.mxu0 0
          %1917 = vmatpush2.bf16.msra.mxu0 0
          %1918 = vmatprep.subr.bf16.mxu0 0
          %1919 = vmatpush2.bf16.msra.mxu0 0
          %1920 = vmatprep.subr.bf16.mxu0 0
          %1921 = vmatpush2.bf16.msra.mxu0 0
          %1922 = vmatprep.subr.bf16.mxu0 0
          %1923 = vmatpush2.bf16.msra.mxu0 0
          %1924 = vmatprep.subr.bf16.mxu0 0
          %1925 = vmatpush2.bf16.msra.mxu0 0
          %1926 = vmatprep.subr.bf16.mxu0 0
          %1927 = vmatpush2.bf16.msra.mxu0 0
          %1928 = vmatprep.subr.bf16.mxu0 0
          %1929 = vmatpush2.bf16.msra.mxu0 0
          %1930 = vmatprep.mubr.bf16.mxu0 0
          %1931 = vmatmul.mubr.bf16.gmra.mxu0 %v1893
          %v1932 = vpop.f32.mrf.mxu0
          %v1933 = vadd.f32 0.0, %v1932
          %v1934 = vpop.f32.mrf.mxu0
          %v1935 = vpop.f32.mrf.mxu0
          %v1936 = vpop.f32.mrf.mxu0
          %1937 = vdwg.mxu0
          %v1939 = vsel %vm1274, %v1840, 0
          %v1942 = vsel %vm1598, %v1844, 0
          %1944 = vmatprep.subr.bf16.mxu0 0
          %1945 = vmatpush1.bf16.msra.mxu0 0
          %1946 = vmatprep.subr.bf16.mxu0 0
          %1947 = vmatpush1.bf16.msra.mxu0 0
          %1948 = vmatprep.subr.bf16.mxu0 0
          %1949 = vmatpush1.bf16.msra.mxu0 0
          %1950 = vmatprep.subr.bf16.mxu0 0
          %1951 = vmatpush1.bf16.msra.mxu0 0
          %1952 = vmatprep.subr.bf16.mxu0 0
          %1953 = vmatpush1.bf16.msra.mxu0 0
          %1954 = vmatprep.subr.bf16.mxu0 0
          %1955 = vmatpush1.bf16.msra.mxu0 0
          %1956 = vmatprep.subr.bf16.mxu0 0
          %1957 = vmatpush1.bf16.msra.mxu0 0
          %1958 = vmatprep.subr.bf16.mxu0 0
          %1959 = vmatpush1.bf16.msra.mxu0 %v1942
          %1960 = vmatprep.subr.bf16.mxu0 0
          %1961 = vmatpush2.bf16.msra.mxu0 0
          %1962 = vmatprep.subr.bf16.mxu0 0
          %1963 = vmatpush2.bf16.msra.mxu0 0
          %1964 = vmatprep.subr.bf16.mxu0 0
          %1965 = vmatpush2.bf16.msra.mxu0 0
          %1966 = vmatprep.subr.bf16.mxu0 0
          %1967 = vmatpush2.bf16.msra.mxu0 0
          %1968 = vmatprep.subr.bf16.mxu0 0
          %1969 = vmatpush2.bf16.msra.mxu0 0
          %1970 = vmatprep.subr.bf16.mxu0 0
          %1971 = vmatpush2.bf16.msra.mxu0 0
          %1972 = vmatprep.subr.bf16.mxu0 0
          %1973 = vmatpush2.bf16.msra.mxu0 0
          %1974 = vmatprep.subr.bf16.mxu0 0
          %1975 = vmatpush2.bf16.msra.mxu0 0
          %1976 = vmatprep.mubr.bf16.mxu0 0
          %1977 = vmatmul.mubr.bf16.gmra.mxu0 %v1939
          %v1978 = vpop.f32.mrf.mxu0
          %v1979 = vadd.f32 0.0, %v1978
          %v1980 = vpop.f32.mrf.mxu0
          %v1981 = vpop.f32.mrf.mxu0
          %v1982 = vpop.f32.mrf.mxu0
          %1983 = vdwg.mxu0
          %v1985 = vsel %vm1274, %v1841, 0
          %v1988 = vsel %vm1598, %v1845, 0
          %1990 = vmatprep.subr.bf16.mxu0 0
          %1991 = vmatpush1.bf16.msra.mxu0 0
          %1992 = vmatprep.subr.bf16.mxu0 0
          %1993 = vmatpush1.bf16.msra.mxu0 0
          %1994 = vmatprep.subr.bf16.mxu0 0
          %1995 = vmatpush1.bf16.msra.mxu0 0
          %1996 = vmatprep.subr.bf16.mxu0 0
          %1997 = vmatpush1.bf16.msra.mxu0 0
          %1998 = vmatprep.subr.bf16.mxu0 0
          %1999 = vmatpush1.bf16.msra.mxu0 0
          %2000 = vmatprep.subr.bf16.mxu0 0
          %2001 = vmatpush1.bf16.msra.mxu0 0
          %2002 = vmatprep.subr.bf16.mxu0 0
          %2003 = vmatpush1.bf16.msra.mxu0 0
          %2004 = vmatprep.subr.bf16.mxu0 0
          %2005 = vmatpush1.bf16.msra.mxu0 %v1988
          %2006 = vmatprep.subr.bf16.mxu0 0
          %2007 = vmatpush2.bf16.msra.mxu0 0
          %2008 = vmatprep.subr.bf16.mxu0 0
          %2009 = vmatpush2.bf16.msra.mxu0 0
          %2010 = vmatprep.subr.bf16.mxu0 0
          %2011 = vmatpush2.bf16.msra.mxu0 0
          %2012 = vmatprep.subr.bf16.mxu0 0
          %2013 = vmatpush2.bf16.msra.mxu0 0
          %2014 = vmatprep.subr.bf16.mxu0 0
          %2015 = vmatpush2.bf16.msra.mxu0 0
          %2016 = vmatprep.subr.bf16.mxu0 0
          %2017 = vmatpush2.bf16.msra.mxu0 0
          %2018 = vmatprep.subr.bf16.mxu0 0
          %2019 = vmatpush2.bf16.msra.mxu0 0
          %2020 = vmatprep.subr.bf16.mxu0 0
          %2021 = vmatpush2.bf16.msra.mxu0 0
          %2022 = vmatprep.mubr.bf16.mxu0 0
          %2023 = vmatmul.mubr.bf16.gmra.mxu0 %v1985
          %v2024 = vpop.f32.mrf.mxu0
          %v2025 = vadd.f32 0.0, %v2024
          %v2026 = vpop.f32.mrf.mxu0
          %v2027 = vpop.f32.mrf.mxu0
          %v2028 = vpop.f32.mrf.mxu0
          %2029 = vdwg.mxu0
          %v2030 = vsel %vm887, %v1887, 0.0
          %v2031 = vsel %vm887, %v1933, 0.0
          %v2032 = vadd.f32 %v2030, %v2031
          %v2033 = vsel %vm887, %v1979, 0.0
          %v2034 = vadd.f32 %v2032, %v2033
          %v2035 = vsel %vm887, %v2025, 0.0
          %v2036 = vadd.f32 %v2034, %v2035
          %v2037 = vlaneseq
          %v2038 = vshrl.u32 %v2037, 7
          %v2039 = vsub.s32 0, %v2038
          %v2040 = vrot.slane %v1796, %v2039
          %v2041 = vadd.f32 %v2036, %v2040
          %v2042 = vadd.f32 %v2041, %v595
          %v2043 = vsel %vm887, %v2042, 0.0
          %2044 = vadd.xlane.f32.xlu0 %v2043
          %v2045 = vpop.xlane.xlu0 %2044
          %v2046 = vrcp.pop 32.0
          %v2047 = vmul.f32 %v2045, %v2046
          %v2048 = vsub.f32 %v2042, %v2047
          %v2049 = vmul.f32 %v2048, %v2048
          %v2050 = vsel %vm887, %v2049, 0.0
          %2051 = vadd.xlane.f32.xlu0 %v2050
          %v2052 = vpop.xlane.xlu0 %2051
          %v2053 = vmul.f32 %v2052, %v2046
          %v2054 = vadd.f32 %v2053, 1e-05
          %v2055 = vrsqrt.pop %v2054
          %v2056 = vmul.f32 %v2048, %v2055
          %v2057 = vlaneseq
          %v2058 = vshrl.u32 %v2057, 7
          %v2059 = vsub.s32 0, %v2058
          %v2060 = vrot.slane %v1798, %v2059
          %v2061 = vmul.f32 %v2060, %v2056
          %v2062 = vlaneseq
          %v2063 = vshrl.u32 %v2062, 7
          %v2064 = vsub.s32 0, %v2063
          %v2065 = vrot.slane %v1799, %v2064
          %v2066 = vadd.f32 %v2061, %v2065
          %v2067 = vld [vmem:[#allocation14] sm:$0xf]
          %v2068 = vld [vmem:[#allocation14 + $0x4] sm:$0xf]
          %v2069 = vld [vmem:[#allocation14 + $0x8] sm:$0xf]
          %v2070 = vld [vmem:[#allocation14 + $0xc] sm:$0xf]
          %v2071 = vpack.c.bf16 %v2066, %v2066
          %v2072 = vld [vmem:[#allocation15] sm:$0x1]
          %v2074 = vlaneseq
          %v2075 = vshrl.u32 %v2074, 7
          %v2076 = vsub.s32 0, %v2075
          %v2077 = vrot.slane %v2072, %v2076
          %v2083 = vunpack.c.l.b16 %v2067
          %v2084 = vunpack.c.l.b16 %v2068
          %v2085 = vunpack.c.l.b16 %v2069
          %v2086 = vunpack.c.l.b16 %v2070
          %v2087 = vpack.c.b16 %v2084, %v2083
          %v2088 = vpack.c.b16 %v2086, %v2085
          %v2092 = vsel %vm887, %v2071, 0
          %2094 = vmatprep.subr.bf16.mxu0 0
          %2095 = vmatpush1.bf16.msra.mxu0 0
          %2096 = vmatprep.subr.bf16.mxu0 0
          %2097 = vmatpush1.bf16.msra.mxu0 0
          %2098 = vmatprep.subr.bf16.mxu0 0
          %2099 = vmatpush1.bf16.msra.mxu0 0
          %2100 = vmatprep.subr.bf16.mxu0 0
          %2101 = vmatpush1.bf16.msra.mxu0 0
          %2102 = vmatprep.subr.bf16.mxu0 0
          %2103 = vmatpush1.bf16.msra.mxu0 0
          %2104 = vmatprep.subr.bf16.mxu0 0
          %2105 = vmatpush1.bf16.msra.mxu0 0
          %2106 = vmatprep.subr.bf16.mxu0 0
          %2107 = vmatpush1.bf16.msra.mxu0 %v2088
          %2108 = vmatprep.subr.bf16.mxu0 0
          %2109 = vmatpush1.bf16.msra.mxu0 %v2087
          %2110 = vmatprep.subr.bf16.mxu0 0
          %2111 = vmatpush2.bf16.msra.mxu0 0
          %2112 = vmatprep.subr.bf16.mxu0 0
          %2113 = vmatpush2.bf16.msra.mxu0 0
          %2114 = vmatprep.subr.bf16.mxu0 0
          %2115 = vmatpush2.bf16.msra.mxu0 0
          %2116 = vmatprep.subr.bf16.mxu0 0
          %2117 = vmatpush2.bf16.msra.mxu0 0
          %2118 = vmatprep.subr.bf16.mxu0 0
          %2119 = vmatpush2.bf16.msra.mxu0 0
          %2120 = vmatprep.subr.bf16.mxu0 0
          %2121 = vmatpush2.bf16.msra.mxu0 0
          %2122 = vmatprep.subr.bf16.mxu0 0
          %2123 = vmatpush2.bf16.msra.mxu0 0
          %2124 = vmatprep.subr.bf16.mxu0 0
          %2125 = vmatpush2.bf16.msra.mxu0 0
          %2126 = vmatprep.mubr.bf16.mxu0 0
          %2127 = vmatmul.mubr.bf16.gmra.mxu0 %v2092
          %v2128 = vpop.f32.mrf.mxu0
          %v2129 = vadd.f32 %v2077, %v2128
          %v2130 = vpop.f32.mrf.mxu0
          %v2131 = vpop.f32.mrf.mxu0
          %v2132 = vpop.f32.mrf.mxu0
          %2133 = vdwg.mxu0
          %v2134 = vmax.f32 %v2129, 0.0
          %v2135 = vld [vmem:[%s10] sm:$0xf]
          %v2136 = vld [vmem:[%s10 + $0x4] sm:$0xf]
          %v2137 = vld [vmem:[%s10 + $0x8] sm:$0xf]
          %v2138 = vld [vmem:[%s10 + $0xc] sm:$0xf]
          %v2139 = vld [vmem:[%s10 + $0x10] sm:$0xf]
          %v2140 = vld [vmem:[%s10 + $0x14] sm:$0xf]
          %v2141 = vld [vmem:[%s10 + $0x18] sm:$0xf]
          %v2142 = vld [vmem:[%s10 + $0x1c] sm:$0xf]
          %v2143 = vpack.c.bf16 %v2134, %v2134
          %v2144 = vlaneseq
          %v2145 = vshrl.u32 %v2144, 7
          %v2146 = vsub.s32 0, %v2145
          %v2147 = vrot.slane %v1797, %v2146
          %v2156 = vunpack.c.l.b16 %v2135
          %v2157 = vunpack.c.l.b16 %v2136
          %v2158 = vunpack.c.l.b16 %v2137
          %v2159 = vunpack.c.l.b16 %v2138
          %v2160 = vunpack.c.l.b16 %v2139
          %v2161 = vunpack.c.l.b16 %v2140
          %v2162 = vunpack.c.l.b16 %v2141
          %v2163 = vunpack.c.l.b16 %v2142
          %v2164 = vpack.c.b16 %v2157, %v2156
          %v2165 = vpack.c.b16 %v2159, %v2158
          %v2166 = vpack.c.b16 %v2161, %v2160
          %v2167 = vpack.c.b16 %v2163, %v2162
          %vm2172 = vcmask 523264
          %v2174 = vsel %vm2172, %v2143, 0
          %2176 = vmatprep.subr.bf16.mxu0 0
          %2177 = vmatpush1.bf16.msra.mxu0 0
          %2178 = vmatprep.subr.bf16.mxu0 0
          %2179 = vmatpush1.bf16.msra.mxu0 0
          %2180 = vmatprep.subr.bf16.mxu0 0
          %2181 = vmatpush1.bf16.msra.mxu0 0
          %2182 = vmatprep.subr.bf16.mxu0 0
          %2183 = vmatpush1.bf16.msra.mxu0 0
          %2184 = vmatprep.subr.bf16.mxu0 0
          %2185 = vmatpush1.bf16.msra.mxu0 %v2167
          %2186 = vmatprep.subr.bf16.mxu0 0
          %2187 = vmatpush1.bf16.msra.mxu0 %v2166
          %2188 = vmatprep.subr.bf16.mxu0 0
          %2189 = vmatpush1.bf16.msra.mxu0 %v2165
          %2190 = vmatprep.subr.bf16.mxu0 0
          %2191 = vmatpush1.bf16.msra.mxu0 %v2164
          %2192 = vmatprep.subr.bf16.mxu0 0
          %2193 = vmatpush2.bf16.msra.mxu0 0
          %2194 = vmatprep.subr.bf16.mxu0 0
          %2195 = vmatpush2.bf16.msra.mxu0 0
          %2196 = vmatprep.subr.bf16.mxu0 0
          %2197 = vmatpush2.bf16.msra.mxu0 0
          %2198 = vmatprep.subr.bf16.mxu0 0
          %2199 = vmatpush2.bf16.msra.mxu0 0
          %2200 = vmatprep.subr.bf16.mxu0 0
          %2201 = vmatpush2.bf16.msra.mxu0 0
          %2202 = vmatprep.subr.bf16.mxu0 0
          %2203 = vmatpush2.bf16.msra.mxu0 0
          %2204 = vmatprep.subr.bf16.mxu0 0
          %2205 = vmatpush2.bf16.msra.mxu0 0
          %2206 = vmatprep.subr.bf16.mxu0 0
          %2207 = vmatpush2.bf16.msra.mxu0 0
          %2208 = vmatprep.mubr.bf16.mxu0 0
          %2209 = vmatmul.mubr.bf16.gmra.mxu0 %v2174
          %v2210 = vpop.f32.mrf.mxu0
          %v2211 = vadd.f32 %v2147, %v2210
          %v2212 = vpop.f32.mrf.mxu0
          %v2213 = vpop.f32.mrf.mxu0
          %v2214 = vpop.f32.mrf.mxu0
          %2215 = vdwg.mxu0
          %v2216 = vadd.f32 %v2211, %v2066
          %v2217 = vsel %vm887, %v2216, 0.0
          %2218 = vadd.xlane.f32.xlu0 %v2217
          %v2219 = vpop.xlane.xlu0 %2218
          %v2220 = vmul.f32 %v2219, %v2046
          %v2221 = vsub.f32 %v2216, %v2220
          %v2222 = vmul.f32 %v2221, %v2221
          %v2223 = vsel %vm887, %v2222, 0.0
          %2224 = vadd.xlane.f32.xlu0 %v2223
          %v2225 = vpop.xlane.xlu0 %2224
          %v2226 = vmul.f32 %v2225, %v2046
          %v2227 = vadd.f32 %v2226, 1e-05
          %v2228 = vrsqrt.pop %v2227
          %v2229 = vmul.f32 %v2221, %v2228
          %v2230 = vlaneseq
          %v2231 = vshrl.u32 %v2230, 7
          %v2232 = vsub.s32 0, %v2231
          %v2233 = vrot.slane %v1800, %v2232
          %v2234 = vmul.f32 %v2233, %v2229
          %v2235 = vlaneseq
          %v2236 = vshrl.u32 %v2235, 7
          %v2237 = vsub.s32 0, %v2236
          %v2238 = vrot.slane %v1801, %v2237
          %v2239 = vadd.f32 %v2234, %v2238
          %2240 = vst.msk [vmem:[%s585] sm:$0xff] %vm887, %v2239
        $region104: #{tpu_custom_call.1} parent=67 // pred_fallthru
          _
        %s2241 = sand.u32 %s336, 1
        %s2242 = scalar_lea.sflag [#allocation8], %s2241
        %s2243 = sand.u32 %s336, 1
        %s2244 = smul.addr %s2243, 8
        %s2245 = scalar_lea.vmem [#allocation18], %s2244
        // Predicated region
        $region105: #{tpu_custom_call.1} parent=67 // pred_check
          %p2246 = pneg %p346
        $region106: #{tpu_custom_call.1} parent=67 // pred_check_branch
          %2248 = sbr.rel (%p2246) target = $region108
        $region107: #{tpu_custom_call.1} parent=67 // pred_region
          %s2250 = ssub.s32 128, 128
          %2251 = vsyncadd %s2242, %s2250
          %s2252 = smul.addr %s39, 2
          %s2253 = sadd.s32 %s40, %s2252
          %s2254 = smul.addr %s2253, 128
          %s2255 = scalar_lea.hbm %s12, %s2254
          %s2257 = sshll.u32 %s2245, 4
          %s2258 = int_to_ptr.vmem [resolvable:$true] %s2257
          %2260 = dma.vmem_to_hbm [thread:$0]  %s2258, 128, %s2255, %s2242
        $region108: #{tpu_custom_call.1} parent=67 // pred_fallthru
          _
      $region68: #{tpu_custom_call.1} parent=5 // pred_fallthru
        _
      %p2261 = scmp.le.s32.totalorder 2, %s29
      // Predicated region
      $region109: #{tpu_custom_call.1} parent=5 // pred_check
        %p2262 = pneg %p2261
      $region110: #{tpu_custom_call.1} parent=5 // pred_check_branch
        %2264 = sbr.rel (%p2262) target = $region112
      $region111: #{tpu_custom_call.1} parent=5 // pred_region
        %s2265 = ssub.s32 %s29, 2
        // Predicated region
        $region113: #{tpu_custom_call.1} parent=111 // pred_check
          %p2266 = pneg %p352
        $region114: #{tpu_custom_call.1} parent=111 // pred_check_branch
          %2268 = sbr.rel (%p2266) target = $region116
        $region115: #{tpu_custom_call.1} parent=111 // pred_region
          %s2269 = sand.u32 %s337, 1
          %s2270 = scalar_lea.sflag [#allocation8], %s2269
          %s2271 = sand.u32 %s337, 1
          %s2272 = smul.addr %s2271, 8
          %s2273 = scalar_lea.vmem [#allocation18], %s2272
          %2274 = dma.done %s2270, 128
        $region116: #{tpu_custom_call.1} parent=111 // pred_fallthru
          _
      $region112: #{tpu_custom_call.1} parent=5 // pred_fallthru
        _
    $region6: #{tpu_custom_call.1} parent=1 // loop_footer
      %s33 = sadd.s32 1, %s29
    $region7: #{tpu_custom_call.1} parent=1 // loop_footer_branch
      %28 = sbr.rel target = $region3
    $region8: #{tpu_custom_call.1} parent=1 // loop_exit
      _
    %2275 = vsyncpa [#allocation7], 1
    %s2276 = scalar_lea.sflag [#allocation7], 1
    %2277 = vsyncpa %s2276, 1
    %2278 = vsyncpa [#allocation10], 1
    %s2279 = scalar_lea.sflag [#allocation10], 1
    %2280 = vsyncpa %s2279, 1
    %2281 = vsyncpa [#allocation13], 1
    %2282 = vsyncpa [#allocation16], 1
    %2283 = vsyncpa [#allocation8], 1
    %s2284 = scalar_lea.sflag [#allocation8], 1
    %2285 = vsyncpa %s2284, 1

</llo_original>
